<compile_context>
chip_gen: v6e
topology: v6e:2x2x1
jax: 0.10.0
libtpu: 0.0.40
codegen_flags: <defaults>
</compile_context>

<pallas_src>
import functools

import jax
import jax.numpy as jnp
from jax.experimental import pallas as pl
from jax.experimental.pallas import tpu as pltpu


D_IN = 3 * 32 * 32      # 3072
H1 = 384
H2 = 192
H2_PAD = 256            # lane-dense padded hidden-2 width (zero-padded, exact)
N_LOGITS = 10
N_OUT_PADDED = 128      # lane-dense padded logits width


def _mlp_kernel(x_ref, w1_ref, b1_ref, w2_ref, b2_ref, w3_ref, b3_ref, o_ref):
    # Linear(3072 -> 384) + ReLU   (bf16 operands, f32 accumulation on the MXU)
    x = x_ref[...]
    if x.dtype != jnp.bfloat16:
        x = x.astype(jnp.bfloat16)          # no-op when the producer already feeds bf16
    h1 = jnp.dot(x, w1_ref[...], preferred_element_type=jnp.float32)
    h1 = jnp.maximum(h1 + b1_ref[...], 0.0)
    # Linear(384 -> 256 padded; real hidden in lanes [:192]) + ReLU
    h2 = jnp.dot(h1.astype(jnp.bfloat16), w2_ref[...],
                 preferred_element_type=jnp.float32)
    h2 = jnp.maximum(h2 + b2_ref[...], 0.0)
    # Linear(256 padded -> 128 padded; real logits in lanes [:10])
    out = jnp.dot(h2.astype(jnp.bfloat16), w3_ref[...],
                  preferred_element_type=jnp.float32)
    o_ref[...] = out + b3_ref[...]


@functools.partial(jax.jit, static_argnames=("block_b",))
def cnn0_forward(x, kparams, *, block_b=512):
    """x: (B, 3, 32, 32) float32 or bfloat16 -> logits (B, 10) float32.

    kparams: output of prepare_kernel_params (bf16 weights, f32 biases, padded layers).
    block_b: batch tile. 512 is safe under a 48 MiB scoped-VMEM budget on v5e/v6e/v7x;
             use 256 on v5e if you want to stay within its 16 MiB default scoped VMEM.
    """
    w1, b1, w2, b2, w3, b3 = kparams
    B = x.shape[0]
    x_flat = x.reshape(B, -1)               # row-major flatten == torch.flatten(x, 1)

    # No padding copy: single full-extent tile for small B, ragged last block otherwise.
    tb = B if B <= block_b else block_b
    grid = (pl.cdiv(B, tb),)
    n_out = w3.shape[1]

    flops = 2 * B * (D_IN * H1 + H1 * H2_PAD + H2_PAD * n_out)
    bytes_accessed = (
        x_flat.size * x_flat.dtype.itemsize
        + sum(int(p.size) * p.dtype.itemsize for p in kparams)
        + B * n_out * 4
    )

    out = pl.pallas_call(
        _mlp_kernel,
        out_shape=jax.ShapeDtypeStruct((B, n_out), jnp.float32),
        grid=grid,
        in_specs=[
            pl.BlockSpec((tb, D_IN), lambda i: (i, 0)),        # x: batch-tiled
            pl.BlockSpec(w1.shape, lambda i: (0, 0)),          # weights/biases: resident
            pl.BlockSpec(b1.shape, lambda i: (0, 0)),
            pl.BlockSpec(w2.shape, lambda i: (0, 0)),
            pl.BlockSpec(b2.shape, lambda i: (0, 0)),
            pl.BlockSpec(w3.shape, lambda i: (0, 0)),
            pl.BlockSpec(b3.shape, lambda i: (0, 0)),
        ],
        out_specs=pl.BlockSpec((tb, n_out), lambda i: (i, 0)),
        compiler_params=pltpu.CompilerParams(
            dimension_semantics=("parallel",),                  # shard batch over TCs (v7x)
            vmem_limit_bytes=48 * 1024 * 1024,                  # < v7x 64 MiB physical
        ),
        cost_estimate=pl.CostEstimate(
            flops=flops, transcendentals=0, bytes_accessed=bytes_accessed),
    )(x_flat, w1, b1, w2, b2, w3, b3)

    return out[:, :N_LOGITS]


def init_params(key):
    """nn.Linear-style init (U[-1/sqrt(fan_in), +1/sqrt(fan_in)]), f32 reference params.
    Weights stored as (in_features, out_features) so forward is x @ W."""
    dims = [(D_IN, H1), (H1, H2), (H2, N_LOGITS)]
    params = []
    for i, (fan_in, fan_out) in enumerate(dims):
        kw, kb = jax.random.split(jax.random.fold_in(key, i))
        bound = 1.0 / jnp.sqrt(float(fan_in))
        w = jax.random.uniform(kw, (fan_in, fan_out), jnp.float32, -bound, bound)
        b = jax.random.uniform(kb, (1, fan_out), jnp.float32, -bound, bound)
        params += [w, b]
    return tuple(params)


def prepare_kernel_params(params):
    """bf16 weights (f32 biases). Layer 2 zero-padded 192->256 (exact), layer 3 zero-padded
    to 128 output lanes (exact; wrapper slices [:10])."""
    w1, b1, w2, b2, w3, b3 = params
    w2p = jnp.zeros((H1, H2_PAD), jnp.float32).at[:, :H2].set(w2)
    b2p = jnp.zeros((1, H2_PAD), jnp.float32).at[:, :H2].set(b2)
    w3p = jnp.zeros((H2_PAD, N_OUT_PADDED), jnp.float32).at[:H2, :N_LOGITS].set(w3)
    b3p = jnp.zeros((1, N_OUT_PADDED), jnp.float32).at[:, :N_LOGITS].set(b3)
    return (w1.astype(jnp.bfloat16), b1,
            w2p.astype(jnp.bfloat16), b2p,
            w3p.astype(jnp.bfloat16), b3p)


def reference_forward_f32(x, params):
    w1, b1, w2, b2, w3, b3 = params
    h = x.reshape(x.shape[0], -1).astype(jnp.float32)
    h = jnp.maximum(h @ w1 + b1, 0.0)
    h = jnp.maximum(h @ w2 + b2, 0.0)
    return h @ w3 + b3


def reference_forward_bf16(x, kparams):
    """Pure-JAX reference with identical bf16-weight / f32-accumulate numerics."""
    w1, b1, w2, b2, w3, b3 = kparams
    h = x.reshape(x.shape[0], -1).astype(jnp.bfloat16)
    h = jnp.maximum(jnp.dot(h, w1, preferred_element_type=jnp.float32) + b1, 0.0)
    h = jnp.maximum(jnp.dot(h.astype(jnp.bfloat16), w2,
                            preferred_element_type=jnp.float32) + b2, 0.0)
    out = jnp.dot(h.astype(jnp.bfloat16), w3,
                  preferred_element_type=jnp.float32) + b3
    return out[:, :N_LOGITS]


if __name__ == "__main__":
    key = jax.random.PRNGKey(0)
    kx, kp = jax.random.split(key)

    params = init_params(kp)
    kparams = prepare_kernel_params(params)

    # Small batch (single full-extent tile), f32 input path.
    x = jax.random.normal(kx, (2, 3, 32, 32), dtype=jnp.float32)
    out = jax.block_until_ready(cnn0_forward(x, kparams))
    assert out.shape == (2, N_LOGITS), out.shape
    assert jnp.allclose(out, reference_forward_bf16(x, kparams), atol=2e-3, rtol=2e-3), \
        "mismatch vs bf16 JAX reference"
    assert jnp.allclose(out, reference_forward_f32(x, params), atol=1e-1, rtol=1e-1), \
        "mismatch vs f32 JAX reference"

    # bf16 activation path (halved x-HBM stream): producer feeds bf16 directly.
    x_bf16 = x.astype(jnp.bfloat16)
    out_bf = jax.block_until_ready(cnn0_forward(x_bf16, kparams))
    assert jnp.allclose(out_bf, reference_forward_bf16(x_bf16, kparams),
                        atol=2e-3, rtol=2e-3), "bf16-input path mismatch"

    # Tiled grid with a ragged last block (no wrapper-side padding copy):
    # B=20, tile=8 -> grid (3,), last block covers rows 16..23 (rows 20..23 masked).
    x2 = jax.random.normal(jax.random.fold_in(key, 7), (20, 3, 32, 32), dtype=jnp.float32)
    out2 = jax.block_until_ready(cnn0_forward(x2, kparams, block_b=8))
    assert out2.shape == (20, N_LOGITS), out2.shape
    assert jnp.allclose(out2, reference_forward_bf16(x2, kparams), atol=2e-3, rtol=2e-3), \
        "ragged tiled-path mismatch vs bf16 JAX reference"

    print("KERNEL_OK")
</pallas_src>

<mosaic_0001>
module attributes {stable_mosaic.version = 11 : i64} {
  func.func @_mlp_kernel(%arg0: i32, %arg1: memref<2x3072xf32, #tpu.memory_space<vmem>>, %arg2: memref<3072x384xbf16, #tpu.memory_space<vmem>>, %arg3: memref<1x384xf32, #tpu.memory_space<vmem>>, %arg4: memref<384x256xbf16, #tpu.memory_space<vmem>>, %arg5: memref<1x256xf32, #tpu.memory_space<vmem>>, %arg6: memref<256x128xbf16, #tpu.memory_space<vmem>>, %arg7: memref<1x128xf32, #tpu.memory_space<vmem>>, %arg8: memref<2x128xf32, #tpu.memory_space<vmem>>) attributes {dimension_semantics = [#tpu.dimension_semantics<parallel>], iteration_bounds = array<i64: 1>, scalar_prefetch = 0 : i64, scratch_operands = 0 : i64, tpu.core_type = #tpu.core_type<tc>, window_params = [{transform_indices = @transform_0, window_bounds = array<i64: 2, 3072>}, {pipeline_mode = #tpu.pipeline_mode<synchronous>, transform_indices = @transform_1, window_bounds = array<i64: 3072, 384>}, {pipeline_mode = #tpu.pipeline_mode<synchronous>, transform_indices = @transform_2, window_bounds = array<i64: 1, 384>}, {pipeline_mode = #tpu.pipeline_mode<synchronous>, transform_indices = @transform_3, window_bounds = array<i64: 384, 256>}, {pipeline_mode = #tpu.pipeline_mode<synchronous>, transform_indices = @transform_4, window_bounds = array<i64: 1, 256>}, {pipeline_mode = #tpu.pipeline_mode<synchronous>, transform_indices = @transform_5, window_bounds = array<i64: 256, 128>}, {pipeline_mode = #tpu.pipeline_mode<synchronous>, transform_indices = @transform_6, window_bounds = array<i64: 1, 128>}, {transform_indices = @transform_7, window_bounds = array<i64: 2, 128>}]} {
    %c0 = arith.constant 0 : index
    %c0_0 = arith.constant 0 : index
    %0 = vector.load %arg1[%c0, %c0_0] : memref<2x3072xf32, #tpu.memory_space<vmem>>, vector<2x3072xf32>
    %1 = arith.truncf %0 : vector<2x3072xf32> to vector<2x3072xbf16>
    %c0_1 = arith.constant 0 : index
    %c0_2 = arith.constant 0 : index
    %2 = vector.load %arg2[%c0_1, %c0_2] : memref<3072x384xbf16, #tpu.memory_space<vmem>>, vector<3072x384xbf16>
    %cst = arith.constant dense<0.000000e+00> : vector<2x384xf32>
    %3 = tpu.matmul %1, %2, %cst {dimension_numbers = #tpu.dot_dimension_numbers<[1], [0], [0], [1], [0, 0, 1, 1], [], []>} : vector<2x3072xbf16>, vector<3072x384xbf16>, vector<2x384xf32> -> vector<2x384xf32>
    %c0_3 = arith.constant 0 : index
    %c0_4 = arith.constant 0 : index
    %4 = vector.load %arg3[%c0_3, %c0_4] : memref<1x384xf32, #tpu.memory_space<vmem>>, vector<1x384xf32>
    %5 = vector.broadcast %4 : vector<1x384xf32> to vector<2x384xf32>
    %6 = arith.addf %3, %5 : vector<2x384xf32>
    %cst_5 = arith.constant 0.000000e+00 : f32
    %7 = vector.broadcast %cst_5 : f32 to vector<2x384xf32>
    %8 = arith.maximumf %6, %7 : vector<2x384xf32>
    %9 = arith.truncf %8 : vector<2x384xf32> to vector<2x384xbf16>
    %c0_6 = arith.constant 0 : index
    %c0_7 = arith.constant 0 : index
    %10 = vector.load %arg4[%c0_6, %c0_7] : memref<384x256xbf16, #tpu.memory_space<vmem>>, vector<384x256xbf16>
    %cst_8 = arith.constant dense<0.000000e+00> : vector<2x256xf32>
    %11 = tpu.matmul %9, %10, %cst_8 {dimension_numbers = #tpu.dot_dimension_numbers<[1], [0], [0], [1], [0, 0, 1, 1], [], []>} : vector<2x384xbf16>, vector<384x256xbf16>, vector<2x256xf32> -> vector<2x256xf32>
    %c0_9 = arith.constant 0 : index
    %c0_10 = arith.constant 0 : index
    %12 = vector.load %arg5[%c0_9, %c0_10] : memref<1x256xf32, #tpu.memory_space<vmem>>, vector<1x256xf32>
    %13 = vector.broadcast %12 : vector<1x256xf32> to vector<2x256xf32>
    %14 = arith.addf %11, %13 : vector<2x256xf32>
    %cst_11 = arith.constant 0.000000e+00 : f32
    %15 = vector.broadcast %cst_11 : f32 to vector<2x256xf32>
    %16 = arith.maximumf %14, %15 : vector<2x256xf32>
    %17 = arith.truncf %16 : vector<2x256xf32> to vector<2x256xbf16>
    %c0_12 = arith.constant 0 : index
    %c0_13 = arith.constant 0 : index
    %18 = vector.load %arg6[%c0_12, %c0_13] : memref<256x128xbf16, #tpu.memory_space<vmem>>, vector<256x128xbf16>
    %cst_14 = arith.constant dense<0.000000e+00> : vector<2x128xf32>
    %19 = tpu.matmul %17, %18, %cst_14 {dimension_numbers = #tpu.dot_dimension_numbers<[1], [0], [0], [1], [0, 0, 1, 1], [], []>} : vector<2x256xbf16>, vector<256x128xbf16>, vector<2x128xf32> -> vector<2x128xf32>
    %c0_15 = arith.constant 0 : index
    %c0_16 = arith.constant 0 : index
    %20 = vector.load %arg7[%c0_15, %c0_16] : memref<1x128xf32, #tpu.memory_space<vmem>>, vector<1x128xf32>
    %21 = vector.broadcast %20 : vector<1x128xf32> to vector<2x128xf32>
    %22 = arith.addf %19, %21 : vector<2x128xf32>
    %c0_17 = arith.constant 0 : index
    %c0_18 = arith.constant 0 : index
    %23 = vector.load %arg8[%c0_17, %c0_18] : memref<2x128xf32, #tpu.memory_space<vmem>>, vector<2x128xf32>
    tpu.vector_store %arg8[%c0_17, %c0_18], %22 {strides = array<i32>} : memref<2x128xf32, #tpu.memory_space<vmem>>, vector<2x128xf32>,
    return
  }
  func.func @transform_0(%arg0: i32) -> (i32, i32) {
    %c0_i32 = arith.constant 0 : i32
    %c0_i32_0 = arith.constant 0 : i32
    return %arg0, %c0_i32 : i32, i32
  }
  func.func @transform_1(%arg0: i32) -> (i32, i32) {
    %c0_i32 = arith.constant 0 : i32
    %c0_i32_0 = arith.constant 0 : i32
    %c0_i32_1 = arith.constant 0 : i32
    return %c0_i32, %c0_i32_0 : i32, i32
  }
  func.func @transform_2(%arg0: i32) -> (i32, i32) {
    %c0_i32 = arith.constant 0 : i32
    %c0_i32_0 = arith.constant 0 : i32
    %c0_i32_1 = arith.constant 0 : i32
    return %c0_i32, %c0_i32_0 : i32, i32
  }
  func.func @transform_3(%arg0: i32) -> (i32, i32) {
    %c0_i32 = arith.constant 0 : i32
    %c0_i32_0 = arith.constant 0 : i32
    %c0_i32_1 = arith.constant 0 : i32
    return %c0_i32, %c0_i32_0 : i32, i32
  }
  func.func @transform_4(%arg0: i32) -> (i32, i32) {
    %c0_i32 = arith.constant 0 : i32
    %c0_i32_0 = arith.constant 0 : i32
    %c0_i32_1 = arith.constant 0 : i32
    return %c0_i32, %c0_i32_0 : i32, i32
  }
  func.func @transform_5(%arg0: i32) -> (i32, i32) {
    %c0_i32 = arith.constant 0 : i32
    %c0_i32_0 = arith.constant 0 : i32
    %c0_i32_1 = arith.constant 0 : i32
    return %c0_i32, %c0_i32_0 : i32, i32
  }
  func.func @transform_6(%arg0: i32) -> (i32, i32) {
    %c0_i32 = arith.constant 0 : i32
    %c0_i32_0 = arith.constant 0 : i32
    %c0_i32_1 = arith.constant 0 : i32
    return %c0_i32, %c0_i32_0 : i32, i32
  }
  func.func @transform_7(%arg0: i32) -> (i32, i32) {
    %c0_i32 = arith.constant 0 : i32
    %c0_i32_0 = arith.constant 0 : i32
    return %arg0, %c0_i32 : i32, i32
  }
}

</mosaic_0001>

<llo_original>
// kernel: cnn0_forward.1
$region0: #{cnn0_forward.1}
  #allocation0 [shape = 'u32[]', space=smem, size = 0x4, offset = 0x4, fixed_abs, tag = 'smem constant byte address 0x4 - core index']
  #allocation1 [shape = 'u32[144,128]{1,0:T(1,128)}', space=vmem, size = 0x12000, scoped, tag = 'internal scratch']
  %s0 = inlined_call_operand.vmem [shape: f32[2,3072], index: 0, kind: input, shape index: {}]
  %s1 = inlined_call_operand.hbm [shape: bf16[3072,384], index: 1, kind: input, shape index: {}]
  %s2 = inlined_call_operand.hbm [shape: f32[1,384], index: 2, kind: input, shape index: {}]
  %s3 = inlined_call_operand.hbm [shape: bf16[384,256], index: 3, kind: input, shape index: {}]
  %s4 = inlined_call_operand.hbm [shape: f32[1,256], index: 4, kind: input, shape index: {}]
  %s5 = inlined_call_operand.hbm [shape: bf16[256,128], index: 5, kind: input, shape index: {}]
  %s6 = inlined_call_operand.hbm [shape: f32[1,128], index: 6, kind: input, shape index: {}]
  %s7 = inlined_call_operand.hbm [shape: f32[2,128], index: 7, kind: output, shape index: {}]
  %s8 = sld [smem:[#allocation0]]
  $region62: #{cnn0_forward.1} parent=0
    _
  %s10 = ssub.s32 1, %s8
  %s11 = scalar_select 0, %s10, %s8
  $region1: #{cnn0_forward.1} parent=0
    #allocation2 [shape = 'u8[2359296]{0}', space=vmem, size = 0x240000, scoped, tag = 'input window, operand 1, single buffered']
    #allocation3 [shape = 's32[1]{0}', space=sflag, size = 0x4, scoped, tag = 'scoped memory for cnn0_forward.1']
    #allocation4 [shape = 's32[1]{0}', space=sflag, size = 0x4, scoped, tag = 'scoped memory for cnn0_forward.1']
    #allocation5 [shape = 'u8[1536]{0}', space=vmem, size = 0x800, scoped, tag = 'input window, operand 2, single buffered']
    #allocation6 [shape = 's32[1]{0}', space=sflag, size = 0x4, scoped, tag = 'scoped memory for cnn0_forward.1']
    #allocation7 [shape = 'u8[196608]{0}', space=vmem, size = 0x30000, scoped, tag = 'input window, operand 3, single buffered']
    #allocation8 [shape = 'u8[1024]{0}', space=vmem, size = 0x400, scoped, tag = 'input window, operand 4, single buffered']
    #allocation9 [shape = 's32[1]{0}', space=sflag, size = 0x4, scoped, tag = 'scoped memory for cnn0_forward.1']
    #allocation10 [shape = 'u8[65536]{0}', space=vmem, size = 0x10000, scoped, tag = 'input window, operand 5, single buffered']
    #allocation11 [shape = 'u8[512]{0}', space=vmem, size = 0x400, scoped, tag = 'input window, operand 6, single buffered']
    #allocation12 [shape = 's32[1]{0}', space=sflag, size = 0x4, scoped, tag = 'scoped memory for cnn0_forward.1']
    #allocation13 [shape = 'u8[1024]{0}', space=vmem, size = 0x400, scoped, tag = 'output window, operand 0, single buffered']
    %12 = vsyncpa [#allocation3], 0
    %13 = vsyncpa [#allocation6], 0
    %14 = vsyncpa [#allocation9], 0
    %15 = vsyncpa [#allocation12], 0
    %16 = vsyncpa [#allocation4], 0
    // Predicated region
    $region2: #{cnn0_forward.1} parent=1 // pred_check
      _
    $region3: #{cnn0_forward.1} parent=1 // pred_check_branch
      %18 = sbr.rel (0) target = $region5
    $region4: #{cnn0_forward.1} parent=1 // pred_region
      _
    $region5: #{cnn0_forward.1} parent=1 // pred_fallthru
      _
    // Predicated region
    $region6: #{cnn0_forward.1} parent=1 // pred_check
      _
    $region7: #{cnn0_forward.1} parent=1 // pred_check_branch
      %20 = sbr.rel (0) target = $region9
    $region8: #{cnn0_forward.1} parent=1 // pred_region
      %s22 = ssub.s32 73728, 73728
      %23 = vsyncadd [#allocation3], %s22
      %s24 = sshll.u32 [#allocation2], 4
      %s25 = int_to_ptr.vmem [resolvable:$true] %s24
      %30 = dma.hbm_to_vmem [thread:$0]  %s1, 73728, %s25, [#allocation3], 192, 192, 12
    $region9: #{cnn0_forward.1} parent=1 // pred_fallthru
      _
    // Predicated region
    $region10: #{cnn0_forward.1} parent=1 // pred_check
      _
    $region11: #{cnn0_forward.1} parent=1 // pred_check_branch
      %32 = sbr.rel (0) target = $region13
    $region12: #{cnn0_forward.1} parent=1 // pred_region
      %s34 = ssub.s32 48, 48
      %35 = vsyncadd [#allocation6], %s34
      %s37 = sshll.u32 [#allocation5], 4
      %s38 = int_to_ptr.vmem [resolvable:$true] %s37
      %40 = dma.hbm_to_vmem [thread:$0]  %s2, 48, %s38, [#allocation6]
    $region13: #{cnn0_forward.1} parent=1 // pred_fallthru
      _
    // Predicated region
    $region14: #{cnn0_forward.1} parent=1 // pred_check
      _
    $region15: #{cnn0_forward.1} parent=1 // pred_check_branch
      %42 = sbr.rel (0) target = $region17
    $region16: #{cnn0_forward.1} parent=1 // pred_region
      %s44 = ssub.s32 6144, 6144
      %45 = vsyncadd [#allocation6], %s44
      %s46 = sshll.u32 [#allocation7], 4
      %s47 = int_to_ptr.vmem [resolvable:$true] %s46
      %52 = dma.hbm_to_vmem [thread:$0]  %s3, 6144, %s47, [#allocation6], 128, 128, 8
    $region17: #{cnn0_forward.1} parent=1 // pred_fallthru
      _
    // Predicated region
    $region18: #{cnn0_forward.1} parent=1 // pred_check
      _
    $region19: #{cnn0_forward.1} parent=1 // pred_check_branch
      %54 = sbr.rel (0) target = $region21
    $region20: #{cnn0_forward.1} parent=1 // pred_region
      %s56 = ssub.s32 32, 32
      %57 = vsyncadd [#allocation9], %s56
      %s59 = sshll.u32 [#allocation8], 4
      %s60 = int_to_ptr.vmem [resolvable:$true] %s59
      %62 = dma.hbm_to_vmem [thread:$0]  %s4, 32, %s60, [#allocation9]
    $region21: #{cnn0_forward.1} parent=1 // pred_fallthru
      _
    // Predicated region
    $region22: #{cnn0_forward.1} parent=1 // pred_check
      _
    $region23: #{cnn0_forward.1} parent=1 // pred_check_branch
      %64 = sbr.rel (0) target = $region25
    $region24: #{cnn0_forward.1} parent=1 // pred_region
      %s66 = ssub.s32 2048, 2048
      %67 = vsyncadd [#allocation9], %s66
      %s68 = sshll.u32 [#allocation10], 4
      %s69 = int_to_ptr.vmem [resolvable:$true] %s68
      %74 = dma.hbm_to_vmem [thread:$0]  %s5, 2048, %s69, [#allocation9], 64, 64, 4
    $region25: #{cnn0_forward.1} parent=1 // pred_fallthru
      _
    // Predicated region
    $region26: #{cnn0_forward.1} parent=1 // pred_check
      _
    $region27: #{cnn0_forward.1} parent=1 // pred_check_branch
      %76 = sbr.rel (0) target = $region29
    $region28: #{cnn0_forward.1} parent=1 // pred_region
      %s78 = ssub.s32 16, 16
      %79 = vsyncadd [#allocation12], %s78
      %s81 = sshll.u32 [#allocation11], 4
      %s82 = int_to_ptr.vmem [resolvable:$true] %s81
      %84 = dma.hbm_to_vmem [thread:$0]  %s6, 16, %s82, [#allocation12]
    $region29: #{cnn0_forward.1} parent=1 // pred_fallthru
      _
    // Predicated region
    $region30: #{cnn0_forward.1} parent=1 // pred_check
      _
    $region31: #{cnn0_forward.1} parent=1 // pred_check_branch
      %86 = sbr.rel (0) target = $region33
    $region32: #{cnn0_forward.1} parent=1 // pred_region
      %87 = dma.done [#allocation3], 73728
    $region33: #{cnn0_forward.1} parent=1 // pred_fallthru
      _
    // Predicated region
    $region34: #{cnn0_forward.1} parent=1 // pred_check
      _
    $region35: #{cnn0_forward.1} parent=1 // pred_check_branch
      %89 = sbr.rel (0) target = $region37
    $region36: #{cnn0_forward.1} parent=1 // pred_region
      %90 = dma.done [#allocation6], 48
    $region37: #{cnn0_forward.1} parent=1 // pred_fallthru
      _
    // Predicated region
    $region38: #{cnn0_forward.1} parent=1 // pred_check
      _
    $region39: #{cnn0_forward.1} parent=1 // pred_check_branch
      %92 = sbr.rel (0) target = $region41
    $region40: #{cnn0_forward.1} parent=1 // pred_region
      %93 = dma.done [#allocation6], 6144
    $region41: #{cnn0_forward.1} parent=1 // pred_fallthru
      _
    // Predicated region
    $region42: #{cnn0_forward.1} parent=1 // pred_check
      _
    $region43: #{cnn0_forward.1} parent=1 // pred_check_branch
      %95 = sbr.rel (0) target = $region45
    $region44: #{cnn0_forward.1} parent=1 // pred_region
      %96 = dma.done [#allocation9], 32
    $region45: #{cnn0_forward.1} parent=1 // pred_fallthru
      _
    // Predicated region
    $region46: #{cnn0_forward.1} parent=1 // pred_check
      _
    $region47: #{cnn0_forward.1} parent=1 // pred_check_branch
      %98 = sbr.rel (0) target = $region49
    $region48: #{cnn0_forward.1} parent=1 // pred_region
      %99 = dma.done [#allocation9], 2048
    $region49: #{cnn0_forward.1} parent=1 // pred_fallthru
      _
    // Predicated region
    $region50: #{cnn0_forward.1} parent=1 // pred_check
      _
    $region51: #{cnn0_forward.1} parent=1 // pred_check_branch
      %101 = sbr.rel (0) target = $region53
    $region52: #{cnn0_forward.1} parent=1 // pred_region
      %102 = dma.done [#allocation12], 16
    $region53: #{cnn0_forward.1} parent=1 // pred_fallthru
      _
    %v104 = vld [vmem:[%s0] sm:$0xff]
    %v105 = vld [vmem:[%s0 + $0x8] sm:$0xff]
    %v106 = vld [vmem:[%s0 + $0x10] sm:$0xff]
    %v107 = vld [vmem:[%s0 + $0x18] sm:$0xff]
    %v108 = vld [vmem:[%s0 + $0x20] sm:$0xff]
    %v109 = vld [vmem:[%s0 + $0x28] sm:$0xff]
    %v116 = vcombine.high %v104, %v104
    %v118 = vunpack.c.l.s4 1983009808
    %v119 = vunpack.c.0.s8 %v118
    %v120 = vlaneseq
    %v121 = vshrl.u32 %v120, 7
    %v122 = vsub.s32 %v119, %v121
    %v123 = vrot.slane %v104, %v122
    %v125 = vunpack.c.l.s4 1983009808
    %v126 = vunpack.c.0.s8 %v125
    %v127 = vlaneseq
    %v128 = vshrl.u32 %v127, 7
    %v129 = vsub.s32 %v126, %v128
    %v130 = vrot.slane %v116, %v129
    %v131 = vcombine.high %v123, %v123
    %v132 = vcombine.high %v130, %v130
    %v133 = vcombine.high %v105, %v105
    %v135 = vunpack.c.l.s4 1983009808
    %v136 = vunpack.c.0.s8 %v135
    %v137 = vlaneseq
    %v138 = vshrl.u32 %v137, 7
    %v139 = vsub.s32 %v136, %v138
    %v140 = vrot.slane %v105, %v139
    %v142 = vunpack.c.l.s4 1983009808
    %v143 = vunpack.c.0.s8 %v142
    %v144 = vlaneseq
    %v145 = vshrl.u32 %v144, 7
    %v146 = vsub.s32 %v143, %v145
    %v147 = vrot.slane %v133, %v146
    %v148 = vcombine.high %v140, %v140
    %v149 = vcombine.high %v147, %v147
    %v150 = vcombine.high %v106, %v106
    %v152 = vunpack.c.l.s4 1983009808
    %v153 = vunpack.c.0.s8 %v152
    %v154 = vlaneseq
    %v155 = vshrl.u32 %v154, 7
    %v156 = vsub.s32 %v153, %v155
    %v157 = vrot.slane %v106, %v156
    %v159 = vunpack.c.l.s4 1983009808
    %v160 = vunpack.c.0.s8 %v159
    %v161 = vlaneseq
    %v162 = vshrl.u32 %v161, 7
    %v163 = vsub.s32 %v160, %v162
    %v164 = vrot.slane %v150, %v163
    %v165 = vcombine.high %v157, %v157
    %v166 = vcombine.high %v164, %v164
    %v167 = vcombine.high %v107, %v107
    %v169 = vunpack.c.l.s4 1983009808
    %v170 = vunpack.c.0.s8 %v169
    %v171 = vlaneseq
    %v172 = vshrl.u32 %v171, 7
    %v173 = vsub.s32 %v170, %v172
    %v174 = vrot.slane %v107, %v173
    %v176 = vunpack.c.l.s4 1983009808
    %v177 = vunpack.c.0.s8 %v176
    %v178 = vlaneseq
    %v179 = vshrl.u32 %v178, 7
    %v180 = vsub.s32 %v177, %v179
    %v181 = vrot.slane %v167, %v180
    %v182 = vcombine.high %v174, %v174
    %v183 = vcombine.high %v181, %v181
    %v184 = vcombine.high %v108, %v108
    %v186 = vunpack.c.l.s4 1983009808
    %v187 = vunpack.c.0.s8 %v186
    %v188 = vlaneseq
    %v189 = vshrl.u32 %v188, 7
    %v190 = vsub.s32 %v187, %v189
    %v191 = vrot.slane %v108, %v190
    %v193 = vunpack.c.l.s4 1983009808
    %v194 = vunpack.c.0.s8 %v193
    %v195 = vlaneseq
    %v196 = vshrl.u32 %v195, 7
    %v197 = vsub.s32 %v194, %v196
    %v198 = vrot.slane %v184, %v197
    %v199 = vcombine.high %v191, %v191
    %v200 = vcombine.high %v198, %v198
    %v201 = vcombine.high %v109, %v109
    %v203 = vunpack.c.l.s4 1983009808
    %v204 = vunpack.c.0.s8 %v203
    %v205 = vlaneseq
    %v206 = vshrl.u32 %v205, 7
    %v207 = vsub.s32 %v204, %v206
    %v208 = vrot.slane %v109, %v207
    %v210 = vunpack.c.l.s4 1983009808
    %v211 = vunpack.c.0.s8 %v210
    %v212 = vlaneseq
    %v213 = vshrl.u32 %v212, 7
    %v214 = vsub.s32 %v211, %v213
    %v215 = vrot.slane %v201, %v214
    %v216 = vcombine.high %v208, %v208
    %v217 = vcombine.high %v215, %v215
    %v242 = vpack.c.bf16 %v123, %v123
    %v243 = vpack.c.bf16 %v131, %v131
    %v244 = vpack.c.bf16 %v130, %v130
    %v245 = vpack.c.bf16 %v132, %v132
    %v246 = vpack.c.bf16 %v140, %v140
    %v247 = vpack.c.bf16 %v148, %v148
    %v248 = vpack.c.bf16 %v147, %v147
    %v249 = vpack.c.bf16 %v149, %v149
    %v250 = vpack.c.bf16 %v157, %v157
    %v251 = vpack.c.bf16 %v165, %v165
    %v252 = vpack.c.bf16 %v164, %v164
    %v253 = vpack.c.bf16 %v166, %v166
    %v254 = vpack.c.bf16 %v174, %v174
    %v255 = vpack.c.bf16 %v182, %v182
    %v256 = vpack.c.bf16 %v181, %v181
    %v257 = vpack.c.bf16 %v183, %v183
    %v258 = vpack.c.bf16 %v191, %v191
    %v259 = vpack.c.bf16 %v199, %v199
    %v260 = vpack.c.bf16 %v198, %v198
    %v261 = vpack.c.bf16 %v200, %v200
    %v262 = vpack.c.bf16 %v208, %v208
    %v263 = vpack.c.bf16 %v216, %v216
    %v264 = vpack.c.bf16 %v215, %v215
    %v265 = vpack.c.bf16 %v217, %v217
    %v266 = vld [vmem:[#allocation2] sm:$0xff]
    %v267 = vld [vmem:[#allocation2 + $0x8] sm:$0xf]
    %v268 = vld [vmem:[#allocation2 + $0xc] sm:$0xff]
    %v269 = vld [vmem:[#allocation2 + $0x14] sm:$0xf]
    %v270 = vld [vmem:[#allocation2 + $0x18] sm:$0xff]
    %v271 = vld [vmem:[#allocation2 + $0x20] sm:$0xf]
    %v272 = vld [vmem:[#allocation2 + $0x24] sm:$0xff]
    %v273 = vld [vmem:[#allocation2 + $0x2c] sm:$0xf]
    %v274 = vld [vmem:[#allocation2 + $0x30] sm:$0xff]
    %v275 = vld [vmem:[#allocation2 + $0x38] sm:$0xf]
    %v276 = vld [vmem:[#allocation2 + $0x3c] sm:$0xff]
    %v277 = vld [vmem:[#allocation2 + $0x44] sm:$0xf]
    %v278 = vld [vmem:[#allocation2 + $0x48] sm:$0xff]
    %v279 = vld [vmem:[#allocation2 + $0x50] sm:$0xf]
    %v280 = vld [vmem:[#allocation2 + $0x54] sm:$0xff]
    %v281 = vld [vmem:[#allocation2 + $0x5c] sm:$0xf]
    %v282 = vld [vmem:[#allocation2 + $0x60] sm:$0xff]
    %v283 = vld [vmem:[#allocation2 + $0x68] sm:$0xf]
    %v284 = vld [vmem:[#allocation2 + $0x6c] sm:$0xff]
    %v285 = vld [vmem:[#allocation2 + $0x74] sm:$0xf]
    %v286 = vld [vmem:[#allocation2 + $0x78] sm:$0xff]
    %v287 = vld [vmem:[#allocation2 + $0x80] sm:$0xf]
    %v288 = vld [vmem:[#allocation2 + $0x84] sm:$0xff]
    %v289 = vld [vmem:[#allocation2 + $0x8c] sm:$0xf]
    %v290 = vld [vmem:[#allocation2 + $0x90] sm:$0xff]
    %v291 = vld [vmem:[#allocation2 + $0x98] sm:$0xf]
    %v292 = vld [vmem:[#allocation2 + $0x9c] sm:$0xff]
    %v293 = vld [vmem:[#allocation2 + $0xa4] sm:$0xf]
    %v294 = vld [vmem:[#allocation2 + $0xa8] sm:$0xff]
    %v295 = vld [vmem:[#allocation2 + $0xb0] sm:$0xf]
    %v296 = vld [vmem:[#allocation2 + $0xb4] sm:$0xff]
    %v297 = vld [vmem:[#allocation2 + $0xbc] sm:$0xf]
    %v298 = vld [vmem:[#allocation2 + $0xc0] sm:$0xff]
    %v299 = vld [vmem:[#allocation2 + $0xc8] sm:$0xf]
    %v300 = vld [vmem:[#allocation2 + $0xcc] sm:$0xff]
    %v301 = vld [vmem:[#allocation2 + $0xd4] sm:$0xf]
    %v302 = vld [vmem:[#allocation2 + $0xd8] sm:$0xff]
    %v303 = vld [vmem:[#allocation2 + $0xe0] sm:$0xf]
    %v304 = vld [vmem:[#allocation2 + $0xe4] sm:$0xff]
    %v305 = vld [vmem:[#allocation2 + $0xec] sm:$0xf]
    %v306 = vld [vmem:[#allocation2 + $0xf0] sm:$0xff]
    %v307 = vld [vmem:[#allocation2 + $0xf8] sm:$0xf]
    %v308 = vld [vmem:[#allocation2 + $0xfc] sm:$0xff]
    %v309 = vld [vmem:[#allocation2 + $0x104] sm:$0xf]
    %v310 = vld [vmem:[#allocation2 + $0x108] sm:$0xff]
    %v311 = vld [vmem:[#allocation2 + $0x110] sm:$0xf]
    %v312 = vld [vmem:[#allocation2 + $0x114] sm:$0xff]
    %v313 = vld [vmem:[#allocation2 + $0x11c] sm:$0xf]
    %v314 = vld [vmem:[#allocation2 + $0x120] sm:$0xff]
    %v315 = vld [vmem:[#allocation2 + $0x128] sm:$0xf]
    %v316 = vld [vmem:[#allocation2 + $0x12c] sm:$0xff]
    %v317 = vld [vmem:[#allocation2 + $0x134] sm:$0xf]
    %v318 = vld [vmem:[#allocation2 + $0x138] sm:$0xff]
    %v319 = vld [vmem:[#allocation2 + $0x140] sm:$0xf]
    %v320 = vld [vmem:[#allocation2 + $0x144] sm:$0xff]
    %v321 = vld [vmem:[#allocation2 + $0x14c] sm:$0xf]
    %v322 = vld [vmem:[#allocation2 + $0x150] sm:$0xff]
    %v323 = vld [vmem:[#allocation2 + $0x158] sm:$0xf]
    %v324 = vld [vmem:[#allocation2 + $0x15c] sm:$0xff]
    %v325 = vld [vmem:[#allocation2 + $0x164] sm:$0xf]
    %v326 = vld [vmem:[#allocation2 + $0x168] sm:$0xff]
    %v327 = vld [vmem:[#allocation2 + $0x170] sm:$0xf]
    %v328 = vld [vmem:[#allocation2 + $0x174] sm:$0xff]
    %v329 = vld [vmem:[#allocation2 + $0x17c] sm:$0xf]
    %v330 = vld [vmem:[#allocation2 + $0x180] sm:$0xff]
    %v331 = vld [vmem:[#allocation2 + $0x188] sm:$0xf]
    %v332 = vld [vmem:[#allocation2 + $0x18c] sm:$0xff]
    %v333 = vld [vmem:[#allocation2 + $0x194] sm:$0xf]
    %v334 = vld [vmem:[#allocation2 + $0x198] sm:$0xff]
    %v335 = vld [vmem:[#allocation2 + $0x1a0] sm:$0xf]
    %v336 = vld [vmem:[#allocation2 + $0x1a4] sm:$0xff]
    %v337 = vld [vmem:[#allocation2 + $0x1ac] sm:$0xf]
    %v338 = vld [vmem:[#allocation2 + $0x1b0] sm:$0xff]
    %v339 = vld [vmem:[#allocation2 + $0x1b8] sm:$0xf]
    %v340 = vld [vmem:[#allocation2 + $0x1bc] sm:$0xff]
    %v341 = vld [vmem:[#allocation2 + $0x1c4] sm:$0xf]
    %v342 = vld [vmem:[#allocation2 + $0x1c8] sm:$0xff]
    %v343 = vld [vmem:[#allocation2 + $0x1d0] sm:$0xf]
    %v344 = vld [vmem:[#allocation2 + $0x1d4] sm:$0xff]
    %v345 = vld [vmem:[#allocation2 + $0x1dc] sm:$0xf]
    %v346 = vld [vmem:[#allocation2 + $0x1e0] sm:$0xff]
    %v347 = vld [vmem:[#allocation2 + $0x1e8] sm:$0xf]
    %v348 = vld [vmem:[#allocation2 + $0x1ec] sm:$0xff]
    %v349 = vld [vmem:[#allocation2 + $0x1f4] sm:$0xf]
    %v350 = vld [vmem:[#allocation2 + $0x1f8] sm:$0xff]
    %v351 = vld [vmem:[#allocation2 + $0x200] sm:$0xf]
    %v352 = vld [vmem:[#allocation2 + $0x204] sm:$0xff]
    %v353 = vld [vmem:[#allocation2 + $0x20c] sm:$0xf]
    %v354 = vld [vmem:[#allocation2 + $0x210] sm:$0xff]
    %v355 = vld [vmem:[#allocation2 + $0x218] sm:$0xf]
    %v356 = vld [vmem:[#allocation2 + $0x21c] sm:$0xff]
    %v357 = vld [vmem:[#allocation2 + $0x224] sm:$0xf]
    %v358 = vld [vmem:[#allocation2 + $0x228] sm:$0xff]
    %v359 = vld [vmem:[#allocation2 + $0x230] sm:$0xf]
    %v360 = vld [vmem:[#allocation2 + $0x234] sm:$0xff]
    %v361 = vld [vmem:[#allocation2 + $0x23c] sm:$0xf]
    %v362 = vld [vmem:[#allocation2 + $0x240] sm:$0xff]
    %v363 = vld [vmem:[#allocation2 + $0x248] sm:$0xf]
    %v364 = vld [vmem:[#allocation2 + $0x24c] sm:$0xff]
    %v365 = vld [vmem:[#allocation2 + $0x254] sm:$0xf]
    %v366 = vld [vmem:[#allocation2 + $0x258] sm:$0xff]
    %v367 = vld [vmem:[#allocation2 + $0x260] sm:$0xf]
    %v368 = vld [vmem:[#allocation2 + $0x264] sm:$0xff]
    %v369 = vld [vmem:[#allocation2 + $0x26c] sm:$0xf]
    %v370 = vld [vmem:[#allocation2 + $0x270] sm:$0xff]
    %v371 = vld [vmem:[#allocation2 + $0x278] sm:$0xf]
    %v372 = vld [vmem:[#allocation2 + $0x27c] sm:$0xff]
    %v373 = vld [vmem:[#allocation2 + $0x284] sm:$0xf]
    %v374 = vld [vmem:[#allocation2 + $0x288] sm:$0xff]
    %v375 = vld [vmem:[#allocation2 + $0x290] sm:$0xf]
    %v376 = vld [vmem:[#allocation2 + $0x294] sm:$0xff]
    %v377 = vld [vmem:[#allocation2 + $0x29c] sm:$0xf]
    %v378 = vld [vmem:[#allocation2 + $0x2a0] sm:$0xff]
    %v379 = vld [vmem:[#allocation2 + $0x2a8] sm:$0xf]
    %v380 = vld [vmem:[#allocation2 + $0x2ac] sm:$0xff]
    %v381 = vld [vmem:[#allocation2 + $0x2b4] sm:$0xf]
    %v382 = vld [vmem:[#allocation2 + $0x2b8] sm:$0xff]
    %v383 = vld [vmem:[#allocation2 + $0x2c0] sm:$0xf]
    %v384 = vld [vmem:[#allocation2 + $0x2c4] sm:$0xff]
    %v385 = vld [vmem:[#allocation2 + $0x2cc] sm:$0xf]
    %v386 = vld [vmem:[#allocation2 + $0x2d0] sm:$0xff]
    %v387 = vld [vmem:[#allocation2 + $0x2d8] sm:$0xf]
    %v388 = vld [vmem:[#allocation2 + $0x2dc] sm:$0xff]
    %v389 = vld [vmem:[#allocation2 + $0x2e4] sm:$0xf]
    %v390 = vld [vmem:[#allocation2 + $0x2e8] sm:$0xff]
    %v391 = vld [vmem:[#allocation2 + $0x2f0] sm:$0xf]
    %v392 = vld [vmem:[#allocation2 + $0x2f4] sm:$0xff]
    %v393 = vld [vmem:[#allocation2 + $0x2fc] sm:$0xf]
    %v394 = vld [vmem:[#allocation2 + $0x300] sm:$0xff]
    %v395 = vld [vmem:[#allocation2 + $0x308] sm:$0xf]
    %v396 = vld [vmem:[#allocation2 + $0x30c] sm:$0xff]
    %v397 = vld [vmem:[#allocation2 + $0x314] sm:$0xf]
    %v398 = vld [vmem:[#allocation2 + $0x318] sm:$0xff]
    %v399 = vld [vmem:[#allocation2 + $0x320] sm:$0xf]
    %v400 = vld [vmem:[#allocation2 + $0x324] sm:$0xff]
    %v401 = vld [vmem:[#allocation2 + $0x32c] sm:$0xf]
    %v402 = vld [vmem:[#allocation2 + $0x330] sm:$0xff]
    %v403 = vld [vmem:[#allocation2 + $0x338] sm:$0xf]
    %v404 = vld [vmem:[#allocation2 + $0x33c] sm:$0xff]
    %v405 = vld [vmem:[#allocation2 + $0x344] sm:$0xf]
    %v406 = vld [vmem:[#allocation2 + $0x348] sm:$0xff]
    %v407 = vld [vmem:[#allocation2 + $0x350] sm:$0xf]
    %v408 = vld [vmem:[#allocation2 + $0x354] sm:$0xff]
    %v409 = vld [vmem:[#allocation2 + $0x35c] sm:$0xf]
    %v410 = vld [vmem:[#allocation2 + $0x360] sm:$0xff]
    %v411 = vld [vmem:[#allocation2 + $0x368] sm:$0xf]
    %v412 = vld [vmem:[#allocation2 + $0x36c] sm:$0xff]
    %v413 = vld [vmem:[#allocation2 + $0x374] sm:$0xf]
    %v414 = vld [vmem:[#allocation2 + $0x378] sm:$0xff]
    %v415 = vld [vmem:[#allocation2 + $0x380] sm:$0xf]
    %v416 = vld [vmem:[#allocation2 + $0x384] sm:$0xff]
    %v417 = vld [vmem:[#allocation2 + $0x38c] sm:$0xf]
    %v418 = vld [vmem:[#allocation2 + $0x390] sm:$0xff]
    %v419 = vld [vmem:[#allocation2 + $0x398] sm:$0xf]
    %v420 = vld [vmem:[#allocation2 + $0x39c] sm:$0xff]
    %v421 = vld [vmem:[#allocation2 + $0x3a4] sm:$0xf]
    %v422 = vld [vmem:[#allocation2 + $0x3a8] sm:$0xff]
    %v423 = vld [vmem:[#allocation2 + $0x3b0] sm:$0xf]
    %v424 = vld [vmem:[#allocation2 + $0x3b4] sm:$0xff]
    %v425 = vld [vmem:[#allocation2 + $0x3bc] sm:$0xf]
    %v426 = vld [vmem:[#allocation2 + $0x3c0] sm:$0xff]
    %v427 = vld [vmem:[#allocation2 + $0x3c8] sm:$0xf]
    %v428 = vld [vmem:[#allocation2 + $0x3cc] sm:$0xff]
    %v429 = vld [vmem:[#allocation2 + $0x3d4] sm:$0xf]
    %v430 = vld [vmem:[#allocation2 + $0x3d8] sm:$0xff]
    %v431 = vld [vmem:[#allocation2 + $0x3e0] sm:$0xf]
    %v432 = vld [vmem:[#allocation2 + $0x3e4] sm:$0xff]
    %v433 = vld [vmem:[#allocation2 + $0x3ec] sm:$0xf]
    %v434 = vld [vmem:[#allocation2 + $0x3f0] sm:$0xff]
    %v435 = vld [vmem:[#allocation2 + $0x3f8] sm:$0xf]
    %v436 = vld [vmem:[#allocation2 + $0x3fc] sm:$0xff]
    %v437 = vld [vmem:[#allocation2 + $0x404] sm:$0xf]
    %v438 = vld [vmem:[#allocation2 + $0x408] sm:$0xff]
    %v439 = vld [vmem:[#allocation2 + $0x410] sm:$0xf]
    %v440 = vld [vmem:[#allocation2 + $0x414] sm:$0xff]
    %v441 = vld [vmem:[#allocation2 + $0x41c] sm:$0xf]
    %v442 = vld [vmem:[#allocation2 + $0x420] sm:$0xff]
    %v443 = vld [vmem:[#allocation2 + $0x428] sm:$0xf]
    %v444 = vld [vmem:[#allocation2 + $0x42c] sm:$0xff]
    %v445 = vld [vmem:[#allocation2 + $0x434] sm:$0xf]
    %v446 = vld [vmem:[#allocation2 + $0x438] sm:$0xff]
    %v447 = vld [vmem:[#allocation2 + $0x440] sm:$0xf]
    %v448 = vld [vmem:[#allocation2 + $0x444] sm:$0xff]
    %v449 = vld [vmem:[#allocation2 + $0x44c] sm:$0xf]
    %v450 = vld [vmem:[#allocation2 + $0x450] sm:$0xff]
    %v451 = vld [vmem:[#allocation2 + $0x458] sm:$0xf]
    %v452 = vld [vmem:[#allocation2 + $0x45c] sm:$0xff]
    %v453 = vld [vmem:[#allocation2 + $0x464] sm:$0xf]
    %v454 = vld [vmem:[#allocation2 + $0x468] sm:$0xff]
    %v455 = vld [vmem:[#allocation2 + $0x470] sm:$0xf]
    %v456 = vld [vmem:[#allocation2 + $0x474] sm:$0xff]
    %v457 = vld [vmem:[#allocation2 + $0x47c] sm:$0xf]
    %v458 = vld [vmem:[#allocation2 + $0x480] sm:$0xff]
    %v459 = vld [vmem:[#allocation2 + $0x488] sm:$0xf]
    %v460 = vld [vmem:[#allocation2 + $0x48c] sm:$0xff]
    %v461 = vld [vmem:[#allocation2 + $0x494] sm:$0xf]
    %v462 = vld [vmem:[#allocation2 + $0x498] sm:$0xff]
    %v463 = vld [vmem:[#allocation2 + $0x4a0] sm:$0xf]
    %v464 = vld [vmem:[#allocation2 + $0x4a4] sm:$0xff]
    %v465 = vld [vmem:[#allocation2 + $0x4ac] sm:$0xf]
    %v466 = vld [vmem:[#allocation2 + $0x4b0] sm:$0xff]
    %v467 = vld [vmem:[#allocation2 + $0x4b8] sm:$0xf]
    %v468 = vld [vmem:[#allocation2 + $0x4bc] sm:$0xff]
    %v469 = vld [vmem:[#allocation2 + $0x4c4] sm:$0xf]
    %v470 = vld [vmem:[#allocation2 + $0x4c8] sm:$0xff]
    %v471 = vld [vmem:[#allocation2 + $0x4d0] sm:$0xf]
    %v472 = vld [vmem:[#allocation2 + $0x4d4] sm:$0xff]
    %v473 = vld [vmem:[#allocation2 + $0x4dc] sm:$0xf]
    %v474 = vld [vmem:[#allocation2 + $0x4e0] sm:$0xff]
    %v475 = vld [vmem:[#allocation2 + $0x4e8] sm:$0xf]
    %v476 = vld [vmem:[#allocation2 + $0x4ec] sm:$0xff]
    %v477 = vld [vmem:[#allocation2 + $0x4f4] sm:$0xf]
    %v478 = vld [vmem:[#allocation2 + $0x4f8] sm:$0xff]
    %v479 = vld [vmem:[#allocation2 + $0x500] sm:$0xf]
    %v480 = vld [vmem:[#allocation2 + $0x504] sm:$0xff]
    %v481 = vld [vmem:[#allocation2 + $0x50c] sm:$0xf]
    %v482 = vld [vmem:[#allocation2 + $0x510] sm:$0xff]
    %v483 = vld [vmem:[#allocation2 + $0x518] sm:$0xf]
    %v484 = vld [vmem:[#allocation2 + $0x51c] sm:$0xff]
    %v485 = vld [vmem:[#allocation2 + $0x524] sm:$0xf]
    %v486 = vld [vmem:[#allocation2 + $0x528] sm:$0xff]
    %v487 = vld [vmem:[#allocation2 + $0x530] sm:$0xf]
    %v488 = vld [vmem:[#allocation2 + $0x534] sm:$0xff]
    %v489 = vld [vmem:[#allocation2 + $0x53c] sm:$0xf]
    %v490 = vld [vmem:[#allocation2 + $0x540] sm:$0xff]
    %v491 = vld [vmem:[#allocation2 + $0x548] sm:$0xf]
    %v492 = vld [vmem:[#allocation2 + $0x54c] sm:$0xff]
    %v493 = vld [vmem:[#allocation2 + $0x554] sm:$0xf]
    %v494 = vld [vmem:[#allocation2 + $0x558] sm:$0xff]
    %v495 = vld [vmem:[#allocation2 + $0x560] sm:$0xf]
    %v496 = vld [vmem:[#allocation2 + $0x564] sm:$0xff]
    %v497 = vld [vmem:[#allocation2 + $0x56c] sm:$0xf]
    %v498 = vld [vmem:[#allocation2 + $0x570] sm:$0xff]
    %v499 = vld [vmem:[#allocation2 + $0x578] sm:$0xf]
    %v500 = vld [vmem:[#allocation2 + $0x57c] sm:$0xff]
    %v501 = vld [vmem:[#allocation2 + $0x584] sm:$0xf]
    %v502 = vld [vmem:[#allocation2 + $0x588] sm:$0xff]
    %v503 = vld [vmem:[#allocation2 + $0x590] sm:$0xf]
    %v504 = vld [vmem:[#allocation2 + $0x594] sm:$0xff]
    %v505 = vld [vmem:[#allocation2 + $0x59c] sm:$0xf]
    %v506 = vld [vmem:[#allocation2 + $0x5a0] sm:$0xff]
    %v507 = vld [vmem:[#allocation2 + $0x5a8] sm:$0xf]
    %v508 = vld [vmem:[#allocation2 + $0x5ac] sm:$0xff]
    %v509 = vld [vmem:[#allocation2 + $0x5b4] sm:$0xf]
    %v510 = vld [vmem:[#allocation2 + $0x5b8] sm:$0xff]
    %v511 = vld [vmem:[#allocation2 + $0x5c0] sm:$0xf]
    %v512 = vld [vmem:[#allocation2 + $0x5c4] sm:$0xff]
    %v513 = vld [vmem:[#allocation2 + $0x5cc] sm:$0xf]
    %v514 = vld [vmem:[#allocation2 + $0x5d0] sm:$0xff]
    %v515 = vld [vmem:[#allocation2 + $0x5d8] sm:$0xf]
    %v516 = vld [vmem:[#allocation2 + $0x5dc] sm:$0xff]
    %v517 = vld [vmem:[#allocation2 + $0x5e4] sm:$0xf]
    %v518 = vld [vmem:[#allocation2 + $0x5e8] sm:$0xff]
    %v519 = vld [vmem:[#allocation2 + $0x5f0] sm:$0xf]
    %v520 = vld [vmem:[#allocation2 + $0x5f4] sm:$0xff]
    %v521 = vld [vmem:[#allocation2 + $0x5fc] sm:$0xf]
    %v522 = vld [vmem:[#allocation2 + $0x600] sm:$0xff]
    %v523 = vld [vmem:[#allocation2 + $0x608] sm:$0xf]
    %v524 = vld [vmem:[#allocation2 + $0x60c] sm:$0xff]
    %v525 = vld [vmem:[#allocation2 + $0x614] sm:$0xf]
    %v526 = vld [vmem:[#allocation2 + $0x618] sm:$0xff]
    %v527 = vld [vmem:[#allocation2 + $0x620] sm:$0xf]
    %v528 = vld [vmem:[#allocation2 + $0x624] sm:$0xff]
    %v529 = vld [vmem:[#allocation2 + $0x62c] sm:$0xf]
    %v530 = vld [vmem:[#allocation2 + $0x630] sm:$0xff]
    %v531 = vld [vmem:[#allocation2 + $0x638] sm:$0xf]
    %v532 = vld [vmem:[#allocation2 + $0x63c] sm:$0xff]
    %v533 = vld [vmem:[#allocation2 + $0x644] sm:$0xf]
    %v534 = vld [vmem:[#allocation2 + $0x648] sm:$0xff]
    %v535 = vld [vmem:[#allocation2 + $0x650] sm:$0xf]
    %v536 = vld [vmem:[#allocation2 + $0x654] sm:$0xff]
    %v537 = vld [vmem:[#allocation2 + $0x65c] sm:$0xf]
    %v538 = vld [vmem:[#allocation2 + $0x660] sm:$0xff]
    %v539 = vld [vmem:[#allocation2 + $0x668] sm:$0xf]
    %v540 = vld [vmem:[#allocation2 + $0x66c] sm:$0xff]
    %v541 = vld [vmem:[#allocation2 + $0x674] sm:$0xf]
    %v542 = vld [vmem:[#allocation2 + $0x678] sm:$0xff]
    %v543 = vld [vmem:[#allocation2 + $0x680] sm:$0xf]
    %v544 = vld [vmem:[#allocation2 + $0x684] sm:$0xff]
    %v545 = vld [vmem:[#allocation2 + $0x68c] sm:$0xf]
    %v546 = vld [vmem:[#allocation2 + $0x690] sm:$0xff]
    %v547 = vld [vmem:[#allocation2 + $0x698] sm:$0xf]
    %v548 = vld [vmem:[#allocation2 + $0x69c] sm:$0xff]
    %v549 = vld [vmem:[#allocation2 + $0x6a4] sm:$0xf]
    %v550 = vld [vmem:[#allocation2 + $0x6a8] sm:$0xff]
    %v551 = vld [vmem:[#allocation2 + $0x6b0] sm:$0xf]
    %v552 = vld [vmem:[#allocation2 + $0x6b4] sm:$0xff]
    %v553 = vld [vmem:[#allocation2 + $0x6bc] sm:$0xf]
    %v554 = vld [vmem:[#allocation2 + $0x6c0] sm:$0xff]
    %v555 = vld [vmem:[#allocation2 + $0x6c8] sm:$0xf]
    %v556 = vld [vmem:[#allocation2 + $0x6cc] sm:$0xff]
    %v557 = vld [vmem:[#allocation2 + $0x6d4] sm:$0xf]
    %v558 = vld [vmem:[#allocation2 + $0x6d8] sm:$0xff]
    %v559 = vld [vmem:[#allocation2 + $0x6e0] sm:$0xf]
    %v560 = vld [vmem:[#allocation2 + $0x6e4] sm:$0xff]
    %v561 = vld [vmem:[#allocation2 + $0x6ec] sm:$0xf]
    %v562 = vld [vmem:[#allocation2 + $0x6f0] sm:$0xff]
    %v563 = vld [vmem:[#allocation2 + $0x6f8] sm:$0xf]
    %v564 = vld [vmem:[#allocation2 + $0x6fc] sm:$0xff]
    %v565 = vld [vmem:[#allocation2 + $0x704] sm:$0xf]
    %v566 = vld [vmem:[#allocation2 + $0x708] sm:$0xff]
    %v567 = vld [vmem:[#allocation2 + $0x710] sm:$0xf]
    %v568 = vld [vmem:[#allocation2 + $0x714] sm:$0xff]
    %v569 = vld [vmem:[#allocation2 + $0x71c] sm:$0xf]
    %v570 = vld [vmem:[#allocation2 + $0x720] sm:$0xff]
    %v571 = vld [vmem:[#allocation2 + $0x728] sm:$0xf]
    %v572 = vld [vmem:[#allocation2 + $0x72c] sm:$0xff]
    %v573 = vld [vmem:[#allocation2 + $0x734] sm:$0xf]
    %v574 = vld [vmem:[#allocation2 + $0x738] sm:$0xff]
    %v575 = vld [vmem:[#allocation2 + $0x740] sm:$0xf]
    %v576 = vld [vmem:[#allocation2 + $0x744] sm:$0xff]
    %v577 = vld [vmem:[#allocation2 + $0x74c] sm:$0xf]
    %v578 = vld [vmem:[#allocation2 + $0x750] sm:$0xff]
    %v579 = vld [vmem:[#allocation2 + $0x758] sm:$0xf]
    %v580 = vld [vmem:[#allocation2 + $0x75c] sm:$0xff]
    %v581 = vld [vmem:[#allocation2 + $0x764] sm:$0xf]
    %v582 = vld [vmem:[#allocation2 + $0x768] sm:$0xff]
    %v583 = vld [vmem:[#allocation2 + $0x770] sm:$0xf]
    %v584 = vld [vmem:[#allocation2 + $0x774] sm:$0xff]
    %v585 = vld [vmem:[#allocation2 + $0x77c] sm:$0xf]
    %v586 = vld [vmem:[#allocation2 + $0x780] sm:$0xff]
    %v587 = vld [vmem:[#allocation2 + $0x788] sm:$0xf]
    %v588 = vld [vmem:[#allocation2 + $0x78c] sm:$0xff]
    %v589 = vld [vmem:[#allocation2 + $0x794] sm:$0xf]
    %v590 = vld [vmem:[#allocation2 + $0x798] sm:$0xff]
    %v591 = vld [vmem:[#allocation2 + $0x7a0] sm:$0xf]
    %v592 = vld [vmem:[#allocation2 + $0x7a4] sm:$0xff]
    %v593 = vld [vmem:[#allocation2 + $0x7ac] sm:$0xf]
    %v594 = vld [vmem:[#allocation2 + $0x7b0] sm:$0xff]
    %v595 = vld [vmem:[#allocation2 + $0x7b8] sm:$0xf]
    %v596 = vld [vmem:[#allocation2 + $0x7bc] sm:$0xff]
    %v597 = vld [vmem:[#allocation2 + $0x7c4] sm:$0xf]
    %v598 = vld [vmem:[#allocation2 + $0x7c8] sm:$0xff]
    %v599 = vld [vmem:[#allocation2 + $0x7d0] sm:$0xf]
    %v600 = vld [vmem:[#allocation2 + $0x7d4] sm:$0xff]
    %v601 = vld [vmem:[#allocation2 + $0x7dc] sm:$0xf]
    %v602 = vld [vmem:[#allocation2 + $0x7e0] sm:$0xff]
    %v603 = vld [vmem:[#allocation2 + $0x7e8] sm:$0xf]
    %v604 = vld [vmem:[#allocation2 + $0x7ec] sm:$0xff]
    %v605 = vld [vmem:[#allocation2 + $0x7f4] sm:$0xf]
    %v606 = vld [vmem:[#allocation2 + $0x7f8] sm:$0xff]
    %v607 = vld [vmem:[#allocation2 + $0x800] sm:$0xf]
    %v608 = vld [vmem:[#allocation2 + $0x804] sm:$0xff]
    %v609 = vld [vmem:[#allocation2 + $0x80c] sm:$0xf]
    %v610 = vld [vmem:[#allocation2 + $0x810] sm:$0xff]
    %v611 = vld [vmem:[#allocation2 + $0x818] sm:$0xf]
    %v612 = vld [vmem:[#allocation2 + $0x81c] sm:$0xff]
    %v613 = vld [vmem:[#allocation2 + $0x824] sm:$0xf]
    %v614 = vld [vmem:[#allocation2 + $0x828] sm:$0xff]
    %v615 = vld [vmem:[#allocation2 + $0x830] sm:$0xf]
    %v616 = vld [vmem:[#allocation2 + $0x834] sm:$0xff]
    %v617 = vld [vmem:[#allocation2 + $0x83c] sm:$0xf]
    %v618 = vld [vmem:[#allocation2 + $0x840] sm:$0xff]
    %v619 = vld [vmem:[#allocation2 + $0x848] sm:$0xf]
    %v620 = vld [vmem:[#allocation2 + $0x84c] sm:$0xff]
    %v621 = vld [vmem:[#allocation2 + $0x854] sm:$0xf]
    %v622 = vld [vmem:[#allocation2 + $0x858] sm:$0xff]
    %v623 = vld [vmem:[#allocation2 + $0x860] sm:$0xf]
    %v624 = vld [vmem:[#allocation2 + $0x864] sm:$0xff]
    %v625 = vld [vmem:[#allocation2 + $0x86c] sm:$0xf]
    %v626 = vld [vmem:[#allocation2 + $0x870] sm:$0xff]
    %v627 = vld [vmem:[#allocation2 + $0x878] sm:$0xf]
    %v628 = vld [vmem:[#allocation2 + $0x87c] sm:$0xff]
    %v629 = vld [vmem:[#allocation2 + $0x884] sm:$0xf]
    %v630 = vld [vmem:[#allocation2 + $0x888] sm:$0xff]
    %v631 = vld [vmem:[#allocation2 + $0x890] sm:$0xf]
    %v632 = vld [vmem:[#allocation2 + $0x894] sm:$0xff]
    %v633 = vld [vmem:[#allocation2 + $0x89c] sm:$0xf]
    %v634 = vld [vmem:[#allocation2 + $0x8a0] sm:$0xff]
    %v635 = vld [vmem:[#allocation2 + $0x8a8] sm:$0xf]
    %v636 = vld [vmem:[#allocation2 + $0x8ac] sm:$0xff]
    %v637 = vld [vmem:[#allocation2 + $0x8b4] sm:$0xf]
    %v638 = vld [vmem:[#allocation2 + $0x8b8] sm:$0xff]
    %v639 = vld [vmem:[#allocation2 + $0x8c0] sm:$0xf]
    %v640 = vld [vmem:[#allocation2 + $0x8c4] sm:$0xff]
    %v641 = vld [vmem:[#allocation2 + $0x8cc] sm:$0xf]
    %v642 = vld [vmem:[#allocation2 + $0x8d0] sm:$0xff]
    %v643 = vld [vmem:[#allocation2 + $0x8d8] sm:$0xf]
    %v644 = vld [vmem:[#allocation2 + $0x8dc] sm:$0xff]
    %v645 = vld [vmem:[#allocation2 + $0x8e4] sm:$0xf]
    %v646 = vld [vmem:[#allocation2 + $0x8e8] sm:$0xff]
    %v647 = vld [vmem:[#allocation2 + $0x8f0] sm:$0xf]
    %v648 = vld [vmem:[#allocation2 + $0x8f4] sm:$0xff]
    %v649 = vld [vmem:[#allocation2 + $0x8fc] sm:$0xf]
    %v650 = vld [vmem:[#allocation2 + $0x900] sm:$0xff]
    %v651 = vld [vmem:[#allocation2 + $0x908] sm:$0xf]
    %v652 = vld [vmem:[#allocation2 + $0x90c] sm:$0xff]
    %v653 = vld [vmem:[#allocation2 + $0x914] sm:$0xf]
    %v654 = vld [vmem:[#allocation2 + $0x918] sm:$0xff]
    %v655 = vld [vmem:[#allocation2 + $0x920] sm:$0xf]
    %v656 = vld [vmem:[#allocation2 + $0x924] sm:$0xff]
    %v657 = vld [vmem:[#allocation2 + $0x92c] sm:$0xf]
    %v658 = vld [vmem:[#allocation2 + $0x930] sm:$0xff]
    %v659 = vld [vmem:[#allocation2 + $0x938] sm:$0xf]
    %v660 = vld [vmem:[#allocation2 + $0x93c] sm:$0xff]
    %v661 = vld [vmem:[#allocation2 + $0x944] sm:$0xf]
    %v662 = vld [vmem:[#allocation2 + $0x948] sm:$0xff]
    %v663 = vld [vmem:[#allocation2 + $0x950] sm:$0xf]
    %v664 = vld [vmem:[#allocation2 + $0x954] sm:$0xff]
    %v665 = vld [vmem:[#allocation2 + $0x95c] sm:$0xf]
    %v666 = vld [vmem:[#allocation2 + $0x960] sm:$0xff]
    %v667 = vld [vmem:[#allocation2 + $0x968] sm:$0xf]
    %v668 = vld [vmem:[#allocation2 + $0x96c] sm:$0xff]
    %v669 = vld [vmem:[#allocation2 + $0x974] sm:$0xf]
    %v670 = vld [vmem:[#allocation2 + $0x978] sm:$0xff]
    %v671 = vld [vmem:[#allocation2 + $0x980] sm:$0xf]
    %v672 = vld [vmem:[#allocation2 + $0x984] sm:$0xff]
    %v673 = vld [vmem:[#allocation2 + $0x98c] sm:$0xf]
    %v674 = vld [vmem:[#allocation2 + $0x990] sm:$0xff]
    %v675 = vld [vmem:[#allocation2 + $0x998] sm:$0xf]
    %v676 = vld [vmem:[#allocation2 + $0x99c] sm:$0xff]
    %v677 = vld [vmem:[#allocation2 + $0x9a4] sm:$0xf]
    %v678 = vld [vmem:[#allocation2 + $0x9a8] sm:$0xff]
    %v679 = vld [vmem:[#allocation2 + $0x9b0] sm:$0xf]
    %v680 = vld [vmem:[#allocation2 + $0x9b4] sm:$0xff]
    %v681 = vld [vmem:[#allocation2 + $0x9bc] sm:$0xf]
    %v682 = vld [vmem:[#allocation2 + $0x9c0] sm:$0xff]
    %v683 = vld [vmem:[#allocation2 + $0x9c8] sm:$0xf]
    %v684 = vld [vmem:[#allocation2 + $0x9cc] sm:$0xff]
    %v685 = vld [vmem:[#allocation2 + $0x9d4] sm:$0xf]
    %v686 = vld [vmem:[#allocation2 + $0x9d8] sm:$0xff]
    %v687 = vld [vmem:[#allocation2 + $0x9e0] sm:$0xf]
    %v688 = vld [vmem:[#allocation2 + $0x9e4] sm:$0xff]
    %v689 = vld [vmem:[#allocation2 + $0x9ec] sm:$0xf]
    %v690 = vld [vmem:[#allocation2 + $0x9f0] sm:$0xff]
    %v691 = vld [vmem:[#allocation2 + $0x9f8] sm:$0xf]
    %v692 = vld [vmem:[#allocation2 + $0x9fc] sm:$0xff]
    %v693 = vld [vmem:[#allocation2 + $0xa04] sm:$0xf]
    %v694 = vld [vmem:[#allocation2 + $0xa08] sm:$0xff]
    %v695 = vld [vmem:[#allocation2 + $0xa10] sm:$0xf]
    %v696 = vld [vmem:[#allocation2 + $0xa14] sm:$0xff]
    %v697 = vld [vmem:[#allocation2 + $0xa1c] sm:$0xf]
    %v698 = vld [vmem:[#allocation2 + $0xa20] sm:$0xff]
    %v699 = vld [vmem:[#allocation2 + $0xa28] sm:$0xf]
    %v700 = vld [vmem:[#allocation2 + $0xa2c] sm:$0xff]
    %v701 = vld [vmem:[#allocation2 + $0xa34] sm:$0xf]
    %v702 = vld [vmem:[#allocation2 + $0xa38] sm:$0xff]
    %v703 = vld [vmem:[#allocation2 + $0xa40] sm:$0xf]
    %v704 = vld [vmem:[#allocation2 + $0xa44] sm:$0xff]
    %v705 = vld [vmem:[#allocation2 + $0xa4c] sm:$0xf]
    %v706 = vld [vmem:[#allocation2 + $0xa50] sm:$0xff]
    %v707 = vld [vmem:[#allocation2 + $0xa58] sm:$0xf]
    %v708 = vld [vmem:[#allocation2 + $0xa5c] sm:$0xff]
    %v709 = vld [vmem:[#allocation2 + $0xa64] sm:$0xf]
    %v710 = vld [vmem:[#allocation2 + $0xa68] sm:$0xff]
    %v711 = vld [vmem:[#allocation2 + $0xa70] sm:$0xf]
    %v712 = vld [vmem:[#allocation2 + $0xa74] sm:$0xff]
    %v713 = vld [vmem:[#allocation2 + $0xa7c] sm:$0xf]
    %v714 = vld [vmem:[#allocation2 + $0xa80] sm:$0xff]
    %v715 = vld [vmem:[#allocation2 + $0xa88] sm:$0xf]
    %v716 = vld [vmem:[#allocation2 + $0xa8c] sm:$0xff]
    %v717 = vld [vmem:[#allocation2 + $0xa94] sm:$0xf]
    %v718 = vld [vmem:[#allocation2 + $0xa98] sm:$0xff]
    %v719 = vld [vmem:[#allocation2 + $0xaa0] sm:$0xf]
    %v720 = vld [vmem:[#allocation2 + $0xaa4] sm:$0xff]
    %v721 = vld [vmem:[#allocation2 + $0xaac] sm:$0xf]
    %v722 = vld [vmem:[#allocation2 + $0xab0] sm:$0xff]
    %v723 = vld [vmem:[#allocation2 + $0xab8] sm:$0xf]
    %v724 = vld [vmem:[#allocation2 + $0xabc] sm:$0xff]
    %v725 = vld [vmem:[#allocation2 + $0xac4] sm:$0xf]
    %v726 = vld [vmem:[#allocation2 + $0xac8] sm:$0xff]
    %v727 = vld [vmem:[#allocation2 + $0xad0] sm:$0xf]
    %v728 = vld [vmem:[#allocation2 + $0xad4] sm:$0xff]
    %v729 = vld [vmem:[#allocation2 + $0xadc] sm:$0xf]
    %v730 = vld [vmem:[#allocation2 + $0xae0] sm:$0xff]
    %v731 = vld [vmem:[#allocation2 + $0xae8] sm:$0xf]
    %v732 = vld [vmem:[#allocation2 + $0xaec] sm:$0xff]
    %v733 = vld [vmem:[#allocation2 + $0xaf4] sm:$0xf]
    %v734 = vld [vmem:[#allocation2 + $0xaf8] sm:$0xff]
    %v735 = vld [vmem:[#allocation2 + $0xb00] sm:$0xf]
    %v736 = vld [vmem:[#allocation2 + $0xb04] sm:$0xff]
    %v737 = vld [vmem:[#allocation2 + $0xb0c] sm:$0xf]
    %v738 = vld [vmem:[#allocation2 + $0xb10] sm:$0xff]
    %v739 = vld [vmem:[#allocation2 + $0xb18] sm:$0xf]
    %v740 = vld [vmem:[#allocation2 + $0xb1c] sm:$0xff]
    %v741 = vld [vmem:[#allocation2 + $0xb24] sm:$0xf]
    %v742 = vld [vmem:[#allocation2 + $0xb28] sm:$0xff]
    %v743 = vld [vmem:[#allocation2 + $0xb30] sm:$0xf]
    %v744 = vld [vmem:[#allocation2 + $0xb34] sm:$0xff]
    %v745 = vld [vmem:[#allocation2 + $0xb3c] sm:$0xf]
    %v746 = vld [vmem:[#allocation2 + $0xb40] sm:$0xff]
    %v747 = vld [vmem:[#allocation2 + $0xb48] sm:$0xf]
    %v748 = vld [vmem:[#allocation2 + $0xb4c] sm:$0xff]
    %v749 = vld [vmem:[#allocation2 + $0xb54] sm:$0xf]
    %v750 = vld [vmem:[#allocation2 + $0xb58] sm:$0xff]
    %v751 = vld [vmem:[#allocation2 + $0xb60] sm:$0xf]
    %v752 = vld [vmem:[#allocation2 + $0xb64] sm:$0xff]
    %v753 = vld [vmem:[#allocation2 + $0xb6c] sm:$0xf]
    %v754 = vld [vmem:[#allocation2 + $0xb70] sm:$0xff]
    %v755 = vld [vmem:[#allocation2 + $0xb78] sm:$0xf]
    %v756 = vld [vmem:[#allocation2 + $0xb7c] sm:$0xff]
    %v757 = vld [vmem:[#allocation2 + $0xb84] sm:$0xf]
    %v758 = vld [vmem:[#allocation2 + $0xb88] sm:$0xff]
    %v759 = vld [vmem:[#allocation2 + $0xb90] sm:$0xf]
    %v760 = vld [vmem:[#allocation2 + $0xb94] sm:$0xff]
    %v761 = vld [vmem:[#allocation2 + $0xb9c] sm:$0xf]
    %v762 = vld [vmem:[#allocation2 + $0xba0] sm:$0xff]
    %v763 = vld [vmem:[#allocation2 + $0xba8] sm:$0xf]
    %v764 = vld [vmem:[#allocation2 + $0xbac] sm:$0xff]
    %v765 = vld [vmem:[#allocation2 + $0xbb4] sm:$0xf]
    %v766 = vld [vmem:[#allocation2 + $0xbb8] sm:$0xff]
    %v767 = vld [vmem:[#allocation2 + $0xbc0] sm:$0xf]
    %v768 = vld [vmem:[#allocation2 + $0xbc4] sm:$0xff]
    %v769 = vld [vmem:[#allocation2 + $0xbcc] sm:$0xf]
    %v770 = vld [vmem:[#allocation2 + $0xbd0] sm:$0xff]
    %v771 = vld [vmem:[#allocation2 + $0xbd8] sm:$0xf]
    %v772 = vld [vmem:[#allocation2 + $0xbdc] sm:$0xff]
    %v773 = vld [vmem:[#allocation2 + $0xbe4] sm:$0xf]
    %v774 = vld [vmem:[#allocation2 + $0xbe8] sm:$0xff]
    %v775 = vld [vmem:[#allocation2 + $0xbf0] sm:$0xf]
    %v776 = vld [vmem:[#allocation2 + $0xbf4] sm:$0xff]
    %v777 = vld [vmem:[#allocation2 + $0xbfc] sm:$0xf]
    %v778 = vld [vmem:[#allocation2 + $0xc00] sm:$0xff]
    %v779 = vld [vmem:[#allocation2 + $0xc08] sm:$0xf]
    %v780 = vld [vmem:[#allocation2 + $0xc0c] sm:$0xff]
    %v781 = vld [vmem:[#allocation2 + $0xc14] sm:$0xf]
    %v782 = vld [vmem:[#allocation2 + $0xc18] sm:$0xff]
    %v783 = vld [vmem:[#allocation2 + $0xc20] sm:$0xf]
    %v784 = vld [vmem:[#allocation2 + $0xc24] sm:$0xff]
    %v785 = vld [vmem:[#allocation2 + $0xc2c] sm:$0xf]
    %v786 = vld [vmem:[#allocation2 + $0xc30] sm:$0xff]
    %v787 = vld [vmem:[#allocation2 + $0xc38] sm:$0xf]
    %v788 = vld [vmem:[#allocation2 + $0xc3c] sm:$0xff]
    %v789 = vld [vmem:[#allocation2 + $0xc44] sm:$0xf]
    %v790 = vld [vmem:[#allocation2 + $0xc48] sm:$0xff]
    %v791 = vld [vmem:[#allocation2 + $0xc50] sm:$0xf]
    %v792 = vld [vmem:[#allocation2 + $0xc54] sm:$0xff]
    %v793 = vld [vmem:[#allocation2 + $0xc5c] sm:$0xf]
    %v794 = vld [vmem:[#allocation2 + $0xc60] sm:$0xff]
    %v795 = vld [vmem:[#allocation2 + $0xc68] sm:$0xf]
    %v796 = vld [vmem:[#allocation2 + $0xc6c] sm:$0xff]
    %v797 = vld [vmem:[#allocation2 + $0xc74] sm:$0xf]
    %v798 = vld [vmem:[#allocation2 + $0xc78] sm:$0xff]
    %v799 = vld [vmem:[#allocation2 + $0xc80] sm:$0xf]
    %v800 = vld [vmem:[#allocation2 + $0xc84] sm:$0xff]
    %v801 = vld [vmem:[#allocation2 + $0xc8c] sm:$0xf]
    %v802 = vld [vmem:[#allocation2 + $0xc90] sm:$0xff]
    %v803 = vld [vmem:[#allocation2 + $0xc98] sm:$0xf]
    %v804 = vld [vmem:[#allocation2 + $0xc9c] sm:$0xff]
    %v805 = vld [vmem:[#allocation2 + $0xca4] sm:$0xf]
    %v806 = vld [vmem:[#allocation2 + $0xca8] sm:$0xff]
    %v807 = vld [vmem:[#allocation2 + $0xcb0] sm:$0xf]
    %v808 = vld [vmem:[#allocation2 + $0xcb4] sm:$0xff]
    %v809 = vld [vmem:[#allocation2 + $0xcbc] sm:$0xf]
    %v810 = vld [vmem:[#allocation2 + $0xcc0] sm:$0xff]
    %v811 = vld [vmem:[#allocation2 + $0xcc8] sm:$0xf]
    %v812 = vld [vmem:[#allocation2 + $0xccc] sm:$0xff]
    %v813 = vld [vmem:[#allocation2 + $0xcd4] sm:$0xf]
    %v814 = vld [vmem:[#allocation2 + $0xcd8] sm:$0xff]
    %v815 = vld [vmem:[#allocation2 + $0xce0] sm:$0xf]
    %v816 = vld [vmem:[#allocation2 + $0xce4] sm:$0xff]
    %v817 = vld [vmem:[#allocation2 + $0xcec] sm:$0xf]
    %v818 = vld [vmem:[#allocation2 + $0xcf0] sm:$0xff]
    %v819 = vld [vmem:[#allocation2 + $0xcf8] sm:$0xf]
    %v820 = vld [vmem:[#allocation2 + $0xcfc] sm:$0xff]
    %v821 = vld [vmem:[#allocation2 + $0xd04] sm:$0xf]
    %v822 = vld [vmem:[#allocation2 + $0xd08] sm:$0xff]
    %v823 = vld [vmem:[#allocation2 + $0xd10] sm:$0xf]
    %v824 = vld [vmem:[#allocation2 + $0xd14] sm:$0xff]
    %v825 = vld [vmem:[#allocation2 + $0xd1c] sm:$0xf]
    %v826 = vld [vmem:[#allocation2 + $0xd20] sm:$0xff]
    %v827 = vld [vmem:[#allocation2 + $0xd28] sm:$0xf]
    %v828 = vld [vmem:[#allocation2 + $0xd2c] sm:$0xff]
    %v829 = vld [vmem:[#allocation2 + $0xd34] sm:$0xf]
    %v830 = vld [vmem:[#allocation2 + $0xd38] sm:$0xff]
    %v831 = vld [vmem:[#allocation2 + $0xd40] sm:$0xf]
    %v832 = vld [vmem:[#allocation2 + $0xd44] sm:$0xff]
    %v833 = vld [vmem:[#allocation2 + $0xd4c] sm:$0xf]
    %v834 = vld [vmem:[#allocation2 + $0xd50] sm:$0xff]
    %v835 = vld [vmem:[#allocation2 + $0xd58] sm:$0xf]
    %v836 = vld [vmem:[#allocation2 + $0xd5c] sm:$0xff]
    %v837 = vld [vmem:[#allocation2 + $0xd64] sm:$0xf]
    %v838 = vld [vmem:[#allocation2 + $0xd68] sm:$0xff]
    %v839 = vld [vmem:[#allocation2 + $0xd70] sm:$0xf]
    %v840 = vld [vmem:[#allocation2 + $0xd74] sm:$0xff]
    %v841 = vld [vmem:[#allocation2 + $0xd7c] sm:$0xf]
    %v842 = vld [vmem:[#allocation2 + $0xd80] sm:$0xff]
    %v843 = vld [vmem:[#allocation2 + $0xd88] sm:$0xf]
    %v844 = vld [vmem:[#allocation2 + $0xd8c] sm:$0xff]
    %v845 = vld [vmem:[#allocation2 + $0xd94] sm:$0xf]
    %v846 = vld [vmem:[#allocation2 + $0xd98] sm:$0xff]
    %v847 = vld [vmem:[#allocation2 + $0xda0] sm:$0xf]
    %v848 = vld [vmem:[#allocation2 + $0xda4] sm:$0xff]
    %v849 = vld [vmem:[#allocation2 + $0xdac] sm:$0xf]
    %v850 = vld [vmem:[#allocation2 + $0xdb0] sm:$0xff]
    %v851 = vld [vmem:[#allocation2 + $0xdb8] sm:$0xf]
    %v852 = vld [vmem:[#allocation2 + $0xdbc] sm:$0xff]
    %v853 = vld [vmem:[#allocation2 + $0xdc4] sm:$0xf]
    %v854 = vld [vmem:[#allocation2 + $0xdc8] sm:$0xff]
    %v855 = vld [vmem:[#allocation2 + $0xdd0] sm:$0xf]
    %v856 = vld [vmem:[#allocation2 + $0xdd4] sm:$0xff]
    %v857 = vld [vmem:[#allocation2 + $0xddc] sm:$0xf]
    %v858 = vld [vmem:[#allocation2 + $0xde0] sm:$0xff]
    %v859 = vld [vmem:[#allocation2 + $0xde8] sm:$0xf]
    %v860 = vld [vmem:[#allocation2 + $0xdec] sm:$0xff]
    %v861 = vld [vmem:[#allocation2 + $0xdf4] sm:$0xf]
    %v862 = vld [vmem:[#allocation2 + $0xdf8] sm:$0xff]
    %v863 = vld [vmem:[#allocation2 + $0xe00] sm:$0xf]
    %v864 = vld [vmem:[#allocation2 + $0xe04] sm:$0xff]
    %v865 = vld [vmem:[#allocation2 + $0xe0c] sm:$0xf]
    %v866 = vld [vmem:[#allocation2 + $0xe10] sm:$0xff]
    %v867 = vld [vmem:[#allocation2 + $0xe18] sm:$0xf]
    %v868 = vld [vmem:[#allocation2 + $0xe1c] sm:$0xff]
    %v869 = vld [vmem:[#allocation2 + $0xe24] sm:$0xf]
    %v870 = vld [vmem:[#allocation2 + $0xe28] sm:$0xff]
    %v871 = vld [vmem:[#allocation2 + $0xe30] sm:$0xf]
    %v872 = vld [vmem:[#allocation2 + $0xe34] sm:$0xff]
    %v873 = vld [vmem:[#allocation2 + $0xe3c] sm:$0xf]
    %v874 = vld [vmem:[#allocation2 + $0xe40] sm:$0xff]
    %v875 = vld [vmem:[#allocation2 + $0xe48] sm:$0xf]
    %v876 = vld [vmem:[#allocation2 + $0xe4c] sm:$0xff]
    %v877 = vld [vmem:[#allocation2 + $0xe54] sm:$0xf]
    %v878 = vld [vmem:[#allocation2 + $0xe58] sm:$0xff]
    %v879 = vld [vmem:[#allocation2 + $0xe60] sm:$0xf]
    %v880 = vld [vmem:[#allocation2 + $0xe64] sm:$0xff]
    %v881 = vld [vmem:[#allocation2 + $0xe6c] sm:$0xf]
    %v882 = vld [vmem:[#allocation2 + $0xe70] sm:$0xff]
    %v883 = vld [vmem:[#allocation2 + $0xe78] sm:$0xf]
    %v884 = vld [vmem:[#allocation2 + $0xe7c] sm:$0xff]
    %v885 = vld [vmem:[#allocation2 + $0xe84] sm:$0xf]
    %v886 = vld [vmem:[#allocation2 + $0xe88] sm:$0xff]
    %v887 = vld [vmem:[#allocation2 + $0xe90] sm:$0xf]
    %v888 = vld [vmem:[#allocation2 + $0xe94] sm:$0xff]
    %v889 = vld [vmem:[#allocation2 + $0xe9c] sm:$0xf]
    %v890 = vld [vmem:[#allocation2 + $0xea0] sm:$0xff]
    %v891 = vld [vmem:[#allocation2 + $0xea8] sm:$0xf]
    %v892 = vld [vmem:[#allocation2 + $0xeac] sm:$0xff]
    %v893 = vld [vmem:[#allocation2 + $0xeb4] sm:$0xf]
    %v894 = vld [vmem:[#allocation2 + $0xeb8] sm:$0xff]
    %v895 = vld [vmem:[#allocation2 + $0xec0] sm:$0xf]
    %v896 = vld [vmem:[#allocation2 + $0xec4] sm:$0xff]
    %v897 = vld [vmem:[#allocation2 + $0xecc] sm:$0xf]
    %v898 = vld [vmem:[#allocation2 + $0xed0] sm:$0xff]
    %v899 = vld [vmem:[#allocation2 + $0xed8] sm:$0xf]
    %v900 = vld [vmem:[#allocation2 + $0xedc] sm:$0xff]
    %v901 = vld [vmem:[#allocation2 + $0xee4] sm:$0xf]
    %v902 = vld [vmem:[#allocation2 + $0xee8] sm:$0xff]
    %v903 = vld [vmem:[#allocation2 + $0xef0] sm:$0xf]
    %v904 = vld [vmem:[#allocation2 + $0xef4] sm:$0xff]
    %v905 = vld [vmem:[#allocation2 + $0xefc] sm:$0xf]
    %v906 = vld [vmem:[#allocation2 + $0xf00] sm:$0xff]
    %v907 = vld [vmem:[#allocation2 + $0xf08] sm:$0xf]
    %v908 = vld [vmem:[#allocation2 + $0xf0c] sm:$0xff]
    %v909 = vld [vmem:[#allocation2 + $0xf14] sm:$0xf]
    %v910 = vld [vmem:[#allocation2 + $0xf18] sm:$0xff]
    %v911 = vld [vmem:[#allocation2 + $0xf20] sm:$0xf]
    %v912 = vld [vmem:[#allocation2 + $0xf24] sm:$0xff]
    %v913 = vld [vmem:[#allocation2 + $0xf2c] sm:$0xf]
    %v914 = vld [vmem:[#allocation2 + $0xf30] sm:$0xff]
    %v915 = vld [vmem:[#allocation2 + $0xf38] sm:$0xf]
    %v916 = vld [vmem:[#allocation2 + $0xf3c] sm:$0xff]
    %v917 = vld [vmem:[#allocation2 + $0xf44] sm:$0xf]
    %v918 = vld [vmem:[#allocation2 + $0xf48] sm:$0xff]
    %v919 = vld [vmem:[#allocation2 + $0xf50] sm:$0xf]
    %v920 = vld [vmem:[#allocation2 + $0xf54] sm:$0xff]
    %v921 = vld [vmem:[#allocation2 + $0xf5c] sm:$0xf]
    %v922 = vld [vmem:[#allocation2 + $0xf60] sm:$0xff]
    %v923 = vld [vmem:[#allocation2 + $0xf68] sm:$0xf]
    %v924 = vld [vmem:[#allocation2 + $0xf6c] sm:$0xff]
    %v925 = vld [vmem:[#allocation2 + $0xf74] sm:$0xf]
    %v926 = vld [vmem:[#allocation2 + $0xf78] sm:$0xff]
    %v927 = vld [vmem:[#allocation2 + $0xf80] sm:$0xf]
    %v928 = vld [vmem:[#allocation2 + $0xf84] sm:$0xff]
    %v929 = vld [vmem:[#allocation2 + $0xf8c] sm:$0xf]
    %v930 = vld [vmem:[#allocation2 + $0xf90] sm:$0xff]
    %v931 = vld [vmem:[#allocation2 + $0xf98] sm:$0xf]
    %v932 = vld [vmem:[#allocation2 + $0xf9c] sm:$0xff]
    %v933 = vld [vmem:[#allocation2 + $0xfa4] sm:$0xf]
    %v934 = vld [vmem:[#allocation2 + $0xfa8] sm:$0xff]
    %v935 = vld [vmem:[#allocation2 + $0xfb0] sm:$0xf]
    %v936 = vld [vmem:[#allocation2 + $0xfb4] sm:$0xff]
    %v937 = vld [vmem:[#allocation2 + $0xfbc] sm:$0xf]
    %v938 = vld [vmem:[#allocation2 + $0xfc0] sm:$0xff]
    %v939 = vld [vmem:[#allocation2 + $0xfc8] sm:$0xf]
    %v940 = vld [vmem:[#allocation2 + $0xfcc] sm:$0xff]
    %v941 = vld [vmem:[#allocation2 + $0xfd4] sm:$0xf]
    %v942 = vld [vmem:[#allocation2 + $0xfd8] sm:$0xff]
    %v943 = vld [vmem:[#allocation2 + $0xfe0] sm:$0xf]
    %v944 = vld [vmem:[#allocation2 + $0xfe4] sm:$0xff]
    %v945 = vld [vmem:[#allocation2 + $0xfec] sm:$0xf]
    %v946 = vld [vmem:[#allocation2 + $0xff0] sm:$0xff]
    %v947 = vld [vmem:[#allocation2 + $0xff8] sm:$0xf]
    %v948 = vld [vmem:[#allocation2 + $0xffc] sm:$0xff]
    %v949 = vld [vmem:[#allocation2 + $0x1004] sm:$0xf]
    %v950 = vld [vmem:[#allocation2 + $0x1008] sm:$0xff]
    %v951 = vld [vmem:[#allocation2 + $0x1010] sm:$0xf]
    %v952 = vld [vmem:[#allocation2 + $0x1014] sm:$0xff]
    %v953 = vld [vmem:[#allocation2 + $0x101c] sm:$0xf]
    %v954 = vld [vmem:[#allocation2 + $0x1020] sm:$0xff]
    %v955 = vld [vmem:[#allocation2 + $0x1028] sm:$0xf]
    %v956 = vld [vmem:[#allocation2 + $0x102c] sm:$0xff]
    %v957 = vld [vmem:[#allocation2 + $0x1034] sm:$0xf]
    %v958 = vld [vmem:[#allocation2 + $0x1038] sm:$0xff]
    %v959 = vld [vmem:[#allocation2 + $0x1040] sm:$0xf]
    %v960 = vld [vmem:[#allocation2 + $0x1044] sm:$0xff]
    %v961 = vld [vmem:[#allocation2 + $0x104c] sm:$0xf]
    %v962 = vld [vmem:[#allocation2 + $0x1050] sm:$0xff]
    %v963 = vld [vmem:[#allocation2 + $0x1058] sm:$0xf]
    %v964 = vld [vmem:[#allocation2 + $0x105c] sm:$0xff]
    %v965 = vld [vmem:[#allocation2 + $0x1064] sm:$0xf]
    %v966 = vld [vmem:[#allocation2 + $0x1068] sm:$0xff]
    %v967 = vld [vmem:[#allocation2 + $0x1070] sm:$0xf]
    %v968 = vld [vmem:[#allocation2 + $0x1074] sm:$0xff]
    %v969 = vld [vmem:[#allocation2 + $0x107c] sm:$0xf]
    %v970 = vld [vmem:[#allocation2 + $0x1080] sm:$0xff]
    %v971 = vld [vmem:[#allocation2 + $0x1088] sm:$0xf]
    %v972 = vld [vmem:[#allocation2 + $0x108c] sm:$0xff]
    %v973 = vld [vmem:[#allocation2 + $0x1094] sm:$0xf]
    %v974 = vld [vmem:[#allocation2 + $0x1098] sm:$0xff]
    %v975 = vld [vmem:[#allocation2 + $0x10a0] sm:$0xf]
    %v976 = vld [vmem:[#allocation2 + $0x10a4] sm:$0xff]
    %v977 = vld [vmem:[#allocation2 + $0x10ac] sm:$0xf]
    %v978 = vld [vmem:[#allocation2 + $0x10b0] sm:$0xff]
    %v979 = vld [vmem:[#allocation2 + $0x10b8] sm:$0xf]
    %v980 = vld [vmem:[#allocation2 + $0x10bc] sm:$0xff]
    %v981 = vld [vmem:[#allocation2 + $0x10c4] sm:$0xf]
    %v982 = vld [vmem:[#allocation2 + $0x10c8] sm:$0xff]
    %v983 = vld [vmem:[#allocation2 + $0x10d0] sm:$0xf]
    %v984 = vld [vmem:[#allocation2 + $0x10d4] sm:$0xff]
    %v985 = vld [vmem:[#allocation2 + $0x10dc] sm:$0xf]
    %v986 = vld [vmem:[#allocation2 + $0x10e0] sm:$0xff]
    %v987 = vld [vmem:[#allocation2 + $0x10e8] sm:$0xf]
    %v988 = vld [vmem:[#allocation2 + $0x10ec] sm:$0xff]
    %v989 = vld [vmem:[#allocation2 + $0x10f4] sm:$0xf]
    %v990 = vld [vmem:[#allocation2 + $0x10f8] sm:$0xff]
    %v991 = vld [vmem:[#allocation2 + $0x1100] sm:$0xf]
    %v992 = vld [vmem:[#allocation2 + $0x1104] sm:$0xff]
    %v993 = vld [vmem:[#allocation2 + $0x110c] sm:$0xf]
    %v994 = vld [vmem:[#allocation2 + $0x1110] sm:$0xff]
    %v995 = vld [vmem:[#allocation2 + $0x1118] sm:$0xf]
    %v996 = vld [vmem:[#allocation2 + $0x111c] sm:$0xff]
    %v997 = vld [vmem:[#allocation2 + $0x1124] sm:$0xf]
    %v998 = vld [vmem:[#allocation2 + $0x1128] sm:$0xff]
    %v999 = vld [vmem:[#allocation2 + $0x1130] sm:$0xf]
    %v1000 = vld [vmem:[#allocation2 + $0x1134] sm:$0xff]
    %v1001 = vld [vmem:[#allocation2 + $0x113c] sm:$0xf]
    %v1002 = vld [vmem:[#allocation2 + $0x1140] sm:$0xff]
    %v1003 = vld [vmem:[#allocation2 + $0x1148] sm:$0xf]
    %v1004 = vld [vmem:[#allocation2 + $0x114c] sm:$0xff]
    %v1005 = vld [vmem:[#allocation2 + $0x1154] sm:$0xf]
    %v1006 = vld [vmem:[#allocation2 + $0x1158] sm:$0xff]
    %v1007 = vld [vmem:[#allocation2 + $0x1160] sm:$0xf]
    %v1008 = vld [vmem:[#allocation2 + $0x1164] sm:$0xff]
    %v1009 = vld [vmem:[#allocation2 + $0x116c] sm:$0xf]
    %v1010 = vld [vmem:[#allocation2 + $0x1170] sm:$0xff]
    %v1011 = vld [vmem:[#allocation2 + $0x1178] sm:$0xf]
    %v1012 = vld [vmem:[#allocation2 + $0x117c] sm:$0xff]
    %v1013 = vld [vmem:[#allocation2 + $0x1184] sm:$0xf]
    %v1014 = vld [vmem:[#allocation2 + $0x1188] sm:$0xff]
    %v1015 = vld [vmem:[#allocation2 + $0x1190] sm:$0xf]
    %v1016 = vld [vmem:[#allocation2 + $0x1194] sm:$0xff]
    %v1017 = vld [vmem:[#allocation2 + $0x119c] sm:$0xf]
    %v1018 = vld [vmem:[#allocation2 + $0x11a0] sm:$0xff]
    %v1019 = vld [vmem:[#allocation2 + $0x11a8] sm:$0xf]
    %v1020 = vld [vmem:[#allocation2 + $0x11ac] sm:$0xff]
    %v1021 = vld [vmem:[#allocation2 + $0x11b4] sm:$0xf]
    %v1022 = vld [vmem:[#allocation2 + $0x11b8] sm:$0xff]
    %v1023 = vld [vmem:[#allocation2 + $0x11c0] sm:$0xf]
    %v1024 = vld [vmem:[#allocation2 + $0x11c4] sm:$0xff]
    %v1025 = vld [vmem:[#allocation2 + $0x11cc] sm:$0xf]
    %v1026 = vld [vmem:[#allocation2 + $0x11d0] sm:$0xff]
    %v1027 = vld [vmem:[#allocation2 + $0x11d8] sm:$0xf]
    %v1028 = vld [vmem:[#allocation2 + $0x11dc] sm:$0xff]
    %v1029 = vld [vmem:[#allocation2 + $0x11e4] sm:$0xf]
    %v1030 = vld [vmem:[#allocation2 + $0x11e8] sm:$0xff]
    %v1031 = vld [vmem:[#allocation2 + $0x11f0] sm:$0xf]
    %v1032 = vld [vmem:[#allocation2 + $0x11f4] sm:$0xff]
    %v1033 = vld [vmem:[#allocation2 + $0x11fc] sm:$0xf]
    %v1034 = vld [vmem:[#allocation5] sm:$0x7]
    %v1036 = vlaneseq
    %v1037 = vshrl.u32 %v1036, 7
    %v1038 = vsub.s32 0, %v1037
    %v1039 = vrot.slane %v1034, %v1038
    %v1040 = vlaneseq
    %v1041 = vshrl.u32 %v1040, 7
    %v1042 = vsub.s32 1, %v1041
    %v1043 = vrot.slane %v1034, %v1042
    %v1044 = vlaneseq
    %v1045 = vshrl.u32 %v1044, 7
    %v1046 = vsub.s32 2, %v1045
    %v1047 = vrot.slane %v1034, %v1046
    %v1819 = vunpack.c.l.b16 %v266
    %v1820 = vunpack.c.h.b16 %v266
    %v1821 = vunpack.c.l.b16 %v267
    %v1822 = vunpack.c.l.b16 %v268
    %v1823 = vunpack.c.h.b16 %v268
    %v1824 = vunpack.c.l.b16 %v269
    %v1825 = vunpack.c.l.b16 %v270
    %v1826 = vunpack.c.h.b16 %v270
    %v1827 = vunpack.c.l.b16 %v271
    %v1828 = vunpack.c.l.b16 %v272
    %v1829 = vunpack.c.h.b16 %v272
    %v1830 = vunpack.c.l.b16 %v273
    %v1831 = vunpack.c.l.b16 %v274
    %v1832 = vunpack.c.h.b16 %v274
    %v1833 = vunpack.c.l.b16 %v275
    %v1834 = vunpack.c.l.b16 %v276
    %v1835 = vunpack.c.h.b16 %v276
    %v1836 = vunpack.c.l.b16 %v277
    %v1837 = vunpack.c.l.b16 %v278
    %v1838 = vunpack.c.h.b16 %v278
    %v1839 = vunpack.c.l.b16 %v279
    %v1840 = vunpack.c.l.b16 %v280
    %v1841 = vunpack.c.h.b16 %v280
    %v1842 = vunpack.c.l.b16 %v281
    %v1843 = vunpack.c.l.b16 %v282
    %v1844 = vunpack.c.h.b16 %v282
    %v1845 = vunpack.c.l.b16 %v283
    %v1846 = vunpack.c.l.b16 %v284
    %v1847 = vunpack.c.h.b16 %v284
    %v1848 = vunpack.c.l.b16 %v285
    %v1849 = vunpack.c.l.b16 %v286
    %v1850 = vunpack.c.h.b16 %v286
    %v1851 = vunpack.c.l.b16 %v287
    %v1852 = vunpack.c.l.b16 %v288
    %v1853 = vunpack.c.h.b16 %v288
    %v1854 = vunpack.c.l.b16 %v289
    %v1855 = vunpack.c.l.b16 %v290
    %v1856 = vunpack.c.h.b16 %v290
    %v1857 = vunpack.c.l.b16 %v291
    %v1858 = vunpack.c.l.b16 %v292
    %v1859 = vunpack.c.h.b16 %v292
    %v1860 = vunpack.c.l.b16 %v293
    %v1861 = vunpack.c.l.b16 %v294
    %v1862 = vunpack.c.h.b16 %v294
    %v1863 = vunpack.c.l.b16 %v295
    %v1864 = vunpack.c.l.b16 %v296
    %v1865 = vunpack.c.h.b16 %v296
    %v1866 = vunpack.c.l.b16 %v297
    %v1867 = vunpack.c.l.b16 %v298
    %v1868 = vunpack.c.h.b16 %v298
    %v1869 = vunpack.c.l.b16 %v299
    %v1870 = vunpack.c.l.b16 %v300
    %v1871 = vunpack.c.h.b16 %v300
    %v1872 = vunpack.c.l.b16 %v301
    %v1873 = vunpack.c.l.b16 %v302
    %v1874 = vunpack.c.h.b16 %v302
    %v1875 = vunpack.c.l.b16 %v303
    %v1876 = vunpack.c.l.b16 %v304
    %v1877 = vunpack.c.h.b16 %v304
    %v1878 = vunpack.c.l.b16 %v305
    %v1879 = vunpack.c.l.b16 %v306
    %v1880 = vunpack.c.h.b16 %v306
    %v1881 = vunpack.c.l.b16 %v307
    %v1882 = vunpack.c.l.b16 %v308
    %v1883 = vunpack.c.h.b16 %v308
    %v1884 = vunpack.c.l.b16 %v309
    %v1885 = vunpack.c.l.b16 %v310
    %v1886 = vunpack.c.h.b16 %v310
    %v1887 = vunpack.c.l.b16 %v311
    %v1888 = vunpack.c.l.b16 %v312
    %v1889 = vunpack.c.h.b16 %v312
    %v1890 = vunpack.c.l.b16 %v313
    %v1891 = vunpack.c.l.b16 %v314
    %v1892 = vunpack.c.h.b16 %v314
    %v1893 = vunpack.c.l.b16 %v315
    %v1894 = vunpack.c.l.b16 %v316
    %v1895 = vunpack.c.h.b16 %v316
    %v1896 = vunpack.c.l.b16 %v317
    %v1897 = vunpack.c.l.b16 %v318
    %v1898 = vunpack.c.h.b16 %v318
    %v1899 = vunpack.c.l.b16 %v319
    %v1900 = vunpack.c.l.b16 %v320
    %v1901 = vunpack.c.h.b16 %v320
    %v1902 = vunpack.c.l.b16 %v321
    %v1903 = vunpack.c.l.b16 %v322
    %v1904 = vunpack.c.h.b16 %v322
    %v1905 = vunpack.c.l.b16 %v323
    %v1906 = vunpack.c.l.b16 %v324
    %v1907 = vunpack.c.h.b16 %v324
    %v1908 = vunpack.c.l.b16 %v325
    %v1909 = vunpack.c.l.b16 %v326
    %v1910 = vunpack.c.h.b16 %v326
    %v1911 = vunpack.c.l.b16 %v327
    %v1912 = vunpack.c.l.b16 %v328
    %v1913 = vunpack.c.h.b16 %v328
    %v1914 = vunpack.c.l.b16 %v329
    %v1915 = vunpack.c.l.b16 %v330
    %v1916 = vunpack.c.h.b16 %v330
    %v1917 = vunpack.c.l.b16 %v331
    %v1918 = vunpack.c.l.b16 %v332
    %v1919 = vunpack.c.h.b16 %v332
    %v1920 = vunpack.c.l.b16 %v333
    %v1921 = vunpack.c.l.b16 %v334
    %v1922 = vunpack.c.h.b16 %v334
    %v1923 = vunpack.c.l.b16 %v335
    %v1924 = vunpack.c.l.b16 %v336
    %v1925 = vunpack.c.h.b16 %v336
    %v1926 = vunpack.c.l.b16 %v337
    %v1927 = vunpack.c.l.b16 %v338
    %v1928 = vunpack.c.h.b16 %v338
    %v1929 = vunpack.c.l.b16 %v339
    %v1930 = vunpack.c.l.b16 %v340
    %v1931 = vunpack.c.h.b16 %v340
    %v1932 = vunpack.c.l.b16 %v341
    %v1933 = vunpack.c.l.b16 %v342
    %v1934 = vunpack.c.h.b16 %v342
    %v1935 = vunpack.c.l.b16 %v343
    %v1936 = vunpack.c.l.b16 %v344
    %v1937 = vunpack.c.h.b16 %v344
    %v1938 = vunpack.c.l.b16 %v345
    %v1939 = vunpack.c.l.b16 %v346
    %v1940 = vunpack.c.h.b16 %v346
    %v1941 = vunpack.c.l.b16 %v347
    %v1942 = vunpack.c.l.b16 %v348
    %v1943 = vunpack.c.h.b16 %v348
    %v1944 = vunpack.c.l.b16 %v349
    %v1945 = vunpack.c.l.b16 %v350
    %v1946 = vunpack.c.h.b16 %v350
    %v1947 = vunpack.c.l.b16 %v351
    %v1948 = vunpack.c.l.b16 %v352
    %v1949 = vunpack.c.h.b16 %v352
    %v1950 = vunpack.c.l.b16 %v353
    %v1951 = vunpack.c.l.b16 %v354
    %v1952 = vunpack.c.h.b16 %v354
    %v1953 = vunpack.c.l.b16 %v355
    %v1954 = vunpack.c.l.b16 %v356
    %v1955 = vunpack.c.h.b16 %v356
    %v1956 = vunpack.c.l.b16 %v357
    %v1957 = vunpack.c.l.b16 %v358
    %v1958 = vunpack.c.h.b16 %v358
    %v1959 = vunpack.c.l.b16 %v359
    %v1960 = vunpack.c.l.b16 %v360
    %v1961 = vunpack.c.h.b16 %v360
    %v1962 = vunpack.c.l.b16 %v361
    %v1963 = vunpack.c.l.b16 %v362
    %v1964 = vunpack.c.h.b16 %v362
    %v1965 = vunpack.c.l.b16 %v363
    %v1966 = vunpack.c.l.b16 %v364
    %v1967 = vunpack.c.h.b16 %v364
    %v1968 = vunpack.c.l.b16 %v365
    %v1969 = vunpack.c.l.b16 %v366
    %v1970 = vunpack.c.h.b16 %v366
    %v1971 = vunpack.c.l.b16 %v367
    %v1972 = vunpack.c.l.b16 %v368
    %v1973 = vunpack.c.h.b16 %v368
    %v1974 = vunpack.c.l.b16 %v369
    %v1975 = vunpack.c.l.b16 %v370
    %v1976 = vunpack.c.h.b16 %v370
    %v1977 = vunpack.c.l.b16 %v371
    %v1978 = vunpack.c.l.b16 %v372
    %v1979 = vunpack.c.h.b16 %v372
    %v1980 = vunpack.c.l.b16 %v373
    %v1981 = vunpack.c.l.b16 %v374
    %v1982 = vunpack.c.h.b16 %v374
    %v1983 = vunpack.c.l.b16 %v375
    %v1984 = vunpack.c.l.b16 %v376
    %v1985 = vunpack.c.h.b16 %v376
    %v1986 = vunpack.c.l.b16 %v377
    %v1987 = vunpack.c.l.b16 %v378
    %v1988 = vunpack.c.h.b16 %v378
    %v1989 = vunpack.c.l.b16 %v379
    %v1990 = vunpack.c.l.b16 %v380
    %v1991 = vunpack.c.h.b16 %v380
    %v1992 = vunpack.c.l.b16 %v381
    %v1993 = vunpack.c.l.b16 %v382
    %v1994 = vunpack.c.h.b16 %v382
    %v1995 = vunpack.c.l.b16 %v383
    %v1996 = vunpack.c.l.b16 %v384
    %v1997 = vunpack.c.h.b16 %v384
    %v1998 = vunpack.c.l.b16 %v385
    %v1999 = vunpack.c.l.b16 %v386
    %v2000 = vunpack.c.h.b16 %v386
    %v2001 = vunpack.c.l.b16 %v387
    %v2002 = vunpack.c.l.b16 %v388
    %v2003 = vunpack.c.h.b16 %v388
    %v2004 = vunpack.c.l.b16 %v389
    %v2005 = vunpack.c.l.b16 %v390
    %v2006 = vunpack.c.h.b16 %v390
    %v2007 = vunpack.c.l.b16 %v391
    %v2008 = vunpack.c.l.b16 %v392
    %v2009 = vunpack.c.h.b16 %v392
    %v2010 = vunpack.c.l.b16 %v393
    %v2011 = vunpack.c.l.b16 %v394
    %v2012 = vunpack.c.h.b16 %v394
    %v2013 = vunpack.c.l.b16 %v395
    %v2014 = vunpack.c.l.b16 %v396
    %v2015 = vunpack.c.h.b16 %v396
    %v2016 = vunpack.c.l.b16 %v397
    %v2017 = vunpack.c.l.b16 %v398
    %v2018 = vunpack.c.h.b16 %v398
    %v2019 = vunpack.c.l.b16 %v399
    %v2020 = vunpack.c.l.b16 %v400
    %v2021 = vunpack.c.h.b16 %v400
    %v2022 = vunpack.c.l.b16 %v401
    %v2023 = vunpack.c.l.b16 %v402
    %v2024 = vunpack.c.h.b16 %v402
    %v2025 = vunpack.c.l.b16 %v403
    %v2026 = vunpack.c.l.b16 %v404
    %v2027 = vunpack.c.h.b16 %v404
    %v2028 = vunpack.c.l.b16 %v405
    %v2029 = vunpack.c.l.b16 %v406
    %v2030 = vunpack.c.h.b16 %v406
    %v2031 = vunpack.c.l.b16 %v407
    %v2032 = vunpack.c.l.b16 %v408
    %v2033 = vunpack.c.h.b16 %v408
    %v2034 = vunpack.c.l.b16 %v409
    %v2035 = vunpack.c.l.b16 %v410
    %v2036 = vunpack.c.h.b16 %v410
    %v2037 = vunpack.c.l.b16 %v411
    %v2038 = vunpack.c.l.b16 %v412
    %v2039 = vunpack.c.h.b16 %v412
    %v2040 = vunpack.c.l.b16 %v413
    %v2041 = vunpack.c.l.b16 %v414
    %v2042 = vunpack.c.h.b16 %v414
    %v2043 = vunpack.c.l.b16 %v415
    %v2044 = vunpack.c.l.b16 %v416
    %v2045 = vunpack.c.h.b16 %v416
    %v2046 = vunpack.c.l.b16 %v417
    %v2047 = vunpack.c.l.b16 %v418
    %v2048 = vunpack.c.h.b16 %v418
    %v2049 = vunpack.c.l.b16 %v419
    %v2050 = vunpack.c.l.b16 %v420
    %v2051 = vunpack.c.h.b16 %v420
    %v2052 = vunpack.c.l.b16 %v421
    %v2053 = vunpack.c.l.b16 %v422
    %v2054 = vunpack.c.h.b16 %v422
    %v2055 = vunpack.c.l.b16 %v423
    %v2056 = vunpack.c.l.b16 %v424
    %v2057 = vunpack.c.h.b16 %v424
    %v2058 = vunpack.c.l.b16 %v425
    %v2059 = vunpack.c.l.b16 %v426
    %v2060 = vunpack.c.h.b16 %v426
    %v2061 = vunpack.c.l.b16 %v427
    %v2062 = vunpack.c.l.b16 %v428
    %v2063 = vunpack.c.h.b16 %v428
    %v2064 = vunpack.c.l.b16 %v429
    %v2065 = vunpack.c.l.b16 %v430
    %v2066 = vunpack.c.h.b16 %v430
    %v2067 = vunpack.c.l.b16 %v431
    %v2068 = vunpack.c.l.b16 %v432
    %v2069 = vunpack.c.h.b16 %v432
    %v2070 = vunpack.c.l.b16 %v433
    %v2071 = vunpack.c.l.b16 %v434
    %v2072 = vunpack.c.h.b16 %v434
    %v2073 = vunpack.c.l.b16 %v435
    %v2074 = vunpack.c.l.b16 %v436
    %v2075 = vunpack.c.h.b16 %v436
    %v2076 = vunpack.c.l.b16 %v437
    %v2077 = vunpack.c.l.b16 %v438
    %v2078 = vunpack.c.h.b16 %v438
    %v2079 = vunpack.c.l.b16 %v439
    %v2080 = vunpack.c.l.b16 %v440
    %v2081 = vunpack.c.h.b16 %v440
    %v2082 = vunpack.c.l.b16 %v441
    %v2083 = vunpack.c.l.b16 %v442
    %v2084 = vunpack.c.h.b16 %v442
    %v2085 = vunpack.c.l.b16 %v443
    %v2086 = vunpack.c.l.b16 %v444
    %v2087 = vunpack.c.h.b16 %v444
    %v2088 = vunpack.c.l.b16 %v445
    %v2089 = vunpack.c.l.b16 %v446
    %v2090 = vunpack.c.h.b16 %v446
    %v2091 = vunpack.c.l.b16 %v447
    %v2092 = vunpack.c.l.b16 %v448
    %v2093 = vunpack.c.h.b16 %v448
    %v2094 = vunpack.c.l.b16 %v449
    %v2095 = vunpack.c.l.b16 %v450
    %v2096 = vunpack.c.h.b16 %v450
    %v2097 = vunpack.c.l.b16 %v451
    %v2098 = vunpack.c.l.b16 %v452
    %v2099 = vunpack.c.h.b16 %v452
    %v2100 = vunpack.c.l.b16 %v453
    %v2101 = vunpack.c.l.b16 %v454
    %v2102 = vunpack.c.h.b16 %v454
    %v2103 = vunpack.c.l.b16 %v455
    %v2104 = vunpack.c.l.b16 %v456
    %v2105 = vunpack.c.h.b16 %v456
    %v2106 = vunpack.c.l.b16 %v457
    %v2107 = vunpack.c.l.b16 %v458
    %v2108 = vunpack.c.h.b16 %v458
    %v2109 = vunpack.c.l.b16 %v459
    %v2110 = vunpack.c.l.b16 %v460
    %v2111 = vunpack.c.h.b16 %v460
    %v2112 = vunpack.c.l.b16 %v461
    %v2113 = vunpack.c.l.b16 %v462
    %v2114 = vunpack.c.h.b16 %v462
    %v2115 = vunpack.c.l.b16 %v463
    %v2116 = vunpack.c.l.b16 %v464
    %v2117 = vunpack.c.h.b16 %v464
    %v2118 = vunpack.c.l.b16 %v465
    %v2119 = vunpack.c.l.b16 %v466
    %v2120 = vunpack.c.h.b16 %v466
    %v2121 = vunpack.c.l.b16 %v467
    %v2122 = vunpack.c.l.b16 %v468
    %v2123 = vunpack.c.h.b16 %v468
    %v2124 = vunpack.c.l.b16 %v469
    %v2125 = vunpack.c.l.b16 %v470
    %v2126 = vunpack.c.h.b16 %v470
    %v2127 = vunpack.c.l.b16 %v471
    %v2128 = vunpack.c.l.b16 %v472
    %v2129 = vunpack.c.h.b16 %v472
    %v2130 = vunpack.c.l.b16 %v473
    %v2131 = vunpack.c.l.b16 %v474
    %v2132 = vunpack.c.h.b16 %v474
    %v2133 = vunpack.c.l.b16 %v475
    %v2134 = vunpack.c.l.b16 %v476
    %v2135 = vunpack.c.h.b16 %v476
    %v2136 = vunpack.c.l.b16 %v477
    %v2137 = vunpack.c.l.b16 %v478
    %v2138 = vunpack.c.h.b16 %v478
    %v2139 = vunpack.c.l.b16 %v479
    %v2140 = vunpack.c.l.b16 %v480
    %v2141 = vunpack.c.h.b16 %v480
    %v2142 = vunpack.c.l.b16 %v481
    %v2143 = vunpack.c.l.b16 %v482
    %v2144 = vunpack.c.h.b16 %v482
    %v2145 = vunpack.c.l.b16 %v483
    %v2146 = vunpack.c.l.b16 %v484
    %v2147 = vunpack.c.h.b16 %v484
    %v2148 = vunpack.c.l.b16 %v485
    %v2149 = vunpack.c.l.b16 %v486
    %v2150 = vunpack.c.h.b16 %v486
    %v2151 = vunpack.c.l.b16 %v487
    %v2152 = vunpack.c.l.b16 %v488
    %v2153 = vunpack.c.h.b16 %v488
    %v2154 = vunpack.c.l.b16 %v489
    %v2155 = vunpack.c.l.b16 %v490
    %v2156 = vunpack.c.h.b16 %v490
    %v2157 = vunpack.c.l.b16 %v491
    %v2158 = vunpack.c.l.b16 %v492
    %v2159 = vunpack.c.h.b16 %v492
    %v2160 = vunpack.c.l.b16 %v493
    %v2161 = vunpack.c.l.b16 %v494
    %v2162 = vunpack.c.h.b16 %v494
    %v2163 = vunpack.c.l.b16 %v495
    %v2164 = vunpack.c.l.b16 %v496
    %v2165 = vunpack.c.h.b16 %v496
    %v2166 = vunpack.c.l.b16 %v497
    %v2167 = vunpack.c.l.b16 %v498
    %v2168 = vunpack.c.h.b16 %v498
    %v2169 = vunpack.c.l.b16 %v499
    %v2170 = vunpack.c.l.b16 %v500
    %v2171 = vunpack.c.h.b16 %v500
    %v2172 = vunpack.c.l.b16 %v501
    %v2173 = vunpack.c.l.b16 %v502
    %v2174 = vunpack.c.h.b16 %v502
    %v2175 = vunpack.c.l.b16 %v503
    %v2176 = vunpack.c.l.b16 %v504
    %v2177 = vunpack.c.h.b16 %v504
    %v2178 = vunpack.c.l.b16 %v505
    %v2179 = vunpack.c.l.b16 %v506
    %v2180 = vunpack.c.h.b16 %v506
    %v2181 = vunpack.c.l.b16 %v507
    %v2182 = vunpack.c.l.b16 %v508
    %v2183 = vunpack.c.h.b16 %v508
    %v2184 = vunpack.c.l.b16 %v509
    %v2185 = vunpack.c.l.b16 %v510
    %v2186 = vunpack.c.h.b16 %v510
    %v2187 = vunpack.c.l.b16 %v511
    %v2188 = vunpack.c.l.b16 %v512
    %v2189 = vunpack.c.h.b16 %v512
    %v2190 = vunpack.c.l.b16 %v513
    %v2191 = vunpack.c.l.b16 %v514
    %v2192 = vunpack.c.h.b16 %v514
    %v2193 = vunpack.c.l.b16 %v515
    %v2194 = vunpack.c.l.b16 %v516
    %v2195 = vunpack.c.h.b16 %v516
    %v2196 = vunpack.c.l.b16 %v517
    %v2197 = vunpack.c.l.b16 %v518
    %v2198 = vunpack.c.h.b16 %v518
    %v2199 = vunpack.c.l.b16 %v519
    %v2200 = vunpack.c.l.b16 %v520
    %v2201 = vunpack.c.h.b16 %v520
    %v2202 = vunpack.c.l.b16 %v521
    %v2203 = vunpack.c.l.b16 %v522
    %v2204 = vunpack.c.h.b16 %v522
    %v2205 = vunpack.c.l.b16 %v523
    %v2206 = vunpack.c.l.b16 %v524
    %v2207 = vunpack.c.h.b16 %v524
    %v2208 = vunpack.c.l.b16 %v525
    %v2209 = vunpack.c.l.b16 %v526
    %v2210 = vunpack.c.h.b16 %v526
    %v2211 = vunpack.c.l.b16 %v527
    %v2212 = vunpack.c.l.b16 %v528
    %v2213 = vunpack.c.h.b16 %v528
    %v2214 = vunpack.c.l.b16 %v529
    %v2215 = vunpack.c.l.b16 %v530
    %v2216 = vunpack.c.h.b16 %v530
    %v2217 = vunpack.c.l.b16 %v531
    %v2218 = vunpack.c.l.b16 %v532
    %v2219 = vunpack.c.h.b16 %v532
    %v2220 = vunpack.c.l.b16 %v533
    %v2221 = vunpack.c.l.b16 %v534
    %v2222 = vunpack.c.h.b16 %v534
    %v2223 = vunpack.c.l.b16 %v535
    %v2224 = vunpack.c.l.b16 %v536
    %v2225 = vunpack.c.h.b16 %v536
    %v2226 = vunpack.c.l.b16 %v537
    %v2227 = vunpack.c.l.b16 %v538
    %v2228 = vunpack.c.h.b16 %v538
    %v2229 = vunpack.c.l.b16 %v539
    %v2230 = vunpack.c.l.b16 %v540
    %v2231 = vunpack.c.h.b16 %v540
    %v2232 = vunpack.c.l.b16 %v541
    %v2233 = vunpack.c.l.b16 %v542
    %v2234 = vunpack.c.h.b16 %v542
    %v2235 = vunpack.c.l.b16 %v543
    %v2236 = vunpack.c.l.b16 %v544
    %v2237 = vunpack.c.h.b16 %v544
    %v2238 = vunpack.c.l.b16 %v545
    %v2239 = vunpack.c.l.b16 %v546
    %v2240 = vunpack.c.h.b16 %v546
    %v2241 = vunpack.c.l.b16 %v547
    %v2242 = vunpack.c.l.b16 %v548
    %v2243 = vunpack.c.h.b16 %v548
    %v2244 = vunpack.c.l.b16 %v549
    %v2245 = vunpack.c.l.b16 %v550
    %v2246 = vunpack.c.h.b16 %v550
    %v2247 = vunpack.c.l.b16 %v551
    %v2248 = vunpack.c.l.b16 %v552
    %v2249 = vunpack.c.h.b16 %v552
    %v2250 = vunpack.c.l.b16 %v553
    %v2251 = vunpack.c.l.b16 %v554
    %v2252 = vunpack.c.h.b16 %v554
    %v2253 = vunpack.c.l.b16 %v555
    %v2254 = vunpack.c.l.b16 %v556
    %v2255 = vunpack.c.h.b16 %v556
    %v2256 = vunpack.c.l.b16 %v557
    %v2257 = vunpack.c.l.b16 %v558
    %v2258 = vunpack.c.h.b16 %v558
    %v2259 = vunpack.c.l.b16 %v559
    %v2260 = vunpack.c.l.b16 %v560
    %v2261 = vunpack.c.h.b16 %v560
    %v2262 = vunpack.c.l.b16 %v561
    %v2263 = vunpack.c.l.b16 %v562
    %v2264 = vunpack.c.h.b16 %v562
    %v2265 = vunpack.c.l.b16 %v563
    %v2266 = vunpack.c.l.b16 %v564
    %v2267 = vunpack.c.h.b16 %v564
    %v2268 = vunpack.c.l.b16 %v565
    %v2269 = vunpack.c.l.b16 %v566
    %v2270 = vunpack.c.h.b16 %v566
    %v2271 = vunpack.c.l.b16 %v567
    %v2272 = vunpack.c.l.b16 %v568
    %v2273 = vunpack.c.h.b16 %v568
    %v2274 = vunpack.c.l.b16 %v569
    %v2275 = vunpack.c.l.b16 %v570
    %v2276 = vunpack.c.h.b16 %v570
    %v2277 = vunpack.c.l.b16 %v571
    %v2278 = vunpack.c.l.b16 %v572
    %v2279 = vunpack.c.h.b16 %v572
    %v2280 = vunpack.c.l.b16 %v573
    %v2281 = vunpack.c.l.b16 %v574
    %v2282 = vunpack.c.h.b16 %v574
    %v2283 = vunpack.c.l.b16 %v575
    %v2284 = vunpack.c.l.b16 %v576
    %v2285 = vunpack.c.h.b16 %v576
    %v2286 = vunpack.c.l.b16 %v577
    %v2287 = vunpack.c.l.b16 %v578
    %v2288 = vunpack.c.h.b16 %v578
    %v2289 = vunpack.c.l.b16 %v579
    %v2290 = vunpack.c.l.b16 %v580
    %v2291 = vunpack.c.h.b16 %v580
    %v2292 = vunpack.c.l.b16 %v581
    %v2293 = vunpack.c.l.b16 %v582
    %v2294 = vunpack.c.h.b16 %v582
    %v2295 = vunpack.c.l.b16 %v583
    %v2296 = vunpack.c.l.b16 %v584
    %v2297 = vunpack.c.h.b16 %v584
    %v2298 = vunpack.c.l.b16 %v585
    %v2299 = vunpack.c.l.b16 %v586
    %v2300 = vunpack.c.h.b16 %v586
    %v2301 = vunpack.c.l.b16 %v587
    %v2302 = vunpack.c.l.b16 %v588
    %v2303 = vunpack.c.h.b16 %v588
    %v2304 = vunpack.c.l.b16 %v589
    %v2305 = vunpack.c.l.b16 %v590
    %v2306 = vunpack.c.h.b16 %v590
    %v2307 = vunpack.c.l.b16 %v591
    %v2308 = vunpack.c.l.b16 %v592
    %v2309 = vunpack.c.h.b16 %v592
    %v2310 = vunpack.c.l.b16 %v593
    %v2311 = vunpack.c.l.b16 %v594
    %v2312 = vunpack.c.h.b16 %v594
    %v2313 = vunpack.c.l.b16 %v595
    %v2314 = vunpack.c.l.b16 %v596
    %v2315 = vunpack.c.h.b16 %v596
    %v2316 = vunpack.c.l.b16 %v597
    %v2317 = vunpack.c.l.b16 %v598
    %v2318 = vunpack.c.h.b16 %v598
    %v2319 = vunpack.c.l.b16 %v599
    %v2320 = vunpack.c.l.b16 %v600
    %v2321 = vunpack.c.h.b16 %v600
    %v2322 = vunpack.c.l.b16 %v601
    %v2323 = vunpack.c.l.b16 %v602
    %v2324 = vunpack.c.h.b16 %v602
    %v2325 = vunpack.c.l.b16 %v603
    %v2326 = vunpack.c.l.b16 %v604
    %v2327 = vunpack.c.h.b16 %v604
    %v2328 = vunpack.c.l.b16 %v605
    %v2329 = vunpack.c.l.b16 %v606
    %v2330 = vunpack.c.h.b16 %v606
    %v2331 = vunpack.c.l.b16 %v607
    %v2332 = vunpack.c.l.b16 %v608
    %v2333 = vunpack.c.h.b16 %v608
    %v2334 = vunpack.c.l.b16 %v609
    %v2335 = vunpack.c.l.b16 %v610
    %v2336 = vunpack.c.h.b16 %v610
    %v2337 = vunpack.c.l.b16 %v611
    %v2338 = vunpack.c.l.b16 %v612
    %v2339 = vunpack.c.h.b16 %v612
    %v2340 = vunpack.c.l.b16 %v613
    %v2341 = vunpack.c.l.b16 %v614
    %v2342 = vunpack.c.h.b16 %v614
    %v2343 = vunpack.c.l.b16 %v615
    %v2344 = vunpack.c.l.b16 %v616
    %v2345 = vunpack.c.h.b16 %v616
    %v2346 = vunpack.c.l.b16 %v617
    %v2347 = vunpack.c.l.b16 %v618
    %v2348 = vunpack.c.h.b16 %v618
    %v2349 = vunpack.c.l.b16 %v619
    %v2350 = vunpack.c.l.b16 %v620
    %v2351 = vunpack.c.h.b16 %v620
    %v2352 = vunpack.c.l.b16 %v621
    %v2353 = vunpack.c.l.b16 %v622
    %v2354 = vunpack.c.h.b16 %v622
    %v2355 = vunpack.c.l.b16 %v623
    %v2356 = vunpack.c.l.b16 %v624
    %v2357 = vunpack.c.h.b16 %v624
    %v2358 = vunpack.c.l.b16 %v625
    %v2359 = vunpack.c.l.b16 %v626
    %v2360 = vunpack.c.h.b16 %v626
    %v2361 = vunpack.c.l.b16 %v627
    %v2362 = vunpack.c.l.b16 %v628
    %v2363 = vunpack.c.h.b16 %v628
    %v2364 = vunpack.c.l.b16 %v629
    %v2365 = vunpack.c.l.b16 %v630
    %v2366 = vunpack.c.h.b16 %v630
    %v2367 = vunpack.c.l.b16 %v631
    %v2368 = vunpack.c.l.b16 %v632
    %v2369 = vunpack.c.h.b16 %v632
    %v2370 = vunpack.c.l.b16 %v633
    %v2371 = vunpack.c.l.b16 %v634
    %v2372 = vunpack.c.h.b16 %v634
    %v2373 = vunpack.c.l.b16 %v635
    %v2374 = vunpack.c.l.b16 %v636
    %v2375 = vunpack.c.h.b16 %v636
    %v2376 = vunpack.c.l.b16 %v637
    %v2377 = vunpack.c.l.b16 %v638
    %v2378 = vunpack.c.h.b16 %v638
    %v2379 = vunpack.c.l.b16 %v639
    %v2380 = vunpack.c.l.b16 %v640
    %v2381 = vunpack.c.h.b16 %v640
    %v2382 = vunpack.c.l.b16 %v641
    %v2383 = vunpack.c.l.b16 %v642
    %v2384 = vunpack.c.h.b16 %v642
    %v2385 = vunpack.c.l.b16 %v643
    %v2386 = vunpack.c.l.b16 %v644
    %v2387 = vunpack.c.h.b16 %v644
    %v2388 = vunpack.c.l.b16 %v645
    %v2389 = vunpack.c.l.b16 %v646
    %v2390 = vunpack.c.h.b16 %v646
    %v2391 = vunpack.c.l.b16 %v647
    %v2392 = vunpack.c.l.b16 %v648
    %v2393 = vunpack.c.h.b16 %v648
    %v2394 = vunpack.c.l.b16 %v649
    %v2395 = vunpack.c.l.b16 %v650
    %v2396 = vunpack.c.h.b16 %v650
    %v2397 = vunpack.c.l.b16 %v651
    %v2398 = vunpack.c.l.b16 %v652
    %v2399 = vunpack.c.h.b16 %v652
    %v2400 = vunpack.c.l.b16 %v653
    %v2401 = vunpack.c.l.b16 %v654
    %v2402 = vunpack.c.h.b16 %v654
    %v2403 = vunpack.c.l.b16 %v655
    %v2404 = vunpack.c.l.b16 %v656
    %v2405 = vunpack.c.h.b16 %v656
    %v2406 = vunpack.c.l.b16 %v657
    %v2407 = vunpack.c.l.b16 %v658
    %v2408 = vunpack.c.h.b16 %v658
    %v2409 = vunpack.c.l.b16 %v659
    %v2410 = vunpack.c.l.b16 %v660
    %v2411 = vunpack.c.h.b16 %v660
    %v2412 = vunpack.c.l.b16 %v661
    %v2413 = vunpack.c.l.b16 %v662
    %v2414 = vunpack.c.h.b16 %v662
    %v2415 = vunpack.c.l.b16 %v663
    %v2416 = vunpack.c.l.b16 %v664
    %v2417 = vunpack.c.h.b16 %v664
    %v2418 = vunpack.c.l.b16 %v665
    %v2419 = vunpack.c.l.b16 %v666
    %v2420 = vunpack.c.h.b16 %v666
    %v2421 = vunpack.c.l.b16 %v667
    %v2422 = vunpack.c.l.b16 %v668
    %v2423 = vunpack.c.h.b16 %v668
    %v2424 = vunpack.c.l.b16 %v669
    %v2425 = vunpack.c.l.b16 %v670
    %v2426 = vunpack.c.h.b16 %v670
    %v2427 = vunpack.c.l.b16 %v671
    %v2428 = vunpack.c.l.b16 %v672
    %v2429 = vunpack.c.h.b16 %v672
    %v2430 = vunpack.c.l.b16 %v673
    %v2431 = vunpack.c.l.b16 %v674
    %v2432 = vunpack.c.h.b16 %v674
    %v2433 = vunpack.c.l.b16 %v675
    %v2434 = vunpack.c.l.b16 %v676
    %v2435 = vunpack.c.h.b16 %v676
    %v2436 = vunpack.c.l.b16 %v677
    %v2437 = vunpack.c.l.b16 %v678
    %v2438 = vunpack.c.h.b16 %v678
    %v2439 = vunpack.c.l.b16 %v679
    %v2440 = vunpack.c.l.b16 %v680
    %v2441 = vunpack.c.h.b16 %v680
    %v2442 = vunpack.c.l.b16 %v681
    %v2443 = vunpack.c.l.b16 %v682
    %v2444 = vunpack.c.h.b16 %v682
    %v2445 = vunpack.c.l.b16 %v683
    %v2446 = vunpack.c.l.b16 %v684
    %v2447 = vunpack.c.h.b16 %v684
    %v2448 = vunpack.c.l.b16 %v685
    %v2449 = vunpack.c.l.b16 %v686
    %v2450 = vunpack.c.h.b16 %v686
    %v2451 = vunpack.c.l.b16 %v687
    %v2452 = vunpack.c.l.b16 %v688
    %v2453 = vunpack.c.h.b16 %v688
    %v2454 = vunpack.c.l.b16 %v689
    %v2455 = vunpack.c.l.b16 %v690
    %v2456 = vunpack.c.h.b16 %v690
    %v2457 = vunpack.c.l.b16 %v691
    %v2458 = vunpack.c.l.b16 %v692
    %v2459 = vunpack.c.h.b16 %v692
    %v2460 = vunpack.c.l.b16 %v693
    %v2461 = vunpack.c.l.b16 %v694
    %v2462 = vunpack.c.h.b16 %v694
    %v2463 = vunpack.c.l.b16 %v695
    %v2464 = vunpack.c.l.b16 %v696
    %v2465 = vunpack.c.h.b16 %v696
    %v2466 = vunpack.c.l.b16 %v697
    %v2467 = vunpack.c.l.b16 %v698
    %v2468 = vunpack.c.h.b16 %v698
    %v2469 = vunpack.c.l.b16 %v699
    %v2470 = vunpack.c.l.b16 %v700
    %v2471 = vunpack.c.h.b16 %v700
    %v2472 = vunpack.c.l.b16 %v701
    %v2473 = vunpack.c.l.b16 %v702
    %v2474 = vunpack.c.h.b16 %v702
    %v2475 = vunpack.c.l.b16 %v703
    %v2476 = vunpack.c.l.b16 %v704
    %v2477 = vunpack.c.h.b16 %v704
    %v2478 = vunpack.c.l.b16 %v705
    %v2479 = vunpack.c.l.b16 %v706
    %v2480 = vunpack.c.h.b16 %v706
    %v2481 = vunpack.c.l.b16 %v707
    %v2482 = vunpack.c.l.b16 %v708
    %v2483 = vunpack.c.h.b16 %v708
    %v2484 = vunpack.c.l.b16 %v709
    %v2485 = vunpack.c.l.b16 %v710
    %v2486 = vunpack.c.h.b16 %v710
    %v2487 = vunpack.c.l.b16 %v711
    %v2488 = vunpack.c.l.b16 %v712
    %v2489 = vunpack.c.h.b16 %v712
    %v2490 = vunpack.c.l.b16 %v713
    %v2491 = vunpack.c.l.b16 %v714
    %v2492 = vunpack.c.h.b16 %v714
    %v2493 = vunpack.c.l.b16 %v715
    %v2494 = vunpack.c.l.b16 %v716
    %v2495 = vunpack.c.h.b16 %v716
    %v2496 = vunpack.c.l.b16 %v717
    %v2497 = vunpack.c.l.b16 %v718
    %v2498 = vunpack.c.h.b16 %v718
    %v2499 = vunpack.c.l.b16 %v719
    %v2500 = vunpack.c.l.b16 %v720
    %v2501 = vunpack.c.h.b16 %v720
    %v2502 = vunpack.c.l.b16 %v721
    %v2503 = vunpack.c.l.b16 %v722
    %v2504 = vunpack.c.h.b16 %v722
    %v2505 = vunpack.c.l.b16 %v723
    %v2506 = vunpack.c.l.b16 %v724
    %v2507 = vunpack.c.h.b16 %v724
    %v2508 = vunpack.c.l.b16 %v725
    %v2509 = vunpack.c.l.b16 %v726
    %v2510 = vunpack.c.h.b16 %v726
    %v2511 = vunpack.c.l.b16 %v727
    %v2512 = vunpack.c.l.b16 %v728
    %v2513 = vunpack.c.h.b16 %v728
    %v2514 = vunpack.c.l.b16 %v729
    %v2515 = vunpack.c.l.b16 %v730
    %v2516 = vunpack.c.h.b16 %v730
    %v2517 = vunpack.c.l.b16 %v731
    %v2518 = vunpack.c.l.b16 %v732
    %v2519 = vunpack.c.h.b16 %v732
    %v2520 = vunpack.c.l.b16 %v733
    %v2521 = vunpack.c.l.b16 %v734
    %v2522 = vunpack.c.h.b16 %v734
    %v2523 = vunpack.c.l.b16 %v735
    %v2524 = vunpack.c.l.b16 %v736
    %v2525 = vunpack.c.h.b16 %v736
    %v2526 = vunpack.c.l.b16 %v737
    %v2527 = vunpack.c.l.b16 %v738
    %v2528 = vunpack.c.h.b16 %v738
    %v2529 = vunpack.c.l.b16 %v739
    %v2530 = vunpack.c.l.b16 %v740
    %v2531 = vunpack.c.h.b16 %v740
    %v2532 = vunpack.c.l.b16 %v741
    %v2533 = vunpack.c.l.b16 %v742
    %v2534 = vunpack.c.h.b16 %v742
    %v2535 = vunpack.c.l.b16 %v743
    %v2536 = vunpack.c.l.b16 %v744
    %v2537 = vunpack.c.h.b16 %v744
    %v2538 = vunpack.c.l.b16 %v745
    %v2539 = vunpack.c.l.b16 %v746
    %v2540 = vunpack.c.h.b16 %v746
    %v2541 = vunpack.c.l.b16 %v747
    %v2542 = vunpack.c.l.b16 %v748
    %v2543 = vunpack.c.h.b16 %v748
    %v2544 = vunpack.c.l.b16 %v749
    %v2545 = vunpack.c.l.b16 %v750
    %v2546 = vunpack.c.h.b16 %v750
    %v2547 = vunpack.c.l.b16 %v751
    %v2548 = vunpack.c.l.b16 %v752
    %v2549 = vunpack.c.h.b16 %v752
    %v2550 = vunpack.c.l.b16 %v753
    %v2551 = vunpack.c.l.b16 %v754
    %v2552 = vunpack.c.h.b16 %v754
    %v2553 = vunpack.c.l.b16 %v755
    %v2554 = vunpack.c.l.b16 %v756
    %v2555 = vunpack.c.h.b16 %v756
    %v2556 = vunpack.c.l.b16 %v757
    %v2557 = vunpack.c.l.b16 %v758
    %v2558 = vunpack.c.h.b16 %v758
    %v2559 = vunpack.c.l.b16 %v759
    %v2560 = vunpack.c.l.b16 %v760
    %v2561 = vunpack.c.h.b16 %v760
    %v2562 = vunpack.c.l.b16 %v761
    %v2563 = vunpack.c.l.b16 %v762
    %v2564 = vunpack.c.h.b16 %v762
    %v2565 = vunpack.c.l.b16 %v763
    %v2566 = vunpack.c.l.b16 %v764
    %v2567 = vunpack.c.h.b16 %v764
    %v2568 = vunpack.c.l.b16 %v765
    %v2569 = vunpack.c.l.b16 %v766
    %v2570 = vunpack.c.h.b16 %v766
    %v2571 = vunpack.c.l.b16 %v767
    %v2572 = vunpack.c.l.b16 %v768
    %v2573 = vunpack.c.h.b16 %v768
    %v2574 = vunpack.c.l.b16 %v769
    %v2575 = vunpack.c.l.b16 %v770
    %v2576 = vunpack.c.h.b16 %v770
    %v2577 = vunpack.c.l.b16 %v771
    %v2578 = vunpack.c.l.b16 %v772
    %v2579 = vunpack.c.h.b16 %v772
    %v2580 = vunpack.c.l.b16 %v773
    %v2581 = vunpack.c.l.b16 %v774
    %v2582 = vunpack.c.h.b16 %v774
    %v2583 = vunpack.c.l.b16 %v775
    %v2584 = vunpack.c.l.b16 %v776
    %v2585 = vunpack.c.h.b16 %v776
    %v2586 = vunpack.c.l.b16 %v777
    %v2587 = vunpack.c.l.b16 %v778
    %v2588 = vunpack.c.h.b16 %v778
    %v2589 = vunpack.c.l.b16 %v779
    %v2590 = vunpack.c.l.b16 %v780
    %v2591 = vunpack.c.h.b16 %v780
    %v2592 = vunpack.c.l.b16 %v781
    %v2593 = vunpack.c.l.b16 %v782
    %v2594 = vunpack.c.h.b16 %v782
    %v2595 = vunpack.c.l.b16 %v783
    %v2596 = vunpack.c.l.b16 %v784
    %v2597 = vunpack.c.h.b16 %v784
    %v2598 = vunpack.c.l.b16 %v785
    %v2599 = vunpack.c.l.b16 %v786
    %v2600 = vunpack.c.h.b16 %v786
    %v2601 = vunpack.c.l.b16 %v787
    %v2602 = vunpack.c.l.b16 %v788
    %v2603 = vunpack.c.h.b16 %v788
    %v2604 = vunpack.c.l.b16 %v789
    %v2605 = vunpack.c.l.b16 %v790
    %v2606 = vunpack.c.h.b16 %v790
    %v2607 = vunpack.c.l.b16 %v791
    %v2608 = vunpack.c.l.b16 %v792
    %v2609 = vunpack.c.h.b16 %v792
    %v2610 = vunpack.c.l.b16 %v793
    %v2611 = vunpack.c.l.b16 %v794
    %v2612 = vunpack.c.h.b16 %v794
    %v2613 = vunpack.c.l.b16 %v795
    %v2614 = vunpack.c.l.b16 %v796
    %v2615 = vunpack.c.h.b16 %v796
    %v2616 = vunpack.c.l.b16 %v797
    %v2617 = vunpack.c.l.b16 %v798
    %v2618 = vunpack.c.h.b16 %v798
    %v2619 = vunpack.c.l.b16 %v799
    %v2620 = vunpack.c.l.b16 %v800
    %v2621 = vunpack.c.h.b16 %v800
    %v2622 = vunpack.c.l.b16 %v801
    %v2623 = vunpack.c.l.b16 %v802
    %v2624 = vunpack.c.h.b16 %v802
    %v2625 = vunpack.c.l.b16 %v803
    %v2626 = vunpack.c.l.b16 %v804
    %v2627 = vunpack.c.h.b16 %v804
    %v2628 = vunpack.c.l.b16 %v805
    %v2629 = vunpack.c.l.b16 %v806
    %v2630 = vunpack.c.h.b16 %v806
    %v2631 = vunpack.c.l.b16 %v807
    %v2632 = vunpack.c.l.b16 %v808
    %v2633 = vunpack.c.h.b16 %v808
    %v2634 = vunpack.c.l.b16 %v809
    %v2635 = vunpack.c.l.b16 %v810
    %v2636 = vunpack.c.h.b16 %v810
    %v2637 = vunpack.c.l.b16 %v811
    %v2638 = vunpack.c.l.b16 %v812
    %v2639 = vunpack.c.h.b16 %v812
    %v2640 = vunpack.c.l.b16 %v813
    %v2641 = vunpack.c.l.b16 %v814
    %v2642 = vunpack.c.h.b16 %v814
    %v2643 = vunpack.c.l.b16 %v815
    %v2644 = vunpack.c.l.b16 %v816
    %v2645 = vunpack.c.h.b16 %v816
    %v2646 = vunpack.c.l.b16 %v817
    %v2647 = vunpack.c.l.b16 %v818
    %v2648 = vunpack.c.h.b16 %v818
    %v2649 = vunpack.c.l.b16 %v819
    %v2650 = vunpack.c.l.b16 %v820
    %v2651 = vunpack.c.h.b16 %v820
    %v2652 = vunpack.c.l.b16 %v821
    %v2653 = vunpack.c.l.b16 %v822
    %v2654 = vunpack.c.h.b16 %v822
    %v2655 = vunpack.c.l.b16 %v823
    %v2656 = vunpack.c.l.b16 %v824
    %v2657 = vunpack.c.h.b16 %v824
    %v2658 = vunpack.c.l.b16 %v825
    %v2659 = vunpack.c.l.b16 %v826
    %v2660 = vunpack.c.h.b16 %v826
    %v2661 = vunpack.c.l.b16 %v827
    %v2662 = vunpack.c.l.b16 %v828
    %v2663 = vunpack.c.h.b16 %v828
    %v2664 = vunpack.c.l.b16 %v829
    %v2665 = vunpack.c.l.b16 %v830
    %v2666 = vunpack.c.h.b16 %v830
    %v2667 = vunpack.c.l.b16 %v831
    %v2668 = vunpack.c.l.b16 %v832
    %v2669 = vunpack.c.h.b16 %v832
    %v2670 = vunpack.c.l.b16 %v833
    %v2671 = vunpack.c.l.b16 %v834
    %v2672 = vunpack.c.h.b16 %v834
    %v2673 = vunpack.c.l.b16 %v835
    %v2674 = vunpack.c.l.b16 %v836
    %v2675 = vunpack.c.h.b16 %v836
    %v2676 = vunpack.c.l.b16 %v837
    %v2677 = vunpack.c.l.b16 %v838
    %v2678 = vunpack.c.h.b16 %v838
    %v2679 = vunpack.c.l.b16 %v839
    %v2680 = vunpack.c.l.b16 %v840
    %v2681 = vunpack.c.h.b16 %v840
    %v2682 = vunpack.c.l.b16 %v841
    %v2683 = vunpack.c.l.b16 %v842
    %v2684 = vunpack.c.h.b16 %v842
    %v2685 = vunpack.c.l.b16 %v843
    %v2686 = vunpack.c.l.b16 %v844
    %v2687 = vunpack.c.h.b16 %v844
    %v2688 = vunpack.c.l.b16 %v845
    %v2689 = vunpack.c.l.b16 %v846
    %v2690 = vunpack.c.h.b16 %v846
    %v2691 = vunpack.c.l.b16 %v847
    %v2692 = vunpack.c.l.b16 %v848
    %v2693 = vunpack.c.h.b16 %v848
    %v2694 = vunpack.c.l.b16 %v849
    %v2695 = vunpack.c.l.b16 %v850
    %v2696 = vunpack.c.h.b16 %v850
    %v2697 = vunpack.c.l.b16 %v851
    %v2698 = vunpack.c.l.b16 %v852
    %v2699 = vunpack.c.h.b16 %v852
    %v2700 = vunpack.c.l.b16 %v853
    %v2701 = vunpack.c.l.b16 %v854
    %v2702 = vunpack.c.h.b16 %v854
    %v2703 = vunpack.c.l.b16 %v855
    %v2704 = vunpack.c.l.b16 %v856
    %v2705 = vunpack.c.h.b16 %v856
    %v2706 = vunpack.c.l.b16 %v857
    %v2707 = vunpack.c.l.b16 %v858
    %v2708 = vunpack.c.h.b16 %v858
    %v2709 = vunpack.c.l.b16 %v859
    %v2710 = vunpack.c.l.b16 %v860
    %v2711 = vunpack.c.h.b16 %v860
    %v2712 = vunpack.c.l.b16 %v861
    %v2713 = vunpack.c.l.b16 %v862
    %v2714 = vunpack.c.h.b16 %v862
    %v2715 = vunpack.c.l.b16 %v863
    %v2716 = vunpack.c.l.b16 %v864
    %v2717 = vunpack.c.h.b16 %v864
    %v2718 = vunpack.c.l.b16 %v865
    %v2719 = vunpack.c.l.b16 %v866
    %v2720 = vunpack.c.h.b16 %v866
    %v2721 = vunpack.c.l.b16 %v867
    %v2722 = vunpack.c.l.b16 %v868
    %v2723 = vunpack.c.h.b16 %v868
    %v2724 = vunpack.c.l.b16 %v869
    %v2725 = vunpack.c.l.b16 %v870
    %v2726 = vunpack.c.h.b16 %v870
    %v2727 = vunpack.c.l.b16 %v871
    %v2728 = vunpack.c.l.b16 %v872
    %v2729 = vunpack.c.h.b16 %v872
    %v2730 = vunpack.c.l.b16 %v873
    %v2731 = vunpack.c.l.b16 %v874
    %v2732 = vunpack.c.h.b16 %v874
    %v2733 = vunpack.c.l.b16 %v875
    %v2734 = vunpack.c.l.b16 %v876
    %v2735 = vunpack.c.h.b16 %v876
    %v2736 = vunpack.c.l.b16 %v877
    %v2737 = vunpack.c.l.b16 %v878
    %v2738 = vunpack.c.h.b16 %v878
    %v2739 = vunpack.c.l.b16 %v879
    %v2740 = vunpack.c.l.b16 %v880
    %v2741 = vunpack.c.h.b16 %v880
    %v2742 = vunpack.c.l.b16 %v881
    %v2743 = vunpack.c.l.b16 %v882
    %v2744 = vunpack.c.h.b16 %v882
    %v2745 = vunpack.c.l.b16 %v883
    %v2746 = vunpack.c.l.b16 %v884
    %v2747 = vunpack.c.h.b16 %v884
    %v2748 = vunpack.c.l.b16 %v885
    %v2749 = vunpack.c.l.b16 %v886
    %v2750 = vunpack.c.h.b16 %v886
    %v2751 = vunpack.c.l.b16 %v887
    %v2752 = vunpack.c.l.b16 %v888
    %v2753 = vunpack.c.h.b16 %v888
    %v2754 = vunpack.c.l.b16 %v889
    %v2755 = vunpack.c.l.b16 %v890
    %v2756 = vunpack.c.h.b16 %v890
    %v2757 = vunpack.c.l.b16 %v891
    %v2758 = vunpack.c.l.b16 %v892
    %v2759 = vunpack.c.h.b16 %v892
    %v2760 = vunpack.c.l.b16 %v893
    %v2761 = vunpack.c.l.b16 %v894
    %v2762 = vunpack.c.h.b16 %v894
    %v2763 = vunpack.c.l.b16 %v895
    %v2764 = vunpack.c.l.b16 %v896
    %v2765 = vunpack.c.h.b16 %v896
    %v2766 = vunpack.c.l.b16 %v897
    %v2767 = vunpack.c.l.b16 %v898
    %v2768 = vunpack.c.h.b16 %v898
    %v2769 = vunpack.c.l.b16 %v899
    %v2770 = vunpack.c.l.b16 %v900
    %v2771 = vunpack.c.h.b16 %v900
    %v2772 = vunpack.c.l.b16 %v901
    %v2773 = vunpack.c.l.b16 %v902
    %v2774 = vunpack.c.h.b16 %v902
    %v2775 = vunpack.c.l.b16 %v903
    %v2776 = vunpack.c.l.b16 %v904
    %v2777 = vunpack.c.h.b16 %v904
    %v2778 = vunpack.c.l.b16 %v905
    %v2779 = vunpack.c.l.b16 %v906
    %v2780 = vunpack.c.h.b16 %v906
    %v2781 = vunpack.c.l.b16 %v907
    %v2782 = vunpack.c.l.b16 %v908
    %v2783 = vunpack.c.h.b16 %v908
    %v2784 = vunpack.c.l.b16 %v909
    %v2785 = vunpack.c.l.b16 %v910
    %v2786 = vunpack.c.h.b16 %v910
    %v2787 = vunpack.c.l.b16 %v911
    %v2788 = vunpack.c.l.b16 %v912
    %v2789 = vunpack.c.h.b16 %v912
    %v2790 = vunpack.c.l.b16 %v913
    %v2791 = vunpack.c.l.b16 %v914
    %v2792 = vunpack.c.h.b16 %v914
    %v2793 = vunpack.c.l.b16 %v915
    %v2794 = vunpack.c.l.b16 %v916
    %v2795 = vunpack.c.h.b16 %v916
    %v2796 = vunpack.c.l.b16 %v917
    %v2797 = vunpack.c.l.b16 %v918
    %v2798 = vunpack.c.h.b16 %v918
    %v2799 = vunpack.c.l.b16 %v919
    %v2800 = vunpack.c.l.b16 %v920
    %v2801 = vunpack.c.h.b16 %v920
    %v2802 = vunpack.c.l.b16 %v921
    %v2803 = vunpack.c.l.b16 %v922
    %v2804 = vunpack.c.h.b16 %v922
    %v2805 = vunpack.c.l.b16 %v923
    %v2806 = vunpack.c.l.b16 %v924
    %v2807 = vunpack.c.h.b16 %v924
    %v2808 = vunpack.c.l.b16 %v925
    %v2809 = vunpack.c.l.b16 %v926
    %v2810 = vunpack.c.h.b16 %v926
    %v2811 = vunpack.c.l.b16 %v927
    %v2812 = vunpack.c.l.b16 %v928
    %v2813 = vunpack.c.h.b16 %v928
    %v2814 = vunpack.c.l.b16 %v929
    %v2815 = vunpack.c.l.b16 %v930
    %v2816 = vunpack.c.h.b16 %v930
    %v2817 = vunpack.c.l.b16 %v931
    %v2818 = vunpack.c.l.b16 %v932
    %v2819 = vunpack.c.h.b16 %v932
    %v2820 = vunpack.c.l.b16 %v933
    %v2821 = vunpack.c.l.b16 %v934
    %v2822 = vunpack.c.h.b16 %v934
    %v2823 = vunpack.c.l.b16 %v935
    %v2824 = vunpack.c.l.b16 %v936
    %v2825 = vunpack.c.h.b16 %v936
    %v2826 = vunpack.c.l.b16 %v937
    %v2827 = vunpack.c.l.b16 %v938
    %v2828 = vunpack.c.h.b16 %v938
    %v2829 = vunpack.c.l.b16 %v939
    %v2830 = vunpack.c.l.b16 %v940
    %v2831 = vunpack.c.h.b16 %v940
    %v2832 = vunpack.c.l.b16 %v941
    %v2833 = vunpack.c.l.b16 %v942
    %v2834 = vunpack.c.h.b16 %v942
    %v2835 = vunpack.c.l.b16 %v943
    %v2836 = vunpack.c.l.b16 %v944
    %v2837 = vunpack.c.h.b16 %v944
    %v2838 = vunpack.c.l.b16 %v945
    %v2839 = vunpack.c.l.b16 %v946
    %v2840 = vunpack.c.h.b16 %v946
    %v2841 = vunpack.c.l.b16 %v947
    %v2842 = vunpack.c.l.b16 %v948
    %v2843 = vunpack.c.h.b16 %v948
    %v2844 = vunpack.c.l.b16 %v949
    %v2845 = vunpack.c.l.b16 %v950
    %v2846 = vunpack.c.h.b16 %v950
    %v2847 = vunpack.c.l.b16 %v951
    %v2848 = vunpack.c.l.b16 %v952
    %v2849 = vunpack.c.h.b16 %v952
    %v2850 = vunpack.c.l.b16 %v953
    %v2851 = vunpack.c.l.b16 %v954
    %v2852 = vunpack.c.h.b16 %v954
    %v2853 = vunpack.c.l.b16 %v955
    %v2854 = vunpack.c.l.b16 %v956
    %v2855 = vunpack.c.h.b16 %v956
    %v2856 = vunpack.c.l.b16 %v957
    %v2857 = vunpack.c.l.b16 %v958
    %v2858 = vunpack.c.h.b16 %v958
    %v2859 = vunpack.c.l.b16 %v959
    %v2860 = vunpack.c.l.b16 %v960
    %v2861 = vunpack.c.h.b16 %v960
    %v2862 = vunpack.c.l.b16 %v961
    %v2863 = vunpack.c.l.b16 %v962
    %v2864 = vunpack.c.h.b16 %v962
    %v2865 = vunpack.c.l.b16 %v963
    %v2866 = vunpack.c.l.b16 %v964
    %v2867 = vunpack.c.h.b16 %v964
    %v2868 = vunpack.c.l.b16 %v965
    %v2869 = vunpack.c.l.b16 %v966
    %v2870 = vunpack.c.h.b16 %v966
    %v2871 = vunpack.c.l.b16 %v967
    %v2872 = vunpack.c.l.b16 %v968
    %v2873 = vunpack.c.h.b16 %v968
    %v2874 = vunpack.c.l.b16 %v969
    %v2875 = vunpack.c.l.b16 %v970
    %v2876 = vunpack.c.h.b16 %v970
    %v2877 = vunpack.c.l.b16 %v971
    %v2878 = vunpack.c.l.b16 %v972
    %v2879 = vunpack.c.h.b16 %v972
    %v2880 = vunpack.c.l.b16 %v973
    %v2881 = vunpack.c.l.b16 %v974
    %v2882 = vunpack.c.h.b16 %v974
    %v2883 = vunpack.c.l.b16 %v975
    %v2884 = vunpack.c.l.b16 %v976
    %v2885 = vunpack.c.h.b16 %v976
    %v2886 = vunpack.c.l.b16 %v977
    %v2887 = vunpack.c.l.b16 %v978
    %v2888 = vunpack.c.h.b16 %v978
    %v2889 = vunpack.c.l.b16 %v979
    %v2890 = vunpack.c.l.b16 %v980
    %v2891 = vunpack.c.h.b16 %v980
    %v2892 = vunpack.c.l.b16 %v981
    %v2893 = vunpack.c.l.b16 %v982
    %v2894 = vunpack.c.h.b16 %v982
    %v2895 = vunpack.c.l.b16 %v983
    %v2896 = vunpack.c.l.b16 %v984
    %v2897 = vunpack.c.h.b16 %v984
    %v2898 = vunpack.c.l.b16 %v985
    %v2899 = vunpack.c.l.b16 %v986
    %v2900 = vunpack.c.h.b16 %v986
    %v2901 = vunpack.c.l.b16 %v987
    %v2902 = vunpack.c.l.b16 %v988
    %v2903 = vunpack.c.h.b16 %v988
    %v2904 = vunpack.c.l.b16 %v989
    %v2905 = vunpack.c.l.b16 %v990
    %v2906 = vunpack.c.h.b16 %v990
    %v2907 = vunpack.c.l.b16 %v991
    %v2908 = vunpack.c.l.b16 %v992
    %v2909 = vunpack.c.h.b16 %v992
    %v2910 = vunpack.c.l.b16 %v993
    %v2911 = vunpack.c.l.b16 %v994
    %v2912 = vunpack.c.h.b16 %v994
    %v2913 = vunpack.c.l.b16 %v995
    %v2914 = vunpack.c.l.b16 %v996
    %v2915 = vunpack.c.h.b16 %v996
    %v2916 = vunpack.c.l.b16 %v997
    %v2917 = vunpack.c.l.b16 %v998
    %v2918 = vunpack.c.h.b16 %v998
    %v2919 = vunpack.c.l.b16 %v999
    %v2920 = vunpack.c.l.b16 %v1000
    %v2921 = vunpack.c.h.b16 %v1000
    %v2922 = vunpack.c.l.b16 %v1001
    %v2923 = vunpack.c.l.b16 %v1002
    %v2924 = vunpack.c.h.b16 %v1002
    %v2925 = vunpack.c.l.b16 %v1003
    %v2926 = vunpack.c.l.b16 %v1004
    %v2927 = vunpack.c.h.b16 %v1004
    %v2928 = vunpack.c.l.b16 %v1005
    %v2929 = vunpack.c.l.b16 %v1006
    %v2930 = vunpack.c.h.b16 %v1006
    %v2931 = vunpack.c.l.b16 %v1007
    %v2932 = vunpack.c.l.b16 %v1008
    %v2933 = vunpack.c.h.b16 %v1008
    %v2934 = vunpack.c.l.b16 %v1009
    %v2935 = vunpack.c.l.b16 %v1010
    %v2936 = vunpack.c.h.b16 %v1010
    %v2937 = vunpack.c.l.b16 %v1011
    %v2938 = vunpack.c.l.b16 %v1012
    %v2939 = vunpack.c.h.b16 %v1012
    %v2940 = vunpack.c.l.b16 %v1013
    %v2941 = vunpack.c.l.b16 %v1014
    %v2942 = vunpack.c.h.b16 %v1014
    %v2943 = vunpack.c.l.b16 %v1015
    %v2944 = vunpack.c.l.b16 %v1016
    %v2945 = vunpack.c.h.b16 %v1016
    %v2946 = vunpack.c.l.b16 %v1017
    %v2947 = vunpack.c.l.b16 %v1018
    %v2948 = vunpack.c.h.b16 %v1018
    %v2949 = vunpack.c.l.b16 %v1019
    %v2950 = vunpack.c.l.b16 %v1020
    %v2951 = vunpack.c.h.b16 %v1020
    %v2952 = vunpack.c.l.b16 %v1021
    %v2953 = vunpack.c.l.b16 %v1022
    %v2954 = vunpack.c.h.b16 %v1022
    %v2955 = vunpack.c.l.b16 %v1023
    %v2956 = vunpack.c.l.b16 %v1024
    %v2957 = vunpack.c.h.b16 %v1024
    %v2958 = vunpack.c.l.b16 %v1025
    %v2959 = vunpack.c.l.b16 %v1026
    %v2960 = vunpack.c.h.b16 %v1026
    %v2961 = vunpack.c.l.b16 %v1027
    %v2962 = vunpack.c.l.b16 %v1028
    %v2963 = vunpack.c.h.b16 %v1028
    %v2964 = vunpack.c.l.b16 %v1029
    %v2965 = vunpack.c.l.b16 %v1030
    %v2966 = vunpack.c.h.b16 %v1030
    %v2967 = vunpack.c.l.b16 %v1031
    %v2968 = vunpack.c.l.b16 %v1032
    %v2969 = vunpack.c.h.b16 %v1032
    %v2970 = vunpack.c.l.b16 %v1033
    %v2971 = vpack.c.b16 %v1822, %v1819
    %v2972 = vpack.c.b16 %v1823, %v1820
    %v2973 = vpack.c.b16 %v1824, %v1821
    %v2974 = vpack.c.b16 %v1828, %v1825
    %v2975 = vpack.c.b16 %v1829, %v1826
    %v2976 = vpack.c.b16 %v1830, %v1827
    %v2977 = vpack.c.b16 %v1834, %v1831
    %v2978 = vpack.c.b16 %v1835, %v1832
    %v2979 = vpack.c.b16 %v1836, %v1833
    %v2980 = vpack.c.b16 %v1840, %v1837
    %v2981 = vpack.c.b16 %v1841, %v1838
    %v2982 = vpack.c.b16 %v1842, %v1839
    %v2983 = vpack.c.b16 %v1846, %v1843
    %v2984 = vpack.c.b16 %v1847, %v1844
    %v2985 = vpack.c.b16 %v1848, %v1845
    %v2986 = vpack.c.b16 %v1852, %v1849
    %v2987 = vpack.c.b16 %v1853, %v1850
    %v2988 = vpack.c.b16 %v1854, %v1851
    %v2989 = vpack.c.b16 %v1858, %v1855
    %v2990 = vpack.c.b16 %v1859, %v1856
    %v2991 = vpack.c.b16 %v1860, %v1857
    %v2992 = vpack.c.b16 %v1864, %v1861
    %v2993 = vpack.c.b16 %v1865, %v1862
    %v2994 = vpack.c.b16 %v1866, %v1863
    %v2995 = vpack.c.b16 %v1870, %v1867
    %v2996 = vpack.c.b16 %v1871, %v1868
    %v2997 = vpack.c.b16 %v1872, %v1869
    %v2998 = vpack.c.b16 %v1876, %v1873
    %v2999 = vpack.c.b16 %v1877, %v1874
    %v3000 = vpack.c.b16 %v1878, %v1875
    %v3001 = vpack.c.b16 %v1882, %v1879
    %v3002 = vpack.c.b16 %v1883, %v1880
    %v3003 = vpack.c.b16 %v1884, %v1881
    %v3004 = vpack.c.b16 %v1888, %v1885
    %v3005 = vpack.c.b16 %v1889, %v1886
    %v3006 = vpack.c.b16 %v1890, %v1887
    %v3007 = vpack.c.b16 %v1894, %v1891
    %v3008 = vpack.c.b16 %v1895, %v1892
    %v3009 = vpack.c.b16 %v1896, %v1893
    %v3010 = vpack.c.b16 %v1900, %v1897
    %v3011 = vpack.c.b16 %v1901, %v1898
    %v3012 = vpack.c.b16 %v1902, %v1899
    %v3013 = vpack.c.b16 %v1906, %v1903
    %v3014 = vpack.c.b16 %v1907, %v1904
    %v3015 = vpack.c.b16 %v1908, %v1905
    %v3016 = vpack.c.b16 %v1912, %v1909
    %v3017 = vpack.c.b16 %v1913, %v1910
    %v3018 = vpack.c.b16 %v1914, %v1911
    %v3019 = vpack.c.b16 %v1918, %v1915
    %v3020 = vpack.c.b16 %v1919, %v1916
    %v3021 = vpack.c.b16 %v1920, %v1917
    %v3022 = vpack.c.b16 %v1924, %v1921
    %v3023 = vpack.c.b16 %v1925, %v1922
    %v3024 = vpack.c.b16 %v1926, %v1923
    %v3025 = vpack.c.b16 %v1930, %v1927
    %v3026 = vpack.c.b16 %v1931, %v1928
    %v3027 = vpack.c.b16 %v1932, %v1929
    %v3028 = vpack.c.b16 %v1936, %v1933
    %v3029 = vpack.c.b16 %v1937, %v1934
    %v3030 = vpack.c.b16 %v1938, %v1935
    %v3031 = vpack.c.b16 %v1942, %v1939
    %v3032 = vpack.c.b16 %v1943, %v1940
    %v3033 = vpack.c.b16 %v1944, %v1941
    %v3034 = vpack.c.b16 %v1948, %v1945
    %v3035 = vpack.c.b16 %v1949, %v1946
    %v3036 = vpack.c.b16 %v1950, %v1947
    %v3037 = vpack.c.b16 %v1954, %v1951
    %v3038 = vpack.c.b16 %v1955, %v1952
    %v3039 = vpack.c.b16 %v1956, %v1953
    %v3040 = vpack.c.b16 %v1960, %v1957
    %v3041 = vpack.c.b16 %v1961, %v1958
    %v3042 = vpack.c.b16 %v1962, %v1959
    %v3043 = vpack.c.b16 %v1966, %v1963
    %v3044 = vpack.c.b16 %v1967, %v1964
    %v3045 = vpack.c.b16 %v1968, %v1965
    %v3046 = vpack.c.b16 %v1972, %v1969
    %v3047 = vpack.c.b16 %v1973, %v1970
    %v3048 = vpack.c.b16 %v1974, %v1971
    %v3049 = vpack.c.b16 %v1978, %v1975
    %v3050 = vpack.c.b16 %v1979, %v1976
    %v3051 = vpack.c.b16 %v1980, %v1977
    %v3052 = vpack.c.b16 %v1984, %v1981
    %v3053 = vpack.c.b16 %v1985, %v1982
    %v3054 = vpack.c.b16 %v1986, %v1983
    %v3055 = vpack.c.b16 %v1990, %v1987
    %v3056 = vpack.c.b16 %v1991, %v1988
    %v3057 = vpack.c.b16 %v1992, %v1989
    %v3058 = vpack.c.b16 %v1996, %v1993
    %v3059 = vpack.c.b16 %v1997, %v1994
    %v3060 = vpack.c.b16 %v1998, %v1995
    %v3061 = vpack.c.b16 %v2002, %v1999
    %v3062 = vpack.c.b16 %v2003, %v2000
    %v3063 = vpack.c.b16 %v2004, %v2001
    %v3064 = vpack.c.b16 %v2008, %v2005
    %v3065 = vpack.c.b16 %v2009, %v2006
    %v3066 = vpack.c.b16 %v2010, %v2007
    %v3067 = vpack.c.b16 %v2014, %v2011
    %v3068 = vpack.c.b16 %v2015, %v2012
    %v3069 = vpack.c.b16 %v2016, %v2013
    %v3070 = vpack.c.b16 %v2020, %v2017
    %v3071 = vpack.c.b16 %v2021, %v2018
    %v3072 = vpack.c.b16 %v2022, %v2019
    %v3073 = vpack.c.b16 %v2026, %v2023
    %v3074 = vpack.c.b16 %v2027, %v2024
    %v3075 = vpack.c.b16 %v2028, %v2025
    %v3076 = vpack.c.b16 %v2032, %v2029
    %v3077 = vpack.c.b16 %v2033, %v2030
    %v3078 = vpack.c.b16 %v2034, %v2031
    %v3079 = vpack.c.b16 %v2038, %v2035
    %v3080 = vpack.c.b16 %v2039, %v2036
    %v3081 = vpack.c.b16 %v2040, %v2037
    %v3082 = vpack.c.b16 %v2044, %v2041
    %v3083 = vpack.c.b16 %v2045, %v2042
    %v3084 = vpack.c.b16 %v2046, %v2043
    %v3085 = vpack.c.b16 %v2050, %v2047
    %v3086 = vpack.c.b16 %v2051, %v2048
    %v3087 = vpack.c.b16 %v2052, %v2049
    %v3088 = vpack.c.b16 %v2056, %v2053
    %v3089 = vpack.c.b16 %v2057, %v2054
    %v3090 = vpack.c.b16 %v2058, %v2055
    %v3091 = vpack.c.b16 %v2062, %v2059
    %v3092 = vpack.c.b16 %v2063, %v2060
    %v3093 = vpack.c.b16 %v2064, %v2061
    %v3094 = vpack.c.b16 %v2068, %v2065
    %v3095 = vpack.c.b16 %v2069, %v2066
    %v3096 = vpack.c.b16 %v2070, %v2067
    %v3097 = vpack.c.b16 %v2074, %v2071
    %v3098 = vpack.c.b16 %v2075, %v2072
    %v3099 = vpack.c.b16 %v2076, %v2073
    %v3100 = vpack.c.b16 %v2080, %v2077
    %v3101 = vpack.c.b16 %v2081, %v2078
    %v3102 = vpack.c.b16 %v2082, %v2079
    %v3103 = vpack.c.b16 %v2086, %v2083
    %v3104 = vpack.c.b16 %v2087, %v2084
    %v3105 = vpack.c.b16 %v2088, %v2085
    %v3106 = vpack.c.b16 %v2092, %v2089
    %v3107 = vpack.c.b16 %v2093, %v2090
    %v3108 = vpack.c.b16 %v2094, %v2091
    %v3109 = vpack.c.b16 %v2098, %v2095
    %v3110 = vpack.c.b16 %v2099, %v2096
    %v3111 = vpack.c.b16 %v2100, %v2097
    %v3112 = vpack.c.b16 %v2104, %v2101
    %v3113 = vpack.c.b16 %v2105, %v2102
    %v3114 = vpack.c.b16 %v2106, %v2103
    %v3115 = vpack.c.b16 %v2110, %v2107
    %v3116 = vpack.c.b16 %v2111, %v2108
    %v3117 = vpack.c.b16 %v2112, %v2109
    %v3118 = vpack.c.b16 %v2116, %v2113
    %v3119 = vpack.c.b16 %v2117, %v2114
    %v3120 = vpack.c.b16 %v2118, %v2115
    %v3121 = vpack.c.b16 %v2122, %v2119
    %v3122 = vpack.c.b16 %v2123, %v2120
    %v3123 = vpack.c.b16 %v2124, %v2121
    %v3124 = vpack.c.b16 %v2128, %v2125
    %v3125 = vpack.c.b16 %v2129, %v2126
    %v3126 = vpack.c.b16 %v2130, %v2127
    %v3127 = vpack.c.b16 %v2134, %v2131
    %v3128 = vpack.c.b16 %v2135, %v2132
    %v3129 = vpack.c.b16 %v2136, %v2133
    %v3130 = vpack.c.b16 %v2140, %v2137
    %v3131 = vpack.c.b16 %v2141, %v2138
    %v3132 = vpack.c.b16 %v2142, %v2139
    %v3133 = vpack.c.b16 %v2146, %v2143
    %v3134 = vpack.c.b16 %v2147, %v2144
    %v3135 = vpack.c.b16 %v2148, %v2145
    %v3136 = vpack.c.b16 %v2152, %v2149
    %v3137 = vpack.c.b16 %v2153, %v2150
    %v3138 = vpack.c.b16 %v2154, %v2151
    %v3139 = vpack.c.b16 %v2158, %v2155
    %v3140 = vpack.c.b16 %v2159, %v2156
    %v3141 = vpack.c.b16 %v2160, %v2157
    %v3142 = vpack.c.b16 %v2164, %v2161
    %v3143 = vpack.c.b16 %v2165, %v2162
    %v3144 = vpack.c.b16 %v2166, %v2163
    %v3145 = vpack.c.b16 %v2170, %v2167
    %v3146 = vpack.c.b16 %v2171, %v2168
    %v3147 = vpack.c.b16 %v2172, %v2169
    %v3148 = vpack.c.b16 %v2176, %v2173
    %v3149 = vpack.c.b16 %v2177, %v2174
    %v3150 = vpack.c.b16 %v2178, %v2175
    %v3151 = vpack.c.b16 %v2182, %v2179
    %v3152 = vpack.c.b16 %v2183, %v2180
    %v3153 = vpack.c.b16 %v2184, %v2181
    %v3154 = vpack.c.b16 %v2188, %v2185
    %v3155 = vpack.c.b16 %v2189, %v2186
    %v3156 = vpack.c.b16 %v2190, %v2187
    %v3157 = vpack.c.b16 %v2194, %v2191
    %v3158 = vpack.c.b16 %v2195, %v2192
    %v3159 = vpack.c.b16 %v2196, %v2193
    %v3160 = vpack.c.b16 %v2200, %v2197
    %v3161 = vpack.c.b16 %v2201, %v2198
    %v3162 = vpack.c.b16 %v2202, %v2199
    %v3163 = vpack.c.b16 %v2206, %v2203
    %v3164 = vpack.c.b16 %v2207, %v2204
    %v3165 = vpack.c.b16 %v2208, %v2205
    %v3166 = vpack.c.b16 %v2212, %v2209
    %v3167 = vpack.c.b16 %v2213, %v2210
    %v3168 = vpack.c.b16 %v2214, %v2211
    %v3169 = vpack.c.b16 %v2218, %v2215
    %v3170 = vpack.c.b16 %v2219, %v2216
    %v3171 = vpack.c.b16 %v2220, %v2217
    %v3172 = vpack.c.b16 %v2224, %v2221
    %v3173 = vpack.c.b16 %v2225, %v2222
    %v3174 = vpack.c.b16 %v2226, %v2223
    %v3175 = vpack.c.b16 %v2230, %v2227
    %v3176 = vpack.c.b16 %v2231, %v2228
    %v3177 = vpack.c.b16 %v2232, %v2229
    %v3178 = vpack.c.b16 %v2236, %v2233
    %v3179 = vpack.c.b16 %v2237, %v2234
    %v3180 = vpack.c.b16 %v2238, %v2235
    %v3181 = vpack.c.b16 %v2242, %v2239
    %v3182 = vpack.c.b16 %v2243, %v2240
    %v3183 = vpack.c.b16 %v2244, %v2241
    %v3184 = vpack.c.b16 %v2248, %v2245
    %v3185 = vpack.c.b16 %v2249, %v2246
    %v3186 = vpack.c.b16 %v2250, %v2247
    %v3187 = vpack.c.b16 %v2254, %v2251
    %v3188 = vpack.c.b16 %v2255, %v2252
    %v3189 = vpack.c.b16 %v2256, %v2253
    %v3190 = vpack.c.b16 %v2260, %v2257
    %v3191 = vpack.c.b16 %v2261, %v2258
    %v3192 = vpack.c.b16 %v2262, %v2259
    %v3193 = vpack.c.b16 %v2266, %v2263
    %v3194 = vpack.c.b16 %v2267, %v2264
    %v3195 = vpack.c.b16 %v2268, %v2265
    %v3196 = vpack.c.b16 %v2272, %v2269
    %v3197 = vpack.c.b16 %v2273, %v2270
    %v3198 = vpack.c.b16 %v2274, %v2271
    %v3199 = vpack.c.b16 %v2278, %v2275
    %v3200 = vpack.c.b16 %v2279, %v2276
    %v3201 = vpack.c.b16 %v2280, %v2277
    %v3202 = vpack.c.b16 %v2284, %v2281
    %v3203 = vpack.c.b16 %v2285, %v2282
    %v3204 = vpack.c.b16 %v2286, %v2283
    %v3205 = vpack.c.b16 %v2290, %v2287
    %v3206 = vpack.c.b16 %v2291, %v2288
    %v3207 = vpack.c.b16 %v2292, %v2289
    %v3208 = vpack.c.b16 %v2296, %v2293
    %v3209 = vpack.c.b16 %v2297, %v2294
    %v3210 = vpack.c.b16 %v2298, %v2295
    %v3211 = vpack.c.b16 %v2302, %v2299
    %v3212 = vpack.c.b16 %v2303, %v2300
    %v3213 = vpack.c.b16 %v2304, %v2301
    %v3214 = vpack.c.b16 %v2308, %v2305
    %v3215 = vpack.c.b16 %v2309, %v2306
    %v3216 = vpack.c.b16 %v2310, %v2307
    %v3217 = vpack.c.b16 %v2314, %v2311
    %v3218 = vpack.c.b16 %v2315, %v2312
    %v3219 = vpack.c.b16 %v2316, %v2313
    %v3220 = vpack.c.b16 %v2320, %v2317
    %v3221 = vpack.c.b16 %v2321, %v2318
    %v3222 = vpack.c.b16 %v2322, %v2319
    %v3223 = vpack.c.b16 %v2326, %v2323
    %v3224 = vpack.c.b16 %v2327, %v2324
    %v3225 = vpack.c.b16 %v2328, %v2325
    %v3226 = vpack.c.b16 %v2332, %v2329
    %v3227 = vpack.c.b16 %v2333, %v2330
    %v3228 = vpack.c.b16 %v2334, %v2331
    %v3229 = vpack.c.b16 %v2338, %v2335
    %v3230 = vpack.c.b16 %v2339, %v2336
    %v3231 = vpack.c.b16 %v2340, %v2337
    %v3232 = vpack.c.b16 %v2344, %v2341
    %v3233 = vpack.c.b16 %v2345, %v2342
    %v3234 = vpack.c.b16 %v2346, %v2343
    %v3235 = vpack.c.b16 %v2350, %v2347
    %v3236 = vpack.c.b16 %v2351, %v2348
    %v3237 = vpack.c.b16 %v2352, %v2349
    %v3238 = vpack.c.b16 %v2356, %v2353
    %v3239 = vpack.c.b16 %v2357, %v2354
    %v3240 = vpack.c.b16 %v2358, %v2355
    %v3241 = vpack.c.b16 %v2362, %v2359
    %v3242 = vpack.c.b16 %v2363, %v2360
    %v3243 = vpack.c.b16 %v2364, %v2361
    %v3244 = vpack.c.b16 %v2368, %v2365
    %v3245 = vpack.c.b16 %v2369, %v2366
    %v3246 = vpack.c.b16 %v2370, %v2367
    %v3247 = vpack.c.b16 %v2374, %v2371
    %v3248 = vpack.c.b16 %v2375, %v2372
    %v3249 = vpack.c.b16 %v2376, %v2373
    %v3250 = vpack.c.b16 %v2380, %v2377
    %v3251 = vpack.c.b16 %v2381, %v2378
    %v3252 = vpack.c.b16 %v2382, %v2379
    %v3253 = vpack.c.b16 %v2386, %v2383
    %v3254 = vpack.c.b16 %v2387, %v2384
    %v3255 = vpack.c.b16 %v2388, %v2385
    %v3256 = vpack.c.b16 %v2392, %v2389
    %v3257 = vpack.c.b16 %v2393, %v2390
    %v3258 = vpack.c.b16 %v2394, %v2391
    %v3259 = vpack.c.b16 %v2398, %v2395
    %v3260 = vpack.c.b16 %v2399, %v2396
    %v3261 = vpack.c.b16 %v2400, %v2397
    %v3262 = vpack.c.b16 %v2404, %v2401
    %v3263 = vpack.c.b16 %v2405, %v2402
    %v3264 = vpack.c.b16 %v2406, %v2403
    %v3265 = vpack.c.b16 %v2410, %v2407
    %v3266 = vpack.c.b16 %v2411, %v2408
    %v3267 = vpack.c.b16 %v2412, %v2409
    %v3268 = vpack.c.b16 %v2416, %v2413
    %v3269 = vpack.c.b16 %v2417, %v2414
    %v3270 = vpack.c.b16 %v2418, %v2415
    %v3271 = vpack.c.b16 %v2422, %v2419
    %v3272 = vpack.c.b16 %v2423, %v2420
    %v3273 = vpack.c.b16 %v2424, %v2421
    %v3274 = vpack.c.b16 %v2428, %v2425
    %v3275 = vpack.c.b16 %v2429, %v2426
    %v3276 = vpack.c.b16 %v2430, %v2427
    %v3277 = vpack.c.b16 %v2434, %v2431
    %v3278 = vpack.c.b16 %v2435, %v2432
    %v3279 = vpack.c.b16 %v2436, %v2433
    %v3280 = vpack.c.b16 %v2440, %v2437
    %v3281 = vpack.c.b16 %v2441, %v2438
    %v3282 = vpack.c.b16 %v2442, %v2439
    %v3283 = vpack.c.b16 %v2446, %v2443
    %v3284 = vpack.c.b16 %v2447, %v2444
    %v3285 = vpack.c.b16 %v2448, %v2445
    %v3286 = vpack.c.b16 %v2452, %v2449
    %v3287 = vpack.c.b16 %v2453, %v2450
    %v3288 = vpack.c.b16 %v2454, %v2451
    %v3289 = vpack.c.b16 %v2458, %v2455
    %v3290 = vpack.c.b16 %v2459, %v2456
    %v3291 = vpack.c.b16 %v2460, %v2457
    %v3292 = vpack.c.b16 %v2464, %v2461
    %v3293 = vpack.c.b16 %v2465, %v2462
    %v3294 = vpack.c.b16 %v2466, %v2463
    %v3295 = vpack.c.b16 %v2470, %v2467
    %v3296 = vpack.c.b16 %v2471, %v2468
    %v3297 = vpack.c.b16 %v2472, %v2469
    %v3298 = vpack.c.b16 %v2476, %v2473
    %v3299 = vpack.c.b16 %v2477, %v2474
    %v3300 = vpack.c.b16 %v2478, %v2475
    %v3301 = vpack.c.b16 %v2482, %v2479
    %v3302 = vpack.c.b16 %v2483, %v2480
    %v3303 = vpack.c.b16 %v2484, %v2481
    %v3304 = vpack.c.b16 %v2488, %v2485
    %v3305 = vpack.c.b16 %v2489, %v2486
    %v3306 = vpack.c.b16 %v2490, %v2487
    %v3307 = vpack.c.b16 %v2494, %v2491
    %v3308 = vpack.c.b16 %v2495, %v2492
    %v3309 = vpack.c.b16 %v2496, %v2493
    %v3310 = vpack.c.b16 %v2500, %v2497
    %v3311 = vpack.c.b16 %v2501, %v2498
    %v3312 = vpack.c.b16 %v2502, %v2499
    %v3313 = vpack.c.b16 %v2506, %v2503
    %v3314 = vpack.c.b16 %v2507, %v2504
    %v3315 = vpack.c.b16 %v2508, %v2505
    %v3316 = vpack.c.b16 %v2512, %v2509
    %v3317 = vpack.c.b16 %v2513, %v2510
    %v3318 = vpack.c.b16 %v2514, %v2511
    %v3319 = vpack.c.b16 %v2518, %v2515
    %v3320 = vpack.c.b16 %v2519, %v2516
    %v3321 = vpack.c.b16 %v2520, %v2517
    %v3322 = vpack.c.b16 %v2524, %v2521
    %v3323 = vpack.c.b16 %v2525, %v2522
    %v3324 = vpack.c.b16 %v2526, %v2523
    %v3325 = vpack.c.b16 %v2530, %v2527
    %v3326 = vpack.c.b16 %v2531, %v2528
    %v3327 = vpack.c.b16 %v2532, %v2529
    %v3328 = vpack.c.b16 %v2536, %v2533
    %v3329 = vpack.c.b16 %v2537, %v2534
    %v3330 = vpack.c.b16 %v2538, %v2535
    %v3331 = vpack.c.b16 %v2542, %v2539
    %v3332 = vpack.c.b16 %v2543, %v2540
    %v3333 = vpack.c.b16 %v2544, %v2541
    %v3334 = vpack.c.b16 %v2548, %v2545
    %v3335 = vpack.c.b16 %v2549, %v2546
    %v3336 = vpack.c.b16 %v2550, %v2547
    %v3337 = vpack.c.b16 %v2554, %v2551
    %v3338 = vpack.c.b16 %v2555, %v2552
    %v3339 = vpack.c.b16 %v2556, %v2553
    %v3340 = vpack.c.b16 %v2560, %v2557
    %v3341 = vpack.c.b16 %v2561, %v2558
    %v3342 = vpack.c.b16 %v2562, %v2559
    %v3343 = vpack.c.b16 %v2566, %v2563
    %v3344 = vpack.c.b16 %v2567, %v2564
    %v3345 = vpack.c.b16 %v2568, %v2565
    %v3346 = vpack.c.b16 %v2572, %v2569
    %v3347 = vpack.c.b16 %v2573, %v2570
    %v3348 = vpack.c.b16 %v2574, %v2571
    %v3349 = vpack.c.b16 %v2578, %v2575
    %v3350 = vpack.c.b16 %v2579, %v2576
    %v3351 = vpack.c.b16 %v2580, %v2577
    %v3352 = vpack.c.b16 %v2584, %v2581
    %v3353 = vpack.c.b16 %v2585, %v2582
    %v3354 = vpack.c.b16 %v2586, %v2583
    %v3355 = vpack.c.b16 %v2590, %v2587
    %v3356 = vpack.c.b16 %v2591, %v2588
    %v3357 = vpack.c.b16 %v2592, %v2589
    %v3358 = vpack.c.b16 %v2596, %v2593
    %v3359 = vpack.c.b16 %v2597, %v2594
    %v3360 = vpack.c.b16 %v2598, %v2595
    %v3361 = vpack.c.b16 %v2602, %v2599
    %v3362 = vpack.c.b16 %v2603, %v2600
    %v3363 = vpack.c.b16 %v2604, %v2601
    %v3364 = vpack.c.b16 %v2608, %v2605
    %v3365 = vpack.c.b16 %v2609, %v2606
    %v3366 = vpack.c.b16 %v2610, %v2607
    %v3367 = vpack.c.b16 %v2614, %v2611
    %v3368 = vpack.c.b16 %v2615, %v2612
    %v3369 = vpack.c.b16 %v2616, %v2613
    %v3370 = vpack.c.b16 %v2620, %v2617
    %v3371 = vpack.c.b16 %v2621, %v2618
    %v3372 = vpack.c.b16 %v2622, %v2619
    %v3373 = vpack.c.b16 %v2626, %v2623
    %v3374 = vpack.c.b16 %v2627, %v2624
    %v3375 = vpack.c.b16 %v2628, %v2625
    %v3376 = vpack.c.b16 %v2632, %v2629
    %v3377 = vpack.c.b16 %v2633, %v2630
    %v3378 = vpack.c.b16 %v2634, %v2631
    %v3379 = vpack.c.b16 %v2638, %v2635
    %v3380 = vpack.c.b16 %v2639, %v2636
    %v3381 = vpack.c.b16 %v2640, %v2637
    %v3382 = vpack.c.b16 %v2644, %v2641
    %v3383 = vpack.c.b16 %v2645, %v2642
    %v3384 = vpack.c.b16 %v2646, %v2643
    %v3385 = vpack.c.b16 %v2650, %v2647
    %v3386 = vpack.c.b16 %v2651, %v2648
    %v3387 = vpack.c.b16 %v2652, %v2649
    %v3388 = vpack.c.b16 %v2656, %v2653
    %v3389 = vpack.c.b16 %v2657, %v2654
    %v3390 = vpack.c.b16 %v2658, %v2655
    %v3391 = vpack.c.b16 %v2662, %v2659
    %v3392 = vpack.c.b16 %v2663, %v2660
    %v3393 = vpack.c.b16 %v2664, %v2661
    %v3394 = vpack.c.b16 %v2668, %v2665
    %v3395 = vpack.c.b16 %v2669, %v2666
    %v3396 = vpack.c.b16 %v2670, %v2667
    %v3397 = vpack.c.b16 %v2674, %v2671
    %v3398 = vpack.c.b16 %v2675, %v2672
    %v3399 = vpack.c.b16 %v2676, %v2673
    %v3400 = vpack.c.b16 %v2680, %v2677
    %v3401 = vpack.c.b16 %v2681, %v2678
    %v3402 = vpack.c.b16 %v2682, %v2679
    %v3403 = vpack.c.b16 %v2686, %v2683
    %v3404 = vpack.c.b16 %v2687, %v2684
    %v3405 = vpack.c.b16 %v2688, %v2685
    %v3406 = vpack.c.b16 %v2692, %v2689
    %v3407 = vpack.c.b16 %v2693, %v2690
    %v3408 = vpack.c.b16 %v2694, %v2691
    %v3409 = vpack.c.b16 %v2698, %v2695
    %v3410 = vpack.c.b16 %v2699, %v2696
    %v3411 = vpack.c.b16 %v2700, %v2697
    %v3412 = vpack.c.b16 %v2704, %v2701
    %v3413 = vpack.c.b16 %v2705, %v2702
    %v3414 = vpack.c.b16 %v2706, %v2703
    %v3415 = vpack.c.b16 %v2710, %v2707
    %v3416 = vpack.c.b16 %v2711, %v2708
    %v3417 = vpack.c.b16 %v2712, %v2709
    %v3418 = vpack.c.b16 %v2716, %v2713
    %v3419 = vpack.c.b16 %v2717, %v2714
    %v3420 = vpack.c.b16 %v2718, %v2715
    %v3421 = vpack.c.b16 %v2722, %v2719
    %v3422 = vpack.c.b16 %v2723, %v2720
    %v3423 = vpack.c.b16 %v2724, %v2721
    %v3424 = vpack.c.b16 %v2728, %v2725
    %v3425 = vpack.c.b16 %v2729, %v2726
    %v3426 = vpack.c.b16 %v2730, %v2727
    %v3427 = vpack.c.b16 %v2734, %v2731
    %v3428 = vpack.c.b16 %v2735, %v2732
    %v3429 = vpack.c.b16 %v2736, %v2733
    %v3430 = vpack.c.b16 %v2740, %v2737
    %v3431 = vpack.c.b16 %v2741, %v2738
    %v3432 = vpack.c.b16 %v2742, %v2739
    %v3433 = vpack.c.b16 %v2746, %v2743
    %v3434 = vpack.c.b16 %v2747, %v2744
    %v3435 = vpack.c.b16 %v2748, %v2745
    %v3436 = vpack.c.b16 %v2752, %v2749
    %v3437 = vpack.c.b16 %v2753, %v2750
    %v3438 = vpack.c.b16 %v2754, %v2751
    %v3439 = vpack.c.b16 %v2758, %v2755
    %v3440 = vpack.c.b16 %v2759, %v2756
    %v3441 = vpack.c.b16 %v2760, %v2757
    %v3442 = vpack.c.b16 %v2764, %v2761
    %v3443 = vpack.c.b16 %v2765, %v2762
    %v3444 = vpack.c.b16 %v2766, %v2763
    %v3445 = vpack.c.b16 %v2770, %v2767
    %v3446 = vpack.c.b16 %v2771, %v2768
    %v3447 = vpack.c.b16 %v2772, %v2769
    %v3448 = vpack.c.b16 %v2776, %v2773
    %v3449 = vpack.c.b16 %v2777, %v2774
    %v3450 = vpack.c.b16 %v2778, %v2775
    %v3451 = vpack.c.b16 %v2782, %v2779
    %v3452 = vpack.c.b16 %v2783, %v2780
    %v3453 = vpack.c.b16 %v2784, %v2781
    %v3454 = vpack.c.b16 %v2788, %v2785
    %v3455 = vpack.c.b16 %v2789, %v2786
    %v3456 = vpack.c.b16 %v2790, %v2787
    %v3457 = vpack.c.b16 %v2794, %v2791
    %v3458 = vpack.c.b16 %v2795, %v2792
    %v3459 = vpack.c.b16 %v2796, %v2793
    %v3460 = vpack.c.b16 %v2800, %v2797
    %v3461 = vpack.c.b16 %v2801, %v2798
    %v3462 = vpack.c.b16 %v2802, %v2799
    %v3463 = vpack.c.b16 %v2806, %v2803
    %v3464 = vpack.c.b16 %v2807, %v2804
    %v3465 = vpack.c.b16 %v2808, %v2805
    %v3466 = vpack.c.b16 %v2812, %v2809
    %v3467 = vpack.c.b16 %v2813, %v2810
    %v3468 = vpack.c.b16 %v2814, %v2811
    %v3469 = vpack.c.b16 %v2818, %v2815
    %v3470 = vpack.c.b16 %v2819, %v2816
    %v3471 = vpack.c.b16 %v2820, %v2817
    %v3472 = vpack.c.b16 %v2824, %v2821
    %v3473 = vpack.c.b16 %v2825, %v2822
    %v3474 = vpack.c.b16 %v2826, %v2823
    %v3475 = vpack.c.b16 %v2830, %v2827
    %v3476 = vpack.c.b16 %v2831, %v2828
    %v3477 = vpack.c.b16 %v2832, %v2829
    %v3478 = vpack.c.b16 %v2836, %v2833
    %v3479 = vpack.c.b16 %v2837, %v2834
    %v3480 = vpack.c.b16 %v2838, %v2835
    %v3481 = vpack.c.b16 %v2842, %v2839
    %v3482 = vpack.c.b16 %v2843, %v2840
    %v3483 = vpack.c.b16 %v2844, %v2841
    %v3484 = vpack.c.b16 %v2848, %v2845
    %v3485 = vpack.c.b16 %v2849, %v2846
    %v3486 = vpack.c.b16 %v2850, %v2847
    %v3487 = vpack.c.b16 %v2854, %v2851
    %v3488 = vpack.c.b16 %v2855, %v2852
    %v3489 = vpack.c.b16 %v2856, %v2853
    %v3490 = vpack.c.b16 %v2860, %v2857
    %v3491 = vpack.c.b16 %v2861, %v2858
    %v3492 = vpack.c.b16 %v2862, %v2859
    %v3493 = vpack.c.b16 %v2866, %v2863
    %v3494 = vpack.c.b16 %v2867, %v2864
    %v3495 = vpack.c.b16 %v2868, %v2865
    %v3496 = vpack.c.b16 %v2872, %v2869
    %v3497 = vpack.c.b16 %v2873, %v2870
    %v3498 = vpack.c.b16 %v2874, %v2871
    %v3499 = vpack.c.b16 %v2878, %v2875
    %v3500 = vpack.c.b16 %v2879, %v2876
    %v3501 = vpack.c.b16 %v2880, %v2877
    %v3502 = vpack.c.b16 %v2884, %v2881
    %v3503 = vpack.c.b16 %v2885, %v2882
    %v3504 = vpack.c.b16 %v2886, %v2883
    %v3505 = vpack.c.b16 %v2890, %v2887
    %v3506 = vpack.c.b16 %v2891, %v2888
    %v3507 = vpack.c.b16 %v2892, %v2889
    %v3508 = vpack.c.b16 %v2896, %v2893
    %v3509 = vpack.c.b16 %v2897, %v2894
    %v3510 = vpack.c.b16 %v2898, %v2895
    %v3511 = vpack.c.b16 %v2902, %v2899
    %v3512 = vpack.c.b16 %v2903, %v2900
    %v3513 = vpack.c.b16 %v2904, %v2901
    %v3514 = vpack.c.b16 %v2908, %v2905
    %v3515 = vpack.c.b16 %v2909, %v2906
    %v3516 = vpack.c.b16 %v2910, %v2907
    %v3517 = vpack.c.b16 %v2914, %v2911
    %v3518 = vpack.c.b16 %v2915, %v2912
    %v3519 = vpack.c.b16 %v2916, %v2913
    %v3520 = vpack.c.b16 %v2920, %v2917
    %v3521 = vpack.c.b16 %v2921, %v2918
    %v3522 = vpack.c.b16 %v2922, %v2919
    %v3523 = vpack.c.b16 %v2926, %v2923
    %v3524 = vpack.c.b16 %v2927, %v2924
    %v3525 = vpack.c.b16 %v2928, %v2925
    %v3526 = vpack.c.b16 %v2932, %v2929
    %v3527 = vpack.c.b16 %v2933, %v2930
    %v3528 = vpack.c.b16 %v2934, %v2931
    %v3529 = vpack.c.b16 %v2938, %v2935
    %v3530 = vpack.c.b16 %v2939, %v2936
    %v3531 = vpack.c.b16 %v2940, %v2937
    %v3532 = vpack.c.b16 %v2944, %v2941
    %v3533 = vpack.c.b16 %v2945, %v2942
    %v3534 = vpack.c.b16 %v2946, %v2943
    %v3535 = vpack.c.b16 %v2950, %v2947
    %v3536 = vpack.c.b16 %v2951, %v2948
    %v3537 = vpack.c.b16 %v2952, %v2949
    %v3538 = vpack.c.b16 %v2956, %v2953
    %v3539 = vpack.c.b16 %v2957, %v2954
    %v3540 = vpack.c.b16 %v2958, %v2955
    %v3541 = vpack.c.b16 %v2962, %v2959
    %v3542 = vpack.c.b16 %v2963, %v2960
    %v3543 = vpack.c.b16 %v2964, %v2961
    %v3544 = vpack.c.b16 %v2968, %v2965
    %v3545 = vpack.c.b16 %v2969, %v2966
    %v3546 = vpack.c.b16 %v2970, %v2967
    %4123 = vmatprep.subr.bf16.mxu0 %v2993
    %4124 = vmatpush1.bf16.msra.mxu0 %v2992
    %4125 = vmatprep.subr.bf16.mxu0 %v2990
    %4126 = vmatpush1.bf16.msra.mxu0 %v2989
    %4127 = vmatprep.subr.bf16.mxu0 %v2987
    %4128 = vmatpush1.bf16.msra.mxu0 %v2986
    %4129 = vmatprep.subr.bf16.mxu0 %v2984
    %4130 = vmatpush1.bf16.msra.mxu0 %v2983
    %4131 = vmatprep.subr.bf16.mxu0 %v2981
    %4132 = vmatpush1.bf16.msra.mxu0 %v2980
    %4133 = vmatprep.subr.bf16.mxu0 %v2978
    %4134 = vmatpush1.bf16.msra.mxu0 %v2977
    %4135 = vmatprep.subr.bf16.mxu0 %v2975
    %4136 = vmatpush1.bf16.msra.mxu0 %v2974
    %4137 = vmatprep.subr.bf16.mxu0 %v2972
    %4138 = vmatpush1.bf16.msra.mxu0 %v2971
    %4139 = vmatprep.subr.bf16.mxu0 %v3017
    %4140 = vmatpush2.bf16.msra.mxu0 %v3016
    %4141 = vmatprep.subr.bf16.mxu0 %v3014
    %4142 = vmatpush2.bf16.msra.mxu0 %v3013
    %4143 = vmatprep.subr.bf16.mxu0 %v3011
    %4144 = vmatpush2.bf16.msra.mxu0 %v3010
    %4145 = vmatprep.subr.bf16.mxu0 %v3008
    %4146 = vmatpush2.bf16.msra.mxu0 %v3007
    %4147 = vmatprep.subr.bf16.mxu0 %v3005
    %4148 = vmatpush2.bf16.msra.mxu0 %v3004
    %4149 = vmatprep.subr.bf16.mxu0 %v3002
    %4150 = vmatpush2.bf16.msra.mxu0 %v3001
    %4151 = vmatprep.subr.bf16.mxu0 %v2999
    %4152 = vmatpush2.bf16.msra.mxu0 %v2998
    %4153 = vmatprep.subr.bf16.mxu0 %v2996
    %4154 = vmatpush2.bf16.msra.mxu0 %v2995
    %4155 = vmatprep.mubr.bf16.mxu0 %v243
    %4156 = vmatmul.mubr.bf16.gmra.mxu0 %v242
    %v4157 = vpop.f32.mrf.mxu0
    %v4158 = vadd.f32 %v1039, %v4157
    %v4159 = vpop.f32.mrf.mxu0
    %v4160 = vadd.f32 %v1043, %v4159
    %v4161 = vpop.f32.mrf.mxu0
    %v4162 = vpop.f32.mrf.mxu0
    %4163 = vdwg.mxu0
    %4164 = vmatprep.subr.bf16.mxu0 %v3041
    %4165 = vmatpush1.bf16.msra.mxu0 %v3040
    %4166 = vmatprep.subr.bf16.mxu0 %v3038
    %4167 = vmatpush1.bf16.msra.mxu0 %v3037
    %4168 = vmatprep.subr.bf16.mxu0 %v3035
    %4169 = vmatpush1.bf16.msra.mxu0 %v3034
    %4170 = vmatprep.subr.bf16.mxu0 %v3032
    %4171 = vmatpush1.bf16.msra.mxu0 %v3031
    %4172 = vmatprep.subr.bf16.mxu0 %v3029
    %4173 = vmatpush1.bf16.msra.mxu0 %v3028
    %4174 = vmatprep.subr.bf16.mxu0 %v3026
    %4175 = vmatpush1.bf16.msra.mxu0 %v3025
    %4176 = vmatprep.subr.bf16.mxu0 %v3023
    %4177 = vmatpush1.bf16.msra.mxu0 %v3022
    %4178 = vmatprep.subr.bf16.mxu0 %v3020
    %4179 = vmatpush1.bf16.msra.mxu0 %v3019
    %4180 = vmatprep.subr.bf16.mxu0 %v3065
    %4181 = vmatpush2.bf16.msra.mxu0 %v3064
    %4182 = vmatprep.subr.bf16.mxu0 %v3062
    %4183 = vmatpush2.bf16.msra.mxu0 %v3061
    %4184 = vmatprep.subr.bf16.mxu0 %v3059
    %4185 = vmatpush2.bf16.msra.mxu0 %v3058
    %4186 = vmatprep.subr.bf16.mxu0 %v3056
    %4187 = vmatpush2.bf16.msra.mxu0 %v3055
    %4188 = vmatprep.subr.bf16.mxu0 %v3053
    %4189 = vmatpush2.bf16.msra.mxu0 %v3052
    %4190 = vmatprep.subr.bf16.mxu0 %v3050
    %4191 = vmatpush2.bf16.msra.mxu0 %v3049
    %4192 = vmatprep.subr.bf16.mxu0 %v3047
    %4193 = vmatpush2.bf16.msra.mxu0 %v3046
    %4194 = vmatprep.subr.bf16.mxu0 %v3044
    %4195 = vmatpush2.bf16.msra.mxu0 %v3043
    %4196 = vmatprep.mubr.bf16.mxu0 %v245
    %4197 = vmatmul.mubr.bf16.gmra.mxu0 %v244
    %v4198 = vpop.f32.mrf.mxu0
    %v4199 = vadd.f32 %v4158, %v4198
    %v4200 = vpop.f32.mrf.mxu0
    %v4201 = vadd.f32 %v4160, %v4200
    %v4202 = vpop.f32.mrf.mxu0
    %v4203 = vpop.f32.mrf.mxu0
    %4204 = vdwg.mxu0
    %4205 = vmatprep.subr.bf16.mxu0 %v3089
    %4206 = vmatpush1.bf16.msra.mxu0 %v3088
    %4207 = vmatprep.subr.bf16.mxu0 %v3086
    %4208 = vmatpush1.bf16.msra.mxu0 %v3085
    %4209 = vmatprep.subr.bf16.mxu0 %v3083
    %4210 = vmatpush1.bf16.msra.mxu0 %v3082
    %4211 = vmatprep.subr.bf16.mxu0 %v3080
    %4212 = vmatpush1.bf16.msra.mxu0 %v3079
    %4213 = vmatprep.subr.bf16.mxu0 %v3077
    %4214 = vmatpush1.bf16.msra.mxu0 %v3076
    %4215 = vmatprep.subr.bf16.mxu0 %v3074
    %4216 = vmatpush1.bf16.msra.mxu0 %v3073
    %4217 = vmatprep.subr.bf16.mxu0 %v3071
    %4218 = vmatpush1.bf16.msra.mxu0 %v3070
    %4219 = vmatprep.subr.bf16.mxu0 %v3068
    %4220 = vmatpush1.bf16.msra.mxu0 %v3067
    %4221 = vmatprep.subr.bf16.mxu0 %v3113
    %4222 = vmatpush2.bf16.msra.mxu0 %v3112
    %4223 = vmatprep.subr.bf16.mxu0 %v3110
    %4224 = vmatpush2.bf16.msra.mxu0 %v3109
    %4225 = vmatprep.subr.bf16.mxu0 %v3107
    %4226 = vmatpush2.bf16.msra.mxu0 %v3106
    %4227 = vmatprep.subr.bf16.mxu0 %v3104
    %4228 = vmatpush2.bf16.msra.mxu0 %v3103
    %4229 = vmatprep.subr.bf16.mxu0 %v3101
    %4230 = vmatpush2.bf16.msra.mxu0 %v3100
    %4231 = vmatprep.subr.bf16.mxu0 %v3098
    %4232 = vmatpush2.bf16.msra.mxu0 %v3097
    %4233 = vmatprep.subr.bf16.mxu0 %v3095
    %4234 = vmatpush2.bf16.msra.mxu0 %v3094
    %4235 = vmatprep.subr.bf16.mxu0 %v3092
    %4236 = vmatpush2.bf16.msra.mxu0 %v3091
    %4237 = vmatprep.mubr.bf16.mxu0 %v247
    %4238 = vmatmul.mubr.bf16.gmra.mxu0 %v246
    %v4239 = vpop.f32.mrf.mxu0
    %v4240 = vadd.f32 %v4199, %v4239
    %v4241 = vpop.f32.mrf.mxu0
    %v4242 = vadd.f32 %v4201, %v4241
    %v4243 = vpop.f32.mrf.mxu0
    %v4244 = vpop.f32.mrf.mxu0
    %4245 = vdwg.mxu0
    %4246 = vmatprep.subr.bf16.mxu0 %v3137
    %4247 = vmatpush1.bf16.msra.mxu0 %v3136
    %4248 = vmatprep.subr.bf16.mxu0 %v3134
    %4249 = vmatpush1.bf16.msra.mxu0 %v3133
    %4250 = vmatprep.subr.bf16.mxu0 %v3131
    %4251 = vmatpush1.bf16.msra.mxu0 %v3130
    %4252 = vmatprep.subr.bf16.mxu0 %v3128
    %4253 = vmatpush1.bf16.msra.mxu0 %v3127
    %4254 = vmatprep.subr.bf16.mxu0 %v3125
    %4255 = vmatpush1.bf16.msra.mxu0 %v3124
    %4256 = vmatprep.subr.bf16.mxu0 %v3122
    %4257 = vmatpush1.bf16.msra.mxu0 %v3121
    %4258 = vmatprep.subr.bf16.mxu0 %v3119
    %4259 = vmatpush1.bf16.msra.mxu0 %v3118
    %4260 = vmatprep.subr.bf16.mxu0 %v3116
    %4261 = vmatpush1.bf16.msra.mxu0 %v3115
    %4262 = vmatprep.subr.bf16.mxu0 %v3161
    %4263 = vmatpush2.bf16.msra.mxu0 %v3160
    %4264 = vmatprep.subr.bf16.mxu0 %v3158
    %4265 = vmatpush2.bf16.msra.mxu0 %v3157
    %4266 = vmatprep.subr.bf16.mxu0 %v3155
    %4267 = vmatpush2.bf16.msra.mxu0 %v3154
    %4268 = vmatprep.subr.bf16.mxu0 %v3152
    %4269 = vmatpush2.bf16.msra.mxu0 %v3151
    %4270 = vmatprep.subr.bf16.mxu0 %v3149
    %4271 = vmatpush2.bf16.msra.mxu0 %v3148
    %4272 = vmatprep.subr.bf16.mxu0 %v3146
    %4273 = vmatpush2.bf16.msra.mxu0 %v3145
    %4274 = vmatprep.subr.bf16.mxu0 %v3143
    %4275 = vmatpush2.bf16.msra.mxu0 %v3142
    %4276 = vmatprep.subr.bf16.mxu0 %v3140
    %4277 = vmatpush2.bf16.msra.mxu0 %v3139
    %4278 = vmatprep.mubr.bf16.mxu0 %v249
    %4279 = vmatmul.mubr.bf16.gmra.mxu0 %v248
    %v4280 = vpop.f32.mrf.mxu0
    %v4281 = vadd.f32 %v4240, %v4280
    %v4282 = vpop.f32.mrf.mxu0
    %v4283 = vadd.f32 %v4242, %v4282
    %v4284 = vpop.f32.mrf.mxu0
    %v4285 = vpop.f32.mrf.mxu0
    %4286 = vdwg.mxu0
    %4287 = vmatprep.subr.bf16.mxu0 %v3185
    %4288 = vmatpush1.bf16.msra.mxu0 %v3184
    %4289 = vmatprep.subr.bf16.mxu0 %v3182
    %4290 = vmatpush1.bf16.msra.mxu0 %v3181
    %4291 = vmatprep.subr.bf16.mxu0 %v3179
    %4292 = vmatpush1.bf16.msra.mxu0 %v3178
    %4293 = vmatprep.subr.bf16.mxu0 %v3176
    %4294 = vmatpush1.bf16.msra.mxu0 %v3175
    %4295 = vmatprep.subr.bf16.mxu0 %v3173
    %4296 = vmatpush1.bf16.msra.mxu0 %v3172
    %4297 = vmatprep.subr.bf16.mxu0 %v3170
    %4298 = vmatpush1.bf16.msra.mxu0 %v3169
    %4299 = vmatprep.subr.bf16.mxu0 %v3167
    %4300 = vmatpush1.bf16.msra.mxu0 %v3166
    %4301 = vmatprep.subr.bf16.mxu0 %v3164
    %4302 = vmatpush1.bf16.msra.mxu0 %v3163
    %4303 = vmatprep.subr.bf16.mxu0 %v3209
    %4304 = vmatpush2.bf16.msra.mxu0 %v3208
    %4305 = vmatprep.subr.bf16.mxu0 %v3206
    %4306 = vmatpush2.bf16.msra.mxu0 %v3205
    %4307 = vmatprep.subr.bf16.mxu0 %v3203
    %4308 = vmatpush2.bf16.msra.mxu0 %v3202
    %4309 = vmatprep.subr.bf16.mxu0 %v3200
    %4310 = vmatpush2.bf16.msra.mxu0 %v3199
    %4311 = vmatprep.subr.bf16.mxu0 %v3197
    %4312 = vmatpush2.bf16.msra.mxu0 %v3196
    %4313 = vmatprep.subr.bf16.mxu0 %v3194
    %4314 = vmatpush2.bf16.msra.mxu0 %v3193
    %4315 = vmatprep.subr.bf16.mxu0 %v3191
    %4316 = vmatpush2.bf16.msra.mxu0 %v3190
    %4317 = vmatprep.subr.bf16.mxu0 %v3188
    %4318 = vmatpush2.bf16.msra.mxu0 %v3187
    %4319 = vmatprep.mubr.bf16.mxu0 %v251
    %4320 = vmatmul.mubr.bf16.gmra.mxu0 %v250
    %v4321 = vpop.f32.mrf.mxu0
    %v4322 = vadd.f32 %v4281, %v4321
    %v4323 = vpop.f32.mrf.mxu0
    %v4324 = vadd.f32 %v4283, %v4323
    %v4325 = vpop.f32.mrf.mxu0
    %v4326 = vpop.f32.mrf.mxu0
    %4327 = vdwg.mxu0
    %4328 = vmatprep.subr.bf16.mxu0 %v3233
    %4329 = vmatpush1.bf16.msra.mxu0 %v3232
    %4330 = vmatprep.subr.bf16.mxu0 %v3230
    %4331 = vmatpush1.bf16.msra.mxu0 %v3229
    %4332 = vmatprep.subr.bf16.mxu0 %v3227
    %4333 = vmatpush1.bf16.msra.mxu0 %v3226
    %4334 = vmatprep.subr.bf16.mxu0 %v3224
    %4335 = vmatpush1.bf16.msra.mxu0 %v3223
    %4336 = vmatprep.subr.bf16.mxu0 %v3221
    %4337 = vmatpush1.bf16.msra.mxu0 %v3220
    %4338 = vmatprep.subr.bf16.mxu0 %v3218
    %4339 = vmatpush1.bf16.msra.mxu0 %v3217
    %4340 = vmatprep.subr.bf16.mxu0 %v3215
    %4341 = vmatpush1.bf16.msra.mxu0 %v3214
    %4342 = vmatprep.subr.bf16.mxu0 %v3212
    %4343 = vmatpush1.bf16.msra.mxu0 %v3211
    %4344 = vmatprep.subr.bf16.mxu0 %v3257
    %4345 = vmatpush2.bf16.msra.mxu0 %v3256
    %4346 = vmatprep.subr.bf16.mxu0 %v3254
    %4347 = vmatpush2.bf16.msra.mxu0 %v3253
    %4348 = vmatprep.subr.bf16.mxu0 %v3251
    %4349 = vmatpush2.bf16.msra.mxu0 %v3250
    %4350 = vmatprep.subr.bf16.mxu0 %v3248
    %4351 = vmatpush2.bf16.msra.mxu0 %v3247
    %4352 = vmatprep.subr.bf16.mxu0 %v3245
    %4353 = vmatpush2.bf16.msra.mxu0 %v3244
    %4354 = vmatprep.subr.bf16.mxu0 %v3242
    %4355 = vmatpush2.bf16.msra.mxu0 %v3241
    %4356 = vmatprep.subr.bf16.mxu0 %v3239
    %4357 = vmatpush2.bf16.msra.mxu0 %v3238
    %4358 = vmatprep.subr.bf16.mxu0 %v3236
    %4359 = vmatpush2.bf16.msra.mxu0 %v3235
    %4360 = vmatprep.mubr.bf16.mxu0 %v253
    %4361 = vmatmul.mubr.bf16.gmra.mxu0 %v252
    %v4362 = vpop.f32.mrf.mxu0
    %v4363 = vadd.f32 %v4322, %v4362
    %v4364 = vpop.f32.mrf.mxu0
    %v4365 = vadd.f32 %v4324, %v4364
    %v4366 = vpop.f32.mrf.mxu0
    %v4367 = vpop.f32.mrf.mxu0
    %4368 = vdwg.mxu0
    %4369 = vmatprep.subr.bf16.mxu0 %v3281
    %4370 = vmatpush1.bf16.msra.mxu0 %v3280
    %4371 = vmatprep.subr.bf16.mxu0 %v3278
    %4372 = vmatpush1.bf16.msra.mxu0 %v3277
    %4373 = vmatprep.subr.bf16.mxu0 %v3275
    %4374 = vmatpush1.bf16.msra.mxu0 %v3274
    %4375 = vmatprep.subr.bf16.mxu0 %v3272
    %4376 = vmatpush1.bf16.msra.mxu0 %v3271
    %4377 = vmatprep.subr.bf16.mxu0 %v3269
    %4378 = vmatpush1.bf16.msra.mxu0 %v3268
    %4379 = vmatprep.subr.bf16.mxu0 %v3266
    %4380 = vmatpush1.bf16.msra.mxu0 %v3265
    %4381 = vmatprep.subr.bf16.mxu0 %v3263
    %4382 = vmatpush1.bf16.msra.mxu0 %v3262
    %4383 = vmatprep.subr.bf16.mxu0 %v3260
    %4384 = vmatpush1.bf16.msra.mxu0 %v3259
    %4385 = vmatprep.subr.bf16.mxu0 %v3305
    %4386 = vmatpush2.bf16.msra.mxu0 %v3304
    %4387 = vmatprep.subr.bf16.mxu0 %v3302
    %4388 = vmatpush2.bf16.msra.mxu0 %v3301
    %4389 = vmatprep.subr.bf16.mxu0 %v3299
    %4390 = vmatpush2.bf16.msra.mxu0 %v3298
    %4391 = vmatprep.subr.bf16.mxu0 %v3296
    %4392 = vmatpush2.bf16.msra.mxu0 %v3295
    %4393 = vmatprep.subr.bf16.mxu0 %v3293
    %4394 = vmatpush2.bf16.msra.mxu0 %v3292
    %4395 = vmatprep.subr.bf16.mxu0 %v3290
    %4396 = vmatpush2.bf16.msra.mxu0 %v3289
    %4397 = vmatprep.subr.bf16.mxu0 %v3287
    %4398 = vmatpush2.bf16.msra.mxu0 %v3286
    %4399 = vmatprep.subr.bf16.mxu0 %v3284
    %4400 = vmatpush2.bf16.msra.mxu0 %v3283
    %4401 = vmatprep.mubr.bf16.mxu0 %v255
    %4402 = vmatmul.mubr.bf16.gmra.mxu0 %v254
    %v4403 = vpop.f32.mrf.mxu0
    %v4404 = vadd.f32 %v4363, %v4403
    %v4405 = vpop.f32.mrf.mxu0
    %v4406 = vadd.f32 %v4365, %v4405
    %v4407 = vpop.f32.mrf.mxu0
    %v4408 = vpop.f32.mrf.mxu0
    %4409 = vdwg.mxu0
    %4410 = vmatprep.subr.bf16.mxu0 %v3329
    %4411 = vmatpush1.bf16.msra.mxu0 %v3328
    %4412 = vmatprep.subr.bf16.mxu0 %v3326
    %4413 = vmatpush1.bf16.msra.mxu0 %v3325
    %4414 = vmatprep.subr.bf16.mxu0 %v3323
    %4415 = vmatpush1.bf16.msra.mxu0 %v3322
    %4416 = vmatprep.subr.bf16.mxu0 %v3320
    %4417 = vmatpush1.bf16.msra.mxu0 %v3319
    %4418 = vmatprep.subr.bf16.mxu0 %v3317
    %4419 = vmatpush1.bf16.msra.mxu0 %v3316
    %4420 = vmatprep.subr.bf16.mxu0 %v3314
    %4421 = vmatpush1.bf16.msra.mxu0 %v3313
    %4422 = vmatprep.subr.bf16.mxu0 %v3311
    %4423 = vmatpush1.bf16.msra.mxu0 %v3310
    %4424 = vmatprep.subr.bf16.mxu0 %v3308
    %4425 = vmatpush1.bf16.msra.mxu0 %v3307
    %4426 = vmatprep.subr.bf16.mxu0 %v3353
    %4427 = vmatpush2.bf16.msra.mxu0 %v3352
    %4428 = vmatprep.subr.bf16.mxu0 %v3350
    %4429 = vmatpush2.bf16.msra.mxu0 %v3349
    %4430 = vmatprep.subr.bf16.mxu0 %v3347
    %4431 = vmatpush2.bf16.msra.mxu0 %v3346
    %4432 = vmatprep.subr.bf16.mxu0 %v3344
    %4433 = vmatpush2.bf16.msra.mxu0 %v3343
    %4434 = vmatprep.subr.bf16.mxu0 %v3341
    %4435 = vmatpush2.bf16.msra.mxu0 %v3340
    %4436 = vmatprep.subr.bf16.mxu0 %v3338
    %4437 = vmatpush2.bf16.msra.mxu0 %v3337
    %4438 = vmatprep.subr.bf16.mxu0 %v3335
    %4439 = vmatpush2.bf16.msra.mxu0 %v3334
    %4440 = vmatprep.subr.bf16.mxu0 %v3332
    %4441 = vmatpush2.bf16.msra.mxu0 %v3331
    %4442 = vmatprep.mubr.bf16.mxu0 %v257
    %4443 = vmatmul.mubr.bf16.gmra.mxu0 %v256
    %v4444 = vpop.f32.mrf.mxu0
    %v4445 = vadd.f32 %v4404, %v4444
    %v4446 = vpop.f32.mrf.mxu0
    %v4447 = vadd.f32 %v4406, %v4446
    %v4448 = vpop.f32.mrf.mxu0
    %v4449 = vpop.f32.mrf.mxu0
    %4450 = vdwg.mxu0
    %4451 = vmatprep.subr.bf16.mxu0 %v3377
    %4452 = vmatpush1.bf16.msra.mxu0 %v3376
    %4453 = vmatprep.subr.bf16.mxu0 %v3374
    %4454 = vmatpush1.bf16.msra.mxu0 %v3373
    %4455 = vmatprep.subr.bf16.mxu0 %v3371
    %4456 = vmatpush1.bf16.msra.mxu0 %v3370
    %4457 = vmatprep.subr.bf16.mxu0 %v3368
    %4458 = vmatpush1.bf16.msra.mxu0 %v3367
    %4459 = vmatprep.subr.bf16.mxu0 %v3365
    %4460 = vmatpush1.bf16.msra.mxu0 %v3364
    %4461 = vmatprep.subr.bf16.mxu0 %v3362
    %4462 = vmatpush1.bf16.msra.mxu0 %v3361
    %4463 = vmatprep.subr.bf16.mxu0 %v3359
    %4464 = vmatpush1.bf16.msra.mxu0 %v3358
    %4465 = vmatprep.subr.bf16.mxu0 %v3356
    %4466 = vmatpush1.bf16.msra.mxu0 %v3355
    %4467 = vmatprep.subr.bf16.mxu0 %v3401
    %4468 = vmatpush2.bf16.msra.mxu0 %v3400
    %4469 = vmatprep.subr.bf16.mxu0 %v3398
    %4470 = vmatpush2.bf16.msra.mxu0 %v3397
    %4471 = vmatprep.subr.bf16.mxu0 %v3395
    %4472 = vmatpush2.bf16.msra.mxu0 %v3394
    %4473 = vmatprep.subr.bf16.mxu0 %v3392
    %4474 = vmatpush2.bf16.msra.mxu0 %v3391
    %4475 = vmatprep.subr.bf16.mxu0 %v3389
    %4476 = vmatpush2.bf16.msra.mxu0 %v3388
    %4477 = vmatprep.subr.bf16.mxu0 %v3386
    %4478 = vmatpush2.bf16.msra.mxu0 %v3385
    %4479 = vmatprep.subr.bf16.mxu0 %v3383
    %4480 = vmatpush2.bf16.msra.mxu0 %v3382
    %4481 = vmatprep.subr.bf16.mxu0 %v3380
    %4482 = vmatpush2.bf16.msra.mxu0 %v3379
    %4483 = vmatprep.mubr.bf16.mxu0 %v259
    %4484 = vmatmul.mubr.bf16.gmra.mxu0 %v258
    %v4485 = vpop.f32.mrf.mxu0
    %v4486 = vadd.f32 %v4445, %v4485
    %v4487 = vpop.f32.mrf.mxu0
    %v4488 = vadd.f32 %v4447, %v4487
    %v4489 = vpop.f32.mrf.mxu0
    %v4490 = vpop.f32.mrf.mxu0
    %4491 = vdwg.mxu0
    %4492 = vmatprep.subr.bf16.mxu0 %v3425
    %4493 = vmatpush1.bf16.msra.mxu0 %v3424
    %4494 = vmatprep.subr.bf16.mxu0 %v3422
    %4495 = vmatpush1.bf16.msra.mxu0 %v3421
    %4496 = vmatprep.subr.bf16.mxu0 %v3419
    %4497 = vmatpush1.bf16.msra.mxu0 %v3418
    %4498 = vmatprep.subr.bf16.mxu0 %v3416
    %4499 = vmatpush1.bf16.msra.mxu0 %v3415
    %4500 = vmatprep.subr.bf16.mxu0 %v3413
    %4501 = vmatpush1.bf16.msra.mxu0 %v3412
    %4502 = vmatprep.subr.bf16.mxu0 %v3410
    %4503 = vmatpush1.bf16.msra.mxu0 %v3409
    %4504 = vmatprep.subr.bf16.mxu0 %v3407
    %4505 = vmatpush1.bf16.msra.mxu0 %v3406
    %4506 = vmatprep.subr.bf16.mxu0 %v3404
    %4507 = vmatpush1.bf16.msra.mxu0 %v3403
    %4508 = vmatprep.subr.bf16.mxu0 %v3449
    %4509 = vmatpush2.bf16.msra.mxu0 %v3448
    %4510 = vmatprep.subr.bf16.mxu0 %v3446
    %4511 = vmatpush2.bf16.msra.mxu0 %v3445
    %4512 = vmatprep.subr.bf16.mxu0 %v3443
    %4513 = vmatpush2.bf16.msra.mxu0 %v3442
    %4514 = vmatprep.subr.bf16.mxu0 %v3440
    %4515 = vmatpush2.bf16.msra.mxu0 %v3439
    %4516 = vmatprep.subr.bf16.mxu0 %v3437
    %4517 = vmatpush2.bf16.msra.mxu0 %v3436
    %4518 = vmatprep.subr.bf16.mxu0 %v3434
    %4519 = vmatpush2.bf16.msra.mxu0 %v3433
    %4520 = vmatprep.subr.bf16.mxu0 %v3431
    %4521 = vmatpush2.bf16.msra.mxu0 %v3430
    %4522 = vmatprep.subr.bf16.mxu0 %v3428
    %4523 = vmatpush2.bf16.msra.mxu0 %v3427
    %4524 = vmatprep.mubr.bf16.mxu0 %v261
    %4525 = vmatmul.mubr.bf16.gmra.mxu0 %v260
    %v4526 = vpop.f32.mrf.mxu0
    %v4527 = vadd.f32 %v4486, %v4526
    %v4528 = vpop.f32.mrf.mxu0
    %v4529 = vadd.f32 %v4488, %v4528
    %v4530 = vpop.f32.mrf.mxu0
    %v4531 = vpop.f32.mrf.mxu0
    %4532 = vdwg.mxu0
    %4533 = vmatprep.subr.bf16.mxu0 %v3473
    %4534 = vmatpush1.bf16.msra.mxu0 %v3472
    %4535 = vmatprep.subr.bf16.mxu0 %v3470
    %4536 = vmatpush1.bf16.msra.mxu0 %v3469
    %4537 = vmatprep.subr.bf16.mxu0 %v3467
    %4538 = vmatpush1.bf16.msra.mxu0 %v3466
    %4539 = vmatprep.subr.bf16.mxu0 %v3464
    %4540 = vmatpush1.bf16.msra.mxu0 %v3463
    %4541 = vmatprep.subr.bf16.mxu0 %v3461
    %4542 = vmatpush1.bf16.msra.mxu0 %v3460
    %4543 = vmatprep.subr.bf16.mxu0 %v3458
    %4544 = vmatpush1.bf16.msra.mxu0 %v3457
    %4545 = vmatprep.subr.bf16.mxu0 %v3455
    %4546 = vmatpush1.bf16.msra.mxu0 %v3454
    %4547 = vmatprep.subr.bf16.mxu0 %v3452
    %4548 = vmatpush1.bf16.msra.mxu0 %v3451
    %4549 = vmatprep.subr.bf16.mxu0 %v3497
    %4550 = vmatpush2.bf16.msra.mxu0 %v3496
    %4551 = vmatprep.subr.bf16.mxu0 %v3494
    %4552 = vmatpush2.bf16.msra.mxu0 %v3493
    %4553 = vmatprep.subr.bf16.mxu0 %v3491
    %4554 = vmatpush2.bf16.msra.mxu0 %v3490
    %4555 = vmatprep.subr.bf16.mxu0 %v3488
    %4556 = vmatpush2.bf16.msra.mxu0 %v3487
    %4557 = vmatprep.subr.bf16.mxu0 %v3485
    %4558 = vmatpush2.bf16.msra.mxu0 %v3484
    %4559 = vmatprep.subr.bf16.mxu0 %v3482
    %4560 = vmatpush2.bf16.msra.mxu0 %v3481
    %4561 = vmatprep.subr.bf16.mxu0 %v3479
    %4562 = vmatpush2.bf16.msra.mxu0 %v3478
    %4563 = vmatprep.subr.bf16.mxu0 %v3476
    %4564 = vmatpush2.bf16.msra.mxu0 %v3475
    %4565 = vmatprep.mubr.bf16.mxu0 %v263
    %4566 = vmatmul.mubr.bf16.gmra.mxu0 %v262
    %v4567 = vpop.f32.mrf.mxu0
    %v4568 = vadd.f32 %v4527, %v4567
    %v4569 = vpop.f32.mrf.mxu0
    %v4570 = vadd.f32 %v4529, %v4569
    %v4571 = vpop.f32.mrf.mxu0
    %v4572 = vpop.f32.mrf.mxu0
    %4573 = vdwg.mxu0
    %4574 = vmatprep.subr.bf16.mxu0 %v3521
    %4575 = vmatpush1.bf16.msra.mxu0 %v3520
    %4576 = vmatprep.subr.bf16.mxu0 %v3518
    %4577 = vmatpush1.bf16.msra.mxu0 %v3517
    %4578 = vmatprep.subr.bf16.mxu0 %v3515
    %4579 = vmatpush1.bf16.msra.mxu0 %v3514
    %4580 = vmatprep.subr.bf16.mxu0 %v3512
    %4581 = vmatpush1.bf16.msra.mxu0 %v3511
    %4582 = vmatprep.subr.bf16.mxu0 %v3509
    %4583 = vmatpush1.bf16.msra.mxu0 %v3508
    %4584 = vmatprep.subr.bf16.mxu0 %v3506
    %4585 = vmatpush1.bf16.msra.mxu0 %v3505
    %4586 = vmatprep.subr.bf16.mxu0 %v3503
    %4587 = vmatpush1.bf16.msra.mxu0 %v3502
    %4588 = vmatprep.subr.bf16.mxu0 %v3500
    %4589 = vmatpush1.bf16.msra.mxu0 %v3499
    %4590 = vmatprep.subr.bf16.mxu0 %v3545
    %4591 = vmatpush2.bf16.msra.mxu0 %v3544
    %4592 = vmatprep.subr.bf16.mxu0 %v3542
    %4593 = vmatpush2.bf16.msra.mxu0 %v3541
    %4594 = vmatprep.subr.bf16.mxu0 %v3539
    %4595 = vmatpush2.bf16.msra.mxu0 %v3538
    %4596 = vmatprep.subr.bf16.mxu0 %v3536
    %4597 = vmatpush2.bf16.msra.mxu0 %v3535
    %4598 = vmatprep.subr.bf16.mxu0 %v3533
    %4599 = vmatpush2.bf16.msra.mxu0 %v3532
    %4600 = vmatprep.subr.bf16.mxu0 %v3530
    %4601 = vmatpush2.bf16.msra.mxu0 %v3529
    %4602 = vmatprep.subr.bf16.mxu0 %v3527
    %4603 = vmatpush2.bf16.msra.mxu0 %v3526
    %4604 = vmatprep.subr.bf16.mxu0 %v3524
    %4605 = vmatpush2.bf16.msra.mxu0 %v3523
    %4606 = vmatprep.mubr.bf16.mxu0 %v265
    %4607 = vmatmul.mubr.bf16.gmra.mxu0 %v264
    %v4608 = vpop.f32.mrf.mxu0
    %v4609 = vadd.f32 %v4568, %v4608
    %v4610 = vpop.f32.mrf.mxu0
    %v4611 = vadd.f32 %v4570, %v4610
    %v4612 = vpop.f32.mrf.mxu0
    %v4613 = vpop.f32.mrf.mxu0
    %4614 = vdwg.mxu0
    %4615 = vmatprep.subr.bf16.mxu0 0
    %4616 = vmatpush1.bf16.msra.mxu0 %v2994
    %4617 = vmatprep.subr.bf16.mxu0 0
    %4618 = vmatpush1.bf16.msra.mxu0 %v2991
    %4619 = vmatprep.subr.bf16.mxu0 0
    %4620 = vmatpush1.bf16.msra.mxu0 %v2988
    %4621 = vmatprep.subr.bf16.mxu0 0
    %4622 = vmatpush1.bf16.msra.mxu0 %v2985
    %4623 = vmatprep.subr.bf16.mxu0 0
    %4624 = vmatpush1.bf16.msra.mxu0 %v2982
    %4625 = vmatprep.subr.bf16.mxu0 0
    %4626 = vmatpush1.bf16.msra.mxu0 %v2979
    %4627 = vmatprep.subr.bf16.mxu0 0
    %4628 = vmatpush1.bf16.msra.mxu0 %v2976
    %4629 = vmatprep.subr.bf16.mxu0 0
    %4630 = vmatpush1.bf16.msra.mxu0 %v2973
    %4631 = vmatprep.subr.bf16.mxu0 0
    %4632 = vmatpush2.bf16.msra.mxu0 %v3018
    %4633 = vmatprep.subr.bf16.mxu0 0
    %4634 = vmatpush2.bf16.msra.mxu0 %v3015
    %4635 = vmatprep.subr.bf16.mxu0 0
    %4636 = vmatpush2.bf16.msra.mxu0 %v3012
    %4637 = vmatprep.subr.bf16.mxu0 0
    %4638 = vmatpush2.bf16.msra.mxu0 %v3009
    %4639 = vmatprep.subr.bf16.mxu0 0
    %4640 = vmatpush2.bf16.msra.mxu0 %v3006
    %4641 = vmatprep.subr.bf16.mxu0 0
    %4642 = vmatpush2.bf16.msra.mxu0 %v3003
    %4643 = vmatprep.subr.bf16.mxu0 0
    %4644 = vmatpush2.bf16.msra.mxu0 %v3000
    %4645 = vmatprep.subr.bf16.mxu0 0
    %4646 = vmatpush2.bf16.msra.mxu0 %v2997
    %4647 = vmatprep.mubr.bf16.mxu0 %v243
    %4648 = vmatmul.mubr.bf16.gmra.mxu0 %v242
    %v4649 = vpop.f32.mrf.mxu0
    %v4650 = vadd.f32 %v1047, %v4649
    %v4651 = vpop.f32.mrf.mxu0
    %v4652 = vpop.f32.mrf.mxu0
    %v4653 = vpop.f32.mrf.mxu0
    %4654 = vdwg.mxu0
    %4655 = vmatprep.subr.bf16.mxu0 0
    %4656 = vmatpush1.bf16.msra.mxu0 %v3042
    %4657 = vmatprep.subr.bf16.mxu0 0
    %4658 = vmatpush1.bf16.msra.mxu0 %v3039
    %4659 = vmatprep.subr.bf16.mxu0 0
    %4660 = vmatpush1.bf16.msra.mxu0 %v3036
    %4661 = vmatprep.subr.bf16.mxu0 0
    %4662 = vmatpush1.bf16.msra.mxu0 %v3033
    %4663 = vmatprep.subr.bf16.mxu0 0
    %4664 = vmatpush1.bf16.msra.mxu0 %v3030
    %4665 = vmatprep.subr.bf16.mxu0 0
    %4666 = vmatpush1.bf16.msra.mxu0 %v3027
    %4667 = vmatprep.subr.bf16.mxu0 0
    %4668 = vmatpush1.bf16.msra.mxu0 %v3024
    %4669 = vmatprep.subr.bf16.mxu0 0
    %4670 = vmatpush1.bf16.msra.mxu0 %v3021
    %4671 = vmatprep.subr.bf16.mxu0 0
    %4672 = vmatpush2.bf16.msra.mxu0 %v3066
    %4673 = vmatprep.subr.bf16.mxu0 0
    %4674 = vmatpush2.bf16.msra.mxu0 %v3063
    %4675 = vmatprep.subr.bf16.mxu0 0
    %4676 = vmatpush2.bf16.msra.mxu0 %v3060
    %4677 = vmatprep.subr.bf16.mxu0 0
    %4678 = vmatpush2.bf16.msra.mxu0 %v3057
    %4679 = vmatprep.subr.bf16.mxu0 0
    %4680 = vmatpush2.bf16.msra.mxu0 %v3054
    %4681 = vmatprep.subr.bf16.mxu0 0
    %4682 = vmatpush2.bf16.msra.mxu0 %v3051
    %4683 = vmatprep.subr.bf16.mxu0 0
    %4684 = vmatpush2.bf16.msra.mxu0 %v3048
    %4685 = vmatprep.subr.bf16.mxu0 0
    %4686 = vmatpush2.bf16.msra.mxu0 %v3045
    %4687 = vmatprep.mubr.bf16.mxu0 %v245
    %4688 = vmatmul.mubr.bf16.gmra.mxu0 %v244
    %v4689 = vpop.f32.mrf.mxu0
    %v4690 = vadd.f32 %v4650, %v4689
    %v4691 = vpop.f32.mrf.mxu0
    %v4692 = vpop.f32.mrf.mxu0
    %v4693 = vpop.f32.mrf.mxu0
    %4694 = vdwg.mxu0
    %4695 = vmatprep.subr.bf16.mxu0 0
    %4696 = vmatpush1.bf16.msra.mxu0 %v3090
    %4697 = vmatprep.subr.bf16.mxu0 0
    %4698 = vmatpush1.bf16.msra.mxu0 %v3087
    %4699 = vmatprep.subr.bf16.mxu0 0
    %4700 = vmatpush1.bf16.msra.mxu0 %v3084
    %4701 = vmatprep.subr.bf16.mxu0 0
    %4702 = vmatpush1.bf16.msra.mxu0 %v3081
    %4703 = vmatprep.subr.bf16.mxu0 0
    %4704 = vmatpush1.bf16.msra.mxu0 %v3078
    %4705 = vmatprep.subr.bf16.mxu0 0
    %4706 = vmatpush1.bf16.msra.mxu0 %v3075
    %4707 = vmatprep.subr.bf16.mxu0 0
    %4708 = vmatpush1.bf16.msra.mxu0 %v3072
    %4709 = vmatprep.subr.bf16.mxu0 0
    %4710 = vmatpush1.bf16.msra.mxu0 %v3069
    %4711 = vmatprep.subr.bf16.mxu0 0
    %4712 = vmatpush2.bf16.msra.mxu0 %v3114
    %4713 = vmatprep.subr.bf16.mxu0 0
    %4714 = vmatpush2.bf16.msra.mxu0 %v3111
    %4715 = vmatprep.subr.bf16.mxu0 0
    %4716 = vmatpush2.bf16.msra.mxu0 %v3108
    %4717 = vmatprep.subr.bf16.mxu0 0
    %4718 = vmatpush2.bf16.msra.mxu0 %v3105
    %4719 = vmatprep.subr.bf16.mxu0 0
    %4720 = vmatpush2.bf16.msra.mxu0 %v3102
    %4721 = vmatprep.subr.bf16.mxu0 0
    %4722 = vmatpush2.bf16.msra.mxu0 %v3099
    %4723 = vmatprep.subr.bf16.mxu0 0
    %4724 = vmatpush2.bf16.msra.mxu0 %v3096
    %4725 = vmatprep.subr.bf16.mxu0 0
    %4726 = vmatpush2.bf16.msra.mxu0 %v3093
    %4727 = vmatprep.mubr.bf16.mxu0 %v247
    %4728 = vmatmul.mubr.bf16.gmra.mxu0 %v246
    %v4729 = vpop.f32.mrf.mxu0
    %v4730 = vadd.f32 %v4690, %v4729
    %v4731 = vpop.f32.mrf.mxu0
    %v4732 = vpop.f32.mrf.mxu0
    %v4733 = vpop.f32.mrf.mxu0
    %4734 = vdwg.mxu0
    %4735 = vmatprep.subr.bf16.mxu0 0
    %4736 = vmatpush1.bf16.msra.mxu0 %v3138
    %4737 = vmatprep.subr.bf16.mxu0 0
    %4738 = vmatpush1.bf16.msra.mxu0 %v3135
    %4739 = vmatprep.subr.bf16.mxu0 0
    %4740 = vmatpush1.bf16.msra.mxu0 %v3132
    %4741 = vmatprep.subr.bf16.mxu0 0
    %4742 = vmatpush1.bf16.msra.mxu0 %v3129
    %4743 = vmatprep.subr.bf16.mxu0 0
    %4744 = vmatpush1.bf16.msra.mxu0 %v3126
    %4745 = vmatprep.subr.bf16.mxu0 0
    %4746 = vmatpush1.bf16.msra.mxu0 %v3123
    %4747 = vmatprep.subr.bf16.mxu0 0
    %4748 = vmatpush1.bf16.msra.mxu0 %v3120
    %4749 = vmatprep.subr.bf16.mxu0 0
    %4750 = vmatpush1.bf16.msra.mxu0 %v3117
    %4751 = vmatprep.subr.bf16.mxu0 0
    %4752 = vmatpush2.bf16.msra.mxu0 %v3162
    %4753 = vmatprep.subr.bf16.mxu0 0
    %4754 = vmatpush2.bf16.msra.mxu0 %v3159
    %4755 = vmatprep.subr.bf16.mxu0 0
    %4756 = vmatpush2.bf16.msra.mxu0 %v3156
    %4757 = vmatprep.subr.bf16.mxu0 0
    %4758 = vmatpush2.bf16.msra.mxu0 %v3153
    %4759 = vmatprep.subr.bf16.mxu0 0
    %4760 = vmatpush2.bf16.msra.mxu0 %v3150
    %4761 = vmatprep.subr.bf16.mxu0 0
    %4762 = vmatpush2.bf16.msra.mxu0 %v3147
    %4763 = vmatprep.subr.bf16.mxu0 0
    %4764 = vmatpush2.bf16.msra.mxu0 %v3144
    %4765 = vmatprep.subr.bf16.mxu0 0
    %4766 = vmatpush2.bf16.msra.mxu0 %v3141
    %4767 = vmatprep.mubr.bf16.mxu0 %v249
    %4768 = vmatmul.mubr.bf16.gmra.mxu0 %v248
    %v4769 = vpop.f32.mrf.mxu0
    %v4770 = vadd.f32 %v4730, %v4769
    %v4771 = vpop.f32.mrf.mxu0
    %v4772 = vpop.f32.mrf.mxu0
    %v4773 = vpop.f32.mrf.mxu0
    %4774 = vdwg.mxu0
    %4775 = vmatprep.subr.bf16.mxu0 0
    %4776 = vmatpush1.bf16.msra.mxu0 %v3186
    %4777 = vmatprep.subr.bf16.mxu0 0
    %4778 = vmatpush1.bf16.msra.mxu0 %v3183
    %4779 = vmatprep.subr.bf16.mxu0 0
    %4780 = vmatpush1.bf16.msra.mxu0 %v3180
    %4781 = vmatprep.subr.bf16.mxu0 0
    %4782 = vmatpush1.bf16.msra.mxu0 %v3177
    %4783 = vmatprep.subr.bf16.mxu0 0
    %4784 = vmatpush1.bf16.msra.mxu0 %v3174
    %4785 = vmatprep.subr.bf16.mxu0 0
    %4786 = vmatpush1.bf16.msra.mxu0 %v3171
    %4787 = vmatprep.subr.bf16.mxu0 0
    %4788 = vmatpush1.bf16.msra.mxu0 %v3168
    %4789 = vmatprep.subr.bf16.mxu0 0
    %4790 = vmatpush1.bf16.msra.mxu0 %v3165
    %4791 = vmatprep.subr.bf16.mxu0 0
    %4792 = vmatpush2.bf16.msra.mxu0 %v3210
    %4793 = vmatprep.subr.bf16.mxu0 0
    %4794 = vmatpush2.bf16.msra.mxu0 %v3207
    %4795 = vmatprep.subr.bf16.mxu0 0
    %4796 = vmatpush2.bf16.msra.mxu0 %v3204
    %4797 = vmatprep.subr.bf16.mxu0 0
    %4798 = vmatpush2.bf16.msra.mxu0 %v3201
    %4799 = vmatprep.subr.bf16.mxu0 0
    %4800 = vmatpush2.bf16.msra.mxu0 %v3198
    %4801 = vmatprep.subr.bf16.mxu0 0
    %4802 = vmatpush2.bf16.msra.mxu0 %v3195
    %4803 = vmatprep.subr.bf16.mxu0 0
    %4804 = vmatpush2.bf16.msra.mxu0 %v3192
    %4805 = vmatprep.subr.bf16.mxu0 0
    %4806 = vmatpush2.bf16.msra.mxu0 %v3189
    %4807 = vmatprep.mubr.bf16.mxu0 %v251
    %4808 = vmatmul.mubr.bf16.gmra.mxu0 %v250
    %v4809 = vpop.f32.mrf.mxu0
    %v4810 = vadd.f32 %v4770, %v4809
    %v4811 = vpop.f32.mrf.mxu0
    %v4812 = vpop.f32.mrf.mxu0
    %v4813 = vpop.f32.mrf.mxu0
    %4814 = vdwg.mxu0
    %4815 = vmatprep.subr.bf16.mxu0 0
    %4816 = vmatpush1.bf16.msra.mxu0 %v3234
    %4817 = vmatprep.subr.bf16.mxu0 0
    %4818 = vmatpush1.bf16.msra.mxu0 %v3231
    %4819 = vmatprep.subr.bf16.mxu0 0
    %4820 = vmatpush1.bf16.msra.mxu0 %v3228
    %4821 = vmatprep.subr.bf16.mxu0 0
    %4822 = vmatpush1.bf16.msra.mxu0 %v3225
    %4823 = vmatprep.subr.bf16.mxu0 0
    %4824 = vmatpush1.bf16.msra.mxu0 %v3222
    %4825 = vmatprep.subr.bf16.mxu0 0
    %4826 = vmatpush1.bf16.msra.mxu0 %v3219
    %4827 = vmatprep.subr.bf16.mxu0 0
    %4828 = vmatpush1.bf16.msra.mxu0 %v3216
    %4829 = vmatprep.subr.bf16.mxu0 0
    %4830 = vmatpush1.bf16.msra.mxu0 %v3213
    %4831 = vmatprep.subr.bf16.mxu0 0
    %4832 = vmatpush2.bf16.msra.mxu0 %v3258
    %4833 = vmatprep.subr.bf16.mxu0 0
    %4834 = vmatpush2.bf16.msra.mxu0 %v3255
    %4835 = vmatprep.subr.bf16.mxu0 0
    %4836 = vmatpush2.bf16.msra.mxu0 %v3252
    %4837 = vmatprep.subr.bf16.mxu0 0
    %4838 = vmatpush2.bf16.msra.mxu0 %v3249
    %4839 = vmatprep.subr.bf16.mxu0 0
    %4840 = vmatpush2.bf16.msra.mxu0 %v3246
    %4841 = vmatprep.subr.bf16.mxu0 0
    %4842 = vmatpush2.bf16.msra.mxu0 %v3243
    %4843 = vmatprep.subr.bf16.mxu0 0
    %4844 = vmatpush2.bf16.msra.mxu0 %v3240
    %4845 = vmatprep.subr.bf16.mxu0 0
    %4846 = vmatpush2.bf16.msra.mxu0 %v3237
    %4847 = vmatprep.mubr.bf16.mxu0 %v253
    %4848 = vmatmul.mubr.bf16.gmra.mxu0 %v252
    %v4849 = vpop.f32.mrf.mxu0
    %v4850 = vadd.f32 %v4810, %v4849
    %v4851 = vpop.f32.mrf.mxu0
    %v4852 = vpop.f32.mrf.mxu0
    %v4853 = vpop.f32.mrf.mxu0
    %4854 = vdwg.mxu0
    %4855 = vmatprep.subr.bf16.mxu0 0
    %4856 = vmatpush1.bf16.msra.mxu0 %v3282
    %4857 = vmatprep.subr.bf16.mxu0 0
    %4858 = vmatpush1.bf16.msra.mxu0 %v3279
    %4859 = vmatprep.subr.bf16.mxu0 0
    %4860 = vmatpush1.bf16.msra.mxu0 %v3276
    %4861 = vmatprep.subr.bf16.mxu0 0
    %4862 = vmatpush1.bf16.msra.mxu0 %v3273
    %4863 = vmatprep.subr.bf16.mxu0 0
    %4864 = vmatpush1.bf16.msra.mxu0 %v3270
    %4865 = vmatprep.subr.bf16.mxu0 0
    %4866 = vmatpush1.bf16.msra.mxu0 %v3267
    %4867 = vmatprep.subr.bf16.mxu0 0
    %4868 = vmatpush1.bf16.msra.mxu0 %v3264
    %4869 = vmatprep.subr.bf16.mxu0 0
    %4870 = vmatpush1.bf16.msra.mxu0 %v3261
    %4871 = vmatprep.subr.bf16.mxu0 0
    %4872 = vmatpush2.bf16.msra.mxu0 %v3306
    %4873 = vmatprep.subr.bf16.mxu0 0
    %4874 = vmatpush2.bf16.msra.mxu0 %v3303
    %4875 = vmatprep.subr.bf16.mxu0 0
    %4876 = vmatpush2.bf16.msra.mxu0 %v3300
    %4877 = vmatprep.subr.bf16.mxu0 0
    %4878 = vmatpush2.bf16.msra.mxu0 %v3297
    %4879 = vmatprep.subr.bf16.mxu0 0
    %4880 = vmatpush2.bf16.msra.mxu0 %v3294
    %4881 = vmatprep.subr.bf16.mxu0 0
    %4882 = vmatpush2.bf16.msra.mxu0 %v3291
    %4883 = vmatprep.subr.bf16.mxu0 0
    %4884 = vmatpush2.bf16.msra.mxu0 %v3288
    %4885 = vmatprep.subr.bf16.mxu0 0
    %4886 = vmatpush2.bf16.msra.mxu0 %v3285
    %4887 = vmatprep.mubr.bf16.mxu0 %v255
    %4888 = vmatmul.mubr.bf16.gmra.mxu0 %v254
    %v4889 = vpop.f32.mrf.mxu0
    %v4890 = vadd.f32 %v4850, %v4889
    %v4891 = vpop.f32.mrf.mxu0
    %v4892 = vpop.f32.mrf.mxu0
    %v4893 = vpop.f32.mrf.mxu0
    %4894 = vdwg.mxu0
    %4895 = vmatprep.subr.bf16.mxu0 0
    %4896 = vmatpush1.bf16.msra.mxu0 %v3330
    %4897 = vmatprep.subr.bf16.mxu0 0
    %4898 = vmatpush1.bf16.msra.mxu0 %v3327
    %4899 = vmatprep.subr.bf16.mxu0 0
    %4900 = vmatpush1.bf16.msra.mxu0 %v3324
    %4901 = vmatprep.subr.bf16.mxu0 0
    %4902 = vmatpush1.bf16.msra.mxu0 %v3321
    %4903 = vmatprep.subr.bf16.mxu0 0
    %4904 = vmatpush1.bf16.msra.mxu0 %v3318
    %4905 = vmatprep.subr.bf16.mxu0 0
    %4906 = vmatpush1.bf16.msra.mxu0 %v3315
    %4907 = vmatprep.subr.bf16.mxu0 0
    %4908 = vmatpush1.bf16.msra.mxu0 %v3312
    %4909 = vmatprep.subr.bf16.mxu0 0
    %4910 = vmatpush1.bf16.msra.mxu0 %v3309
    %4911 = vmatprep.subr.bf16.mxu0 0
    %4912 = vmatpush2.bf16.msra.mxu0 %v3354
    %4913 = vmatprep.subr.bf16.mxu0 0
    %4914 = vmatpush2.bf16.msra.mxu0 %v3351
    %4915 = vmatprep.subr.bf16.mxu0 0
    %4916 = vmatpush2.bf16.msra.mxu0 %v3348
    %4917 = vmatprep.subr.bf16.mxu0 0
    %4918 = vmatpush2.bf16.msra.mxu0 %v3345
    %4919 = vmatprep.subr.bf16.mxu0 0
    %4920 = vmatpush2.bf16.msra.mxu0 %v3342
    %4921 = vmatprep.subr.bf16.mxu0 0
    %4922 = vmatpush2.bf16.msra.mxu0 %v3339
    %4923 = vmatprep.subr.bf16.mxu0 0
    %4924 = vmatpush2.bf16.msra.mxu0 %v3336
    %4925 = vmatprep.subr.bf16.mxu0 0
    %4926 = vmatpush2.bf16.msra.mxu0 %v3333
    %4927 = vmatprep.mubr.bf16.mxu0 %v257
    %4928 = vmatmul.mubr.bf16.gmra.mxu0 %v256
    %v4929 = vpop.f32.mrf.mxu0
    %v4930 = vadd.f32 %v4890, %v4929
    %v4931 = vpop.f32.mrf.mxu0
    %v4932 = vpop.f32.mrf.mxu0
    %v4933 = vpop.f32.mrf.mxu0
    %4934 = vdwg.mxu0
    %4935 = vmatprep.subr.bf16.mxu0 0
    %4936 = vmatpush1.bf16.msra.mxu0 %v3378
    %4937 = vmatprep.subr.bf16.mxu0 0
    %4938 = vmatpush1.bf16.msra.mxu0 %v3375
    %4939 = vmatprep.subr.bf16.mxu0 0
    %4940 = vmatpush1.bf16.msra.mxu0 %v3372
    %4941 = vmatprep.subr.bf16.mxu0 0
    %4942 = vmatpush1.bf16.msra.mxu0 %v3369
    %4943 = vmatprep.subr.bf16.mxu0 0
    %4944 = vmatpush1.bf16.msra.mxu0 %v3366
    %4945 = vmatprep.subr.bf16.mxu0 0
    %4946 = vmatpush1.bf16.msra.mxu0 %v3363
    %4947 = vmatprep.subr.bf16.mxu0 0
    %4948 = vmatpush1.bf16.msra.mxu0 %v3360
    %4949 = vmatprep.subr.bf16.mxu0 0
    %4950 = vmatpush1.bf16.msra.mxu0 %v3357
    %4951 = vmatprep.subr.bf16.mxu0 0
    %4952 = vmatpush2.bf16.msra.mxu0 %v3402
    %4953 = vmatprep.subr.bf16.mxu0 0
    %4954 = vmatpush2.bf16.msra.mxu0 %v3399
    %4955 = vmatprep.subr.bf16.mxu0 0
    %4956 = vmatpush2.bf16.msra.mxu0 %v3396
    %4957 = vmatprep.subr.bf16.mxu0 0
    %4958 = vmatpush2.bf16.msra.mxu0 %v3393
    %4959 = vmatprep.subr.bf16.mxu0 0
    %4960 = vmatpush2.bf16.msra.mxu0 %v3390
    %4961 = vmatprep.subr.bf16.mxu0 0
    %4962 = vmatpush2.bf16.msra.mxu0 %v3387
    %4963 = vmatprep.subr.bf16.mxu0 0
    %4964 = vmatpush2.bf16.msra.mxu0 %v3384
    %4965 = vmatprep.subr.bf16.mxu0 0
    %4966 = vmatpush2.bf16.msra.mxu0 %v3381
    %4967 = vmatprep.mubr.bf16.mxu0 %v259
    %4968 = vmatmul.mubr.bf16.gmra.mxu0 %v258
    %v4969 = vpop.f32.mrf.mxu0
    %v4970 = vadd.f32 %v4930, %v4969
    %v4971 = vpop.f32.mrf.mxu0
    %v4972 = vpop.f32.mrf.mxu0
    %v4973 = vpop.f32.mrf.mxu0
    %4974 = vdwg.mxu0
    %4975 = vmatprep.subr.bf16.mxu0 0
    %4976 = vmatpush1.bf16.msra.mxu0 %v3426
    %4977 = vmatprep.subr.bf16.mxu0 0
    %4978 = vmatpush1.bf16.msra.mxu0 %v3423
    %4979 = vmatprep.subr.bf16.mxu0 0
    %4980 = vmatpush1.bf16.msra.mxu0 %v3420
    %4981 = vmatprep.subr.bf16.mxu0 0
    %4982 = vmatpush1.bf16.msra.mxu0 %v3417
    %4983 = vmatprep.subr.bf16.mxu0 0
    %4984 = vmatpush1.bf16.msra.mxu0 %v3414
    %4985 = vmatprep.subr.bf16.mxu0 0
    %4986 = vmatpush1.bf16.msra.mxu0 %v3411
    %4987 = vmatprep.subr.bf16.mxu0 0
    %4988 = vmatpush1.bf16.msra.mxu0 %v3408
    %4989 = vmatprep.subr.bf16.mxu0 0
    %4990 = vmatpush1.bf16.msra.mxu0 %v3405
    %4991 = vmatprep.subr.bf16.mxu0 0
    %4992 = vmatpush2.bf16.msra.mxu0 %v3450
    %4993 = vmatprep.subr.bf16.mxu0 0
    %4994 = vmatpush2.bf16.msra.mxu0 %v3447
    %4995 = vmatprep.subr.bf16.mxu0 0
    %4996 = vmatpush2.bf16.msra.mxu0 %v3444
    %4997 = vmatprep.subr.bf16.mxu0 0
    %4998 = vmatpush2.bf16.msra.mxu0 %v3441
    %4999 = vmatprep.subr.bf16.mxu0 0
    %5000 = vmatpush2.bf16.msra.mxu0 %v3438
    %5001 = vmatprep.subr.bf16.mxu0 0
    %5002 = vmatpush2.bf16.msra.mxu0 %v3435
    %5003 = vmatprep.subr.bf16.mxu0 0
    %5004 = vmatpush2.bf16.msra.mxu0 %v3432
    %5005 = vmatprep.subr.bf16.mxu0 0
    %5006 = vmatpush2.bf16.msra.mxu0 %v3429
    %5007 = vmatprep.mubr.bf16.mxu0 %v261
    %5008 = vmatmul.mubr.bf16.gmra.mxu0 %v260
    %v5009 = vpop.f32.mrf.mxu0
    %v5010 = vadd.f32 %v4970, %v5009
    %v5011 = vpop.f32.mrf.mxu0
    %v5012 = vpop.f32.mrf.mxu0
    %v5013 = vpop.f32.mrf.mxu0
    %5014 = vdwg.mxu0
    %5015 = vmatprep.subr.bf16.mxu0 0
    %5016 = vmatpush1.bf16.msra.mxu0 %v3474
    %5017 = vmatprep.subr.bf16.mxu0 0
    %5018 = vmatpush1.bf16.msra.mxu0 %v3471
    %5019 = vmatprep.subr.bf16.mxu0 0
    %5020 = vmatpush1.bf16.msra.mxu0 %v3468
    %5021 = vmatprep.subr.bf16.mxu0 0
    %5022 = vmatpush1.bf16.msra.mxu0 %v3465
    %5023 = vmatprep.subr.bf16.mxu0 0
    %5024 = vmatpush1.bf16.msra.mxu0 %v3462
    %5025 = vmatprep.subr.bf16.mxu0 0
    %5026 = vmatpush1.bf16.msra.mxu0 %v3459
    %5027 = vmatprep.subr.bf16.mxu0 0
    %5028 = vmatpush1.bf16.msra.mxu0 %v3456
    %5029 = vmatprep.subr.bf16.mxu0 0
    %5030 = vmatpush1.bf16.msra.mxu0 %v3453
    %5031 = vmatprep.subr.bf16.mxu0 0
    %5032 = vmatpush2.bf16.msra.mxu0 %v3498
    %5033 = vmatprep.subr.bf16.mxu0 0
    %5034 = vmatpush2.bf16.msra.mxu0 %v3495
    %5035 = vmatprep.subr.bf16.mxu0 0
    %5036 = vmatpush2.bf16.msra.mxu0 %v3492
    %5037 = vmatprep.subr.bf16.mxu0 0
    %5038 = vmatpush2.bf16.msra.mxu0 %v3489
    %5039 = vmatprep.subr.bf16.mxu0 0
    %5040 = vmatpush2.bf16.msra.mxu0 %v3486
    %5041 = vmatprep.subr.bf16.mxu0 0
    %5042 = vmatpush2.bf16.msra.mxu0 %v3483
    %5043 = vmatprep.subr.bf16.mxu0 0
    %5044 = vmatpush2.bf16.msra.mxu0 %v3480
    %5045 = vmatprep.subr.bf16.mxu0 0
    %5046 = vmatpush2.bf16.msra.mxu0 %v3477
    %5047 = vmatprep.mubr.bf16.mxu0 %v263
    %5048 = vmatmul.mubr.bf16.gmra.mxu0 %v262
    %v5049 = vpop.f32.mrf.mxu0
    %v5050 = vadd.f32 %v5010, %v5049
    %v5051 = vpop.f32.mrf.mxu0
    %v5052 = vpop.f32.mrf.mxu0
    %v5053 = vpop.f32.mrf.mxu0
    %5054 = vdwg.mxu0
    %5055 = vmatprep.subr.bf16.mxu0 0
    %5056 = vmatpush1.bf16.msra.mxu0 %v3522
    %5057 = vmatprep.subr.bf16.mxu0 0
    %5058 = vmatpush1.bf16.msra.mxu0 %v3519
    %5059 = vmatprep.subr.bf16.mxu0 0
    %5060 = vmatpush1.bf16.msra.mxu0 %v3516
    %5061 = vmatprep.subr.bf16.mxu0 0
    %5062 = vmatpush1.bf16.msra.mxu0 %v3513
    %5063 = vmatprep.subr.bf16.mxu0 0
    %5064 = vmatpush1.bf16.msra.mxu0 %v3510
    %5065 = vmatprep.subr.bf16.mxu0 0
    %5066 = vmatpush1.bf16.msra.mxu0 %v3507
    %5067 = vmatprep.subr.bf16.mxu0 0
    %5068 = vmatpush1.bf16.msra.mxu0 %v3504
    %5069 = vmatprep.subr.bf16.mxu0 0
    %5070 = vmatpush1.bf16.msra.mxu0 %v3501
    %5071 = vmatprep.subr.bf16.mxu0 0
    %5072 = vmatpush2.bf16.msra.mxu0 %v3546
    %5073 = vmatprep.subr.bf16.mxu0 0
    %5074 = vmatpush2.bf16.msra.mxu0 %v3543
    %5075 = vmatprep.subr.bf16.mxu0 0
    %5076 = vmatpush2.bf16.msra.mxu0 %v3540
    %5077 = vmatprep.subr.bf16.mxu0 0
    %5078 = vmatpush2.bf16.msra.mxu0 %v3537
    %5079 = vmatprep.subr.bf16.mxu0 0
    %5080 = vmatpush2.bf16.msra.mxu0 %v3534
    %5081 = vmatprep.subr.bf16.mxu0 0
    %5082 = vmatpush2.bf16.msra.mxu0 %v3531
    %5083 = vmatprep.subr.bf16.mxu0 0
    %5084 = vmatpush2.bf16.msra.mxu0 %v3528
    %5085 = vmatprep.subr.bf16.mxu0 0
    %5086 = vmatpush2.bf16.msra.mxu0 %v3525
    %5087 = vmatprep.mubr.bf16.mxu0 %v265
    %5088 = vmatmul.mubr.bf16.gmra.mxu0 %v264
    %v5089 = vpop.f32.mrf.mxu0
    %v5090 = vadd.f32 %v5050, %v5089
    %v5091 = vpop.f32.mrf.mxu0
    %v5092 = vpop.f32.mrf.mxu0
    %v5093 = vpop.f32.mrf.mxu0
    %5094 = vdwg.mxu0
    %v5095 = vmax.f32 %v4609, 0.0
    %v5096 = vmax.f32 %v4611, 0.0
    %v5097 = vmax.f32 %v5090, 0.0
    %v5098 = vpack.c.bf16 %v5095, %v5095
    %v5099 = vpack.c.bf16 %v5096, %v5096
    %v5100 = vpack.c.bf16 %v5097, %v5097
    %v5101 = vld [vmem:[#allocation7] sm:$0xff]
    %v5102 = vld [vmem:[#allocation7 + $0x8] sm:$0xff]
    %v5103 = vld [vmem:[#allocation7 + $0x10] sm:$0xff]
    %v5104 = vld [vmem:[#allocation7 + $0x18] sm:$0xff]
    %v5105 = vld [vmem:[#allocation7 + $0x20] sm:$0xff]
    %v5106 = vld [vmem:[#allocation7 + $0x28] sm:$0xff]
    %v5107 = vld [vmem:[#allocation7 + $0x30] sm:$0xff]
    %v5108 = vld [vmem:[#allocation7 + $0x38] sm:$0xff]
    %v5109 = vld [vmem:[#allocation7 + $0x40] sm:$0xff]
    %v5110 = vld [vmem:[#allocation7 + $0x48] sm:$0xff]
    %v5111 = vld [vmem:[#allocation7 + $0x50] sm:$0xff]
    %v5112 = vld [vmem:[#allocation7 + $0x58] sm:$0xff]
    %v5113 = vld [vmem:[#allocation7 + $0x60] sm:$0xff]
    %v5114 = vld [vmem:[#allocation7 + $0x68] sm:$0xff]
    %v5115 = vld [vmem:[#allocation7 + $0x70] sm:$0xff]
    %v5116 = vld [vmem:[#allocation7 + $0x78] sm:$0xff]
    %v5117 = vld [vmem:[#allocation7 + $0x80] sm:$0xff]
    %v5118 = vld [vmem:[#allocation7 + $0x88] sm:$0xff]
    %v5119 = vld [vmem:[#allocation7 + $0x90] sm:$0xff]
    %v5120 = vld [vmem:[#allocation7 + $0x98] sm:$0xff]
    %v5121 = vld [vmem:[#allocation7 + $0xa0] sm:$0xff]
    %v5122 = vld [vmem:[#allocation7 + $0xa8] sm:$0xff]
    %v5123 = vld [vmem:[#allocation7 + $0xb0] sm:$0xff]
    %v5124 = vld [vmem:[#allocation7 + $0xb8] sm:$0xff]
    %v5125 = vld [vmem:[#allocation7 + $0xc0] sm:$0xff]
    %v5126 = vld [vmem:[#allocation7 + $0xc8] sm:$0xff]
    %v5127 = vld [vmem:[#allocation7 + $0xd0] sm:$0xff]
    %v5128 = vld [vmem:[#allocation7 + $0xd8] sm:$0xff]
    %v5129 = vld [vmem:[#allocation7 + $0xe0] sm:$0xff]
    %v5130 = vld [vmem:[#allocation7 + $0xe8] sm:$0xff]
    %v5131 = vld [vmem:[#allocation7 + $0xf0] sm:$0xff]
    %v5132 = vld [vmem:[#allocation7 + $0xf8] sm:$0xff]
    %v5133 = vld [vmem:[#allocation7 + $0x100] sm:$0xff]
    %v5134 = vld [vmem:[#allocation7 + $0x108] sm:$0xff]
    %v5135 = vld [vmem:[#allocation7 + $0x110] sm:$0xff]
    %v5136 = vld [vmem:[#allocation7 + $0x118] sm:$0xff]
    %v5137 = vld [vmem:[#allocation7 + $0x120] sm:$0xff]
    %v5138 = vld [vmem:[#allocation7 + $0x128] sm:$0xff]
    %v5139 = vld [vmem:[#allocation7 + $0x130] sm:$0xff]
    %v5140 = vld [vmem:[#allocation7 + $0x138] sm:$0xff]
    %v5141 = vld [vmem:[#allocation7 + $0x140] sm:$0xff]
    %v5142 = vld [vmem:[#allocation7 + $0x148] sm:$0xff]
    %v5143 = vld [vmem:[#allocation7 + $0x150] sm:$0xff]
    %v5144 = vld [vmem:[#allocation7 + $0x158] sm:$0xff]
    %v5145 = vld [vmem:[#allocation7 + $0x160] sm:$0xff]
    %v5146 = vld [vmem:[#allocation7 + $0x168] sm:$0xff]
    %v5147 = vld [vmem:[#allocation7 + $0x170] sm:$0xff]
    %v5148 = vld [vmem:[#allocation7 + $0x178] sm:$0xff]
    %v5149 = vld [vmem:[#allocation8] sm:$0x3]
    %v5151 = vlaneseq
    %v5152 = vshrl.u32 %v5151, 7
    %v5153 = vsub.s32 0, %v5152
    %v5154 = vrot.slane %v5149, %v5153
    %v5155 = vlaneseq
    %v5156 = vshrl.u32 %v5155, 7
    %v5157 = vsub.s32 1, %v5156
    %v5158 = vrot.slane %v5149, %v5157
    %v5209 = vunpack.c.l.b16 %v5101
    %v5210 = vunpack.c.h.b16 %v5101
    %v5211 = vunpack.c.l.b16 %v5102
    %v5212 = vunpack.c.h.b16 %v5102
    %v5213 = vunpack.c.l.b16 %v5103
    %v5214 = vunpack.c.h.b16 %v5103
    %v5215 = vunpack.c.l.b16 %v5104
    %v5216 = vunpack.c.h.b16 %v5104
    %v5217 = vunpack.c.l.b16 %v5105
    %v5218 = vunpack.c.h.b16 %v5105
    %v5219 = vunpack.c.l.b16 %v5106
    %v5220 = vunpack.c.h.b16 %v5106
    %v5221 = vunpack.c.l.b16 %v5107
    %v5222 = vunpack.c.h.b16 %v5107
    %v5223 = vunpack.c.l.b16 %v5108
    %v5224 = vunpack.c.h.b16 %v5108
    %v5225 = vunpack.c.l.b16 %v5109
    %v5226 = vunpack.c.h.b16 %v5109
    %v5227 = vunpack.c.l.b16 %v5110
    %v5228 = vunpack.c.h.b16 %v5110
    %v5229 = vunpack.c.l.b16 %v5111
    %v5230 = vunpack.c.h.b16 %v5111
    %v5231 = vunpack.c.l.b16 %v5112
    %v5232 = vunpack.c.h.b16 %v5112
    %v5233 = vunpack.c.l.b16 %v5113
    %v5234 = vunpack.c.h.b16 %v5113
    %v5235 = vunpack.c.l.b16 %v5114
    %v5236 = vunpack.c.h.b16 %v5114
    %v5237 = vunpack.c.l.b16 %v5115
    %v5238 = vunpack.c.h.b16 %v5115
    %v5239 = vunpack.c.l.b16 %v5116
    %v5240 = vunpack.c.h.b16 %v5116
    %v5241 = vunpack.c.l.b16 %v5117
    %v5242 = vunpack.c.h.b16 %v5117
    %v5243 = vunpack.c.l.b16 %v5118
    %v5244 = vunpack.c.h.b16 %v5118
    %v5245 = vunpack.c.l.b16 %v5119
    %v5246 = vunpack.c.h.b16 %v5119
    %v5247 = vunpack.c.l.b16 %v5120
    %v5248 = vunpack.c.h.b16 %v5120
    %v5249 = vunpack.c.l.b16 %v5121
    %v5250 = vunpack.c.h.b16 %v5121
    %v5251 = vunpack.c.l.b16 %v5122
    %v5252 = vunpack.c.h.b16 %v5122
    %v5253 = vunpack.c.l.b16 %v5123
    %v5254 = vunpack.c.h.b16 %v5123
    %v5255 = vunpack.c.l.b16 %v5124
    %v5256 = vunpack.c.h.b16 %v5124
    %v5257 = vunpack.c.l.b16 %v5125
    %v5258 = vunpack.c.h.b16 %v5125
    %v5259 = vunpack.c.l.b16 %v5126
    %v5260 = vunpack.c.h.b16 %v5126
    %v5261 = vunpack.c.l.b16 %v5127
    %v5262 = vunpack.c.h.b16 %v5127
    %v5263 = vunpack.c.l.b16 %v5128
    %v5264 = vunpack.c.h.b16 %v5128
    %v5265 = vunpack.c.l.b16 %v5129
    %v5266 = vunpack.c.h.b16 %v5129
    %v5267 = vunpack.c.l.b16 %v5130
    %v5268 = vunpack.c.h.b16 %v5130
    %v5269 = vunpack.c.l.b16 %v5131
    %v5270 = vunpack.c.h.b16 %v5131
    %v5271 = vunpack.c.l.b16 %v5132
    %v5272 = vunpack.c.h.b16 %v5132
    %v5273 = vunpack.c.l.b16 %v5133
    %v5274 = vunpack.c.h.b16 %v5133
    %v5275 = vunpack.c.l.b16 %v5134
    %v5276 = vunpack.c.h.b16 %v5134
    %v5277 = vunpack.c.l.b16 %v5135
    %v5278 = vunpack.c.h.b16 %v5135
    %v5279 = vunpack.c.l.b16 %v5136
    %v5280 = vunpack.c.h.b16 %v5136
    %v5281 = vunpack.c.l.b16 %v5137
    %v5282 = vunpack.c.h.b16 %v5137
    %v5283 = vunpack.c.l.b16 %v5138
    %v5284 = vunpack.c.h.b16 %v5138
    %v5285 = vunpack.c.l.b16 %v5139
    %v5286 = vunpack.c.h.b16 %v5139
    %v5287 = vunpack.c.l.b16 %v5140
    %v5288 = vunpack.c.h.b16 %v5140
    %v5289 = vunpack.c.l.b16 %v5141
    %v5290 = vunpack.c.h.b16 %v5141
    %v5291 = vunpack.c.l.b16 %v5142
    %v5292 = vunpack.c.h.b16 %v5142
    %v5293 = vunpack.c.l.b16 %v5143
    %v5294 = vunpack.c.h.b16 %v5143
    %v5295 = vunpack.c.l.b16 %v5144
    %v5296 = vunpack.c.h.b16 %v5144
    %v5297 = vunpack.c.l.b16 %v5145
    %v5298 = vunpack.c.h.b16 %v5145
    %v5299 = vunpack.c.l.b16 %v5146
    %v5300 = vunpack.c.h.b16 %v5146
    %v5301 = vunpack.c.l.b16 %v5147
    %v5302 = vunpack.c.h.b16 %v5147
    %v5303 = vunpack.c.l.b16 %v5148
    %v5304 = vunpack.c.h.b16 %v5148
    %v5305 = vpack.c.b16 %v5211, %v5209
    %v5306 = vpack.c.b16 %v5212, %v5210
    %v5307 = vpack.c.b16 %v5215, %v5213
    %v5308 = vpack.c.b16 %v5216, %v5214
    %v5309 = vpack.c.b16 %v5219, %v5217
    %v5310 = vpack.c.b16 %v5220, %v5218
    %v5311 = vpack.c.b16 %v5223, %v5221
    %v5312 = vpack.c.b16 %v5224, %v5222
    %v5313 = vpack.c.b16 %v5227, %v5225
    %v5314 = vpack.c.b16 %v5228, %v5226
    %v5315 = vpack.c.b16 %v5231, %v5229
    %v5316 = vpack.c.b16 %v5232, %v5230
    %v5317 = vpack.c.b16 %v5235, %v5233
    %v5318 = vpack.c.b16 %v5236, %v5234
    %v5319 = vpack.c.b16 %v5239, %v5237
    %v5320 = vpack.c.b16 %v5240, %v5238
    %v5321 = vpack.c.b16 %v5243, %v5241
    %v5322 = vpack.c.b16 %v5244, %v5242
    %v5323 = vpack.c.b16 %v5247, %v5245
    %v5324 = vpack.c.b16 %v5248, %v5246
    %v5325 = vpack.c.b16 %v5251, %v5249
    %v5326 = vpack.c.b16 %v5252, %v5250
    %v5327 = vpack.c.b16 %v5255, %v5253
    %v5328 = vpack.c.b16 %v5256, %v5254
    %v5329 = vpack.c.b16 %v5259, %v5257
    %v5330 = vpack.c.b16 %v5260, %v5258
    %v5331 = vpack.c.b16 %v5263, %v5261
    %v5332 = vpack.c.b16 %v5264, %v5262
    %v5333 = vpack.c.b16 %v5267, %v5265
    %v5334 = vpack.c.b16 %v5268, %v5266
    %v5335 = vpack.c.b16 %v5271, %v5269
    %v5336 = vpack.c.b16 %v5272, %v5270
    %v5337 = vpack.c.b16 %v5275, %v5273
    %v5338 = vpack.c.b16 %v5276, %v5274
    %v5339 = vpack.c.b16 %v5279, %v5277
    %v5340 = vpack.c.b16 %v5280, %v5278
    %v5341 = vpack.c.b16 %v5283, %v5281
    %v5342 = vpack.c.b16 %v5284, %v5282
    %v5343 = vpack.c.b16 %v5287, %v5285
    %v5344 = vpack.c.b16 %v5288, %v5286
    %v5345 = vpack.c.b16 %v5291, %v5289
    %v5346 = vpack.c.b16 %v5292, %v5290
    %v5347 = vpack.c.b16 %v5295, %v5293
    %v5348 = vpack.c.b16 %v5296, %v5294
    %v5349 = vpack.c.b16 %v5299, %v5297
    %v5350 = vpack.c.b16 %v5300, %v5298
    %v5351 = vpack.c.b16 %v5303, %v5301
    %v5352 = vpack.c.b16 %v5304, %v5302
    %5401 = vmatprep.subr.bf16.mxu0 %v5320
    %5402 = vmatpush1.bf16.msra.mxu0 %v5319
    %5403 = vmatprep.subr.bf16.mxu0 %v5318
    %5404 = vmatpush1.bf16.msra.mxu0 %v5317
    %5405 = vmatprep.subr.bf16.mxu0 %v5316
    %5406 = vmatpush1.bf16.msra.mxu0 %v5315
    %5407 = vmatprep.subr.bf16.mxu0 %v5314
    %5408 = vmatpush1.bf16.msra.mxu0 %v5313
    %5409 = vmatprep.subr.bf16.mxu0 %v5312
    %5410 = vmatpush1.bf16.msra.mxu0 %v5311
    %5411 = vmatprep.subr.bf16.mxu0 %v5310
    %5412 = vmatpush1.bf16.msra.mxu0 %v5309
    %5413 = vmatprep.subr.bf16.mxu0 %v5308
    %5414 = vmatpush1.bf16.msra.mxu0 %v5307
    %5415 = vmatprep.subr.bf16.mxu0 %v5306
    %5416 = vmatpush1.bf16.msra.mxu0 %v5305
    %5417 = vmatprep.subr.bf16.mxu0 %v5336
    %5418 = vmatpush2.bf16.msra.mxu0 %v5335
    %5419 = vmatprep.subr.bf16.mxu0 %v5334
    %5420 = vmatpush2.bf16.msra.mxu0 %v5333
    %5421 = vmatprep.subr.bf16.mxu0 %v5332
    %5422 = vmatpush2.bf16.msra.mxu0 %v5331
    %5423 = vmatprep.subr.bf16.mxu0 %v5330
    %5424 = vmatpush2.bf16.msra.mxu0 %v5329
    %5425 = vmatprep.subr.bf16.mxu0 %v5328
    %5426 = vmatpush2.bf16.msra.mxu0 %v5327
    %5427 = vmatprep.subr.bf16.mxu0 %v5326
    %5428 = vmatpush2.bf16.msra.mxu0 %v5325
    %5429 = vmatprep.subr.bf16.mxu0 %v5324
    %5430 = vmatpush2.bf16.msra.mxu0 %v5323
    %5431 = vmatprep.subr.bf16.mxu0 %v5322
    %5432 = vmatpush2.bf16.msra.mxu0 %v5321
    %5433 = vmatprep.mubr.bf16.mxu0 %v5099
    %5434 = vmatmul.mubr.bf16.gmra.mxu0 %v5098
    %v5435 = vpop.f32.mrf.mxu0
    %v5436 = vadd.f32 %v5154, %v5435
    %v5437 = vpop.f32.mrf.mxu0
    %v5438 = vadd.f32 %v5158, %v5437
    %v5439 = vpop.f32.mrf.mxu0
    %v5440 = vpop.f32.mrf.mxu0
    %5441 = vdwg.mxu0
    %5442 = vmatprep.subr.bf16.mxu0 %v5352
    %5443 = vmatpush1.bf16.msra.mxu0 %v5351
    %5444 = vmatprep.subr.bf16.mxu0 %v5350
    %5445 = vmatpush1.bf16.msra.mxu0 %v5349
    %5446 = vmatprep.subr.bf16.mxu0 %v5348
    %5447 = vmatpush1.bf16.msra.mxu0 %v5347
    %5448 = vmatprep.subr.bf16.mxu0 %v5346
    %5449 = vmatpush1.bf16.msra.mxu0 %v5345
    %5450 = vmatprep.subr.bf16.mxu0 %v5344
    %5451 = vmatpush1.bf16.msra.mxu0 %v5343
    %5452 = vmatprep.subr.bf16.mxu0 %v5342
    %5453 = vmatpush1.bf16.msra.mxu0 %v5341
    %5454 = vmatprep.subr.bf16.mxu0 %v5340
    %5455 = vmatpush1.bf16.msra.mxu0 %v5339
    %5456 = vmatprep.subr.bf16.mxu0 %v5338
    %5457 = vmatpush1.bf16.msra.mxu0 %v5337
    %5458 = vmatprep.subr.bf16.mxu0 0
    %5459 = vmatpush2.bf16.msra.mxu0 0
    %5460 = vmatprep.subr.bf16.mxu0 0
    %5461 = vmatpush2.bf16.msra.mxu0 0
    %5462 = vmatprep.subr.bf16.mxu0 0
    %5463 = vmatpush2.bf16.msra.mxu0 0
    %5464 = vmatprep.subr.bf16.mxu0 0
    %5465 = vmatpush2.bf16.msra.mxu0 0
    %5466 = vmatprep.subr.bf16.mxu0 0
    %5467 = vmatpush2.bf16.msra.mxu0 0
    %5468 = vmatprep.subr.bf16.mxu0 0
    %5469 = vmatpush2.bf16.msra.mxu0 0
    %5470 = vmatprep.subr.bf16.mxu0 0
    %5471 = vmatpush2.bf16.msra.mxu0 0
    %5472 = vmatprep.subr.bf16.mxu0 0
    %5473 = vmatpush2.bf16.msra.mxu0 0
    %5474 = vmatprep.mubr.bf16.mxu0 0
    %5475 = vmatmul.mubr.bf16.gmra.mxu0 %v5100
    %v5476 = vpop.f32.mrf.mxu0
    %v5477 = vadd.f32 %v5436, %v5476
    %v5478 = vpop.f32.mrf.mxu0
    %v5479 = vadd.f32 %v5438, %v5478
    %v5480 = vpop.f32.mrf.mxu0
    %v5481 = vpop.f32.mrf.mxu0
    %5482 = vdwg.mxu0
    %v5483 = vmax.f32 %v5477, 0.0
    %v5484 = vmax.f32 %v5479, 0.0
    %v5485 = vpack.c.bf16 %v5483, %v5483
    %v5486 = vpack.c.bf16 %v5484, %v5484
    %v5487 = vld [vmem:[#allocation10] sm:$0xf]
    %v5488 = vld [vmem:[#allocation10 + $0x4] sm:$0xf]
    %v5489 = vld [vmem:[#allocation10 + $0x8] sm:$0xf]
    %v5490 = vld [vmem:[#allocation10 + $0xc] sm:$0xf]
    %v5491 = vld [vmem:[#allocation10 + $0x10] sm:$0xf]
    %v5492 = vld [vmem:[#allocation10 + $0x14] sm:$0xf]
    %v5493 = vld [vmem:[#allocation10 + $0x18] sm:$0xf]
    %v5494 = vld [vmem:[#allocation10 + $0x1c] sm:$0xf]
    %v5495 = vld [vmem:[#allocation10 + $0x20] sm:$0xf]
    %v5496 = vld [vmem:[#allocation10 + $0x24] sm:$0xf]
    %v5497 = vld [vmem:[#allocation10 + $0x28] sm:$0xf]
    %v5498 = vld [vmem:[#allocation10 + $0x2c] sm:$0xf]
    %v5499 = vld [vmem:[#allocation10 + $0x30] sm:$0xf]
    %v5500 = vld [vmem:[#allocation10 + $0x34] sm:$0xf]
    %v5501 = vld [vmem:[#allocation10 + $0x38] sm:$0xf]
    %v5502 = vld [vmem:[#allocation10 + $0x3c] sm:$0xf]
    %v5503 = vld [vmem:[#allocation10 + $0x40] sm:$0xf]
    %v5504 = vld [vmem:[#allocation10 + $0x44] sm:$0xf]
    %v5505 = vld [vmem:[#allocation10 + $0x48] sm:$0xf]
    %v5506 = vld [vmem:[#allocation10 + $0x4c] sm:$0xf]
    %v5507 = vld [vmem:[#allocation10 + $0x50] sm:$0xf]
    %v5508 = vld [vmem:[#allocation10 + $0x54] sm:$0xf]
    %v5509 = vld [vmem:[#allocation10 + $0x58] sm:$0xf]
    %v5510 = vld [vmem:[#allocation10 + $0x5c] sm:$0xf]
    %v5511 = vld [vmem:[#allocation10 + $0x60] sm:$0xf]
    %v5512 = vld [vmem:[#allocation10 + $0x64] sm:$0xf]
    %v5513 = vld [vmem:[#allocation10 + $0x68] sm:$0xf]
    %v5514 = vld [vmem:[#allocation10 + $0x6c] sm:$0xf]
    %v5515 = vld [vmem:[#allocation10 + $0x70] sm:$0xf]
    %v5516 = vld [vmem:[#allocation10 + $0x74] sm:$0xf]
    %v5517 = vld [vmem:[#allocation10 + $0x78] sm:$0xf]
    %v5518 = vld [vmem:[#allocation10 + $0x7c] sm:$0xf]
    %v5519 = vld [vmem:[#allocation11] sm:$0x1]
    %v5521 = vlaneseq
    %v5522 = vshrl.u32 %v5521, 7
    %v5523 = vsub.s32 0, %v5522
    %v5524 = vrot.slane %v5519, %v5523
    %v5558 = vunpack.c.l.b16 %v5487
    %v5559 = vunpack.c.l.b16 %v5488
    %v5560 = vunpack.c.l.b16 %v5489
    %v5561 = vunpack.c.l.b16 %v5490
    %v5562 = vunpack.c.l.b16 %v5491
    %v5563 = vunpack.c.l.b16 %v5492
    %v5564 = vunpack.c.l.b16 %v5493
    %v5565 = vunpack.c.l.b16 %v5494
    %v5566 = vunpack.c.l.b16 %v5495
    %v5567 = vunpack.c.l.b16 %v5496
    %v5568 = vunpack.c.l.b16 %v5497
    %v5569 = vunpack.c.l.b16 %v5498
    %v5570 = vunpack.c.l.b16 %v5499
    %v5571 = vunpack.c.l.b16 %v5500
    %v5572 = vunpack.c.l.b16 %v5501
    %v5573 = vunpack.c.l.b16 %v5502
    %v5574 = vunpack.c.l.b16 %v5503
    %v5575 = vunpack.c.l.b16 %v5504
    %v5576 = vunpack.c.l.b16 %v5505
    %v5577 = vunpack.c.l.b16 %v5506
    %v5578 = vunpack.c.l.b16 %v5507
    %v5579 = vunpack.c.l.b16 %v5508
    %v5580 = vunpack.c.l.b16 %v5509
    %v5581 = vunpack.c.l.b16 %v5510
    %v5582 = vunpack.c.l.b16 %v5511
    %v5583 = vunpack.c.l.b16 %v5512
    %v5584 = vunpack.c.l.b16 %v5513
    %v5585 = vunpack.c.l.b16 %v5514
    %v5586 = vunpack.c.l.b16 %v5515
    %v5587 = vunpack.c.l.b16 %v5516
    %v5588 = vunpack.c.l.b16 %v5517
    %v5589 = vunpack.c.l.b16 %v5518
    %v5590 = vpack.c.b16 %v5559, %v5558
    %v5591 = vpack.c.b16 %v5561, %v5560
    %v5592 = vpack.c.b16 %v5563, %v5562
    %v5593 = vpack.c.b16 %v5565, %v5564
    %v5594 = vpack.c.b16 %v5567, %v5566
    %v5595 = vpack.c.b16 %v5569, %v5568
    %v5596 = vpack.c.b16 %v5571, %v5570
    %v5597 = vpack.c.b16 %v5573, %v5572
    %v5598 = vpack.c.b16 %v5575, %v5574
    %v5599 = vpack.c.b16 %v5577, %v5576
    %v5600 = vpack.c.b16 %v5579, %v5578
    %v5601 = vpack.c.b16 %v5581, %v5580
    %v5602 = vpack.c.b16 %v5583, %v5582
    %v5603 = vpack.c.b16 %v5585, %v5584
    %v5604 = vpack.c.b16 %v5587, %v5586
    %v5605 = vpack.c.b16 %v5589, %v5588
    %5622 = vmatprep.subr.bf16.mxu0 0
    %5623 = vmatpush1.bf16.msra.mxu0 %v5597
    %5624 = vmatprep.subr.bf16.mxu0 0
    %5625 = vmatpush1.bf16.msra.mxu0 %v5596
    %5626 = vmatprep.subr.bf16.mxu0 0
    %5627 = vmatpush1.bf16.msra.mxu0 %v5595
    %5628 = vmatprep.subr.bf16.mxu0 0
    %5629 = vmatpush1.bf16.msra.mxu0 %v5594
    %5630 = vmatprep.subr.bf16.mxu0 0
    %5631 = vmatpush1.bf16.msra.mxu0 %v5593
    %5632 = vmatprep.subr.bf16.mxu0 0
    %5633 = vmatpush1.bf16.msra.mxu0 %v5592
    %5634 = vmatprep.subr.bf16.mxu0 0
    %5635 = vmatpush1.bf16.msra.mxu0 %v5591
    %5636 = vmatprep.subr.bf16.mxu0 0
    %5637 = vmatpush1.bf16.msra.mxu0 %v5590
    %5638 = vmatprep.subr.bf16.mxu0 0
    %5639 = vmatpush2.bf16.msra.mxu0 %v5605
    %5640 = vmatprep.subr.bf16.mxu0 0
    %5641 = vmatpush2.bf16.msra.mxu0 %v5604
    %5642 = vmatprep.subr.bf16.mxu0 0
    %5643 = vmatpush2.bf16.msra.mxu0 %v5603
    %5644 = vmatprep.subr.bf16.mxu0 0
    %5645 = vmatpush2.bf16.msra.mxu0 %v5602
    %5646 = vmatprep.subr.bf16.mxu0 0
    %5647 = vmatpush2.bf16.msra.mxu0 %v5601
    %5648 = vmatprep.subr.bf16.mxu0 0
    %5649 = vmatpush2.bf16.msra.mxu0 %v5600
    %5650 = vmatprep.subr.bf16.mxu0 0
    %5651 = vmatpush2.bf16.msra.mxu0 %v5599
    %5652 = vmatprep.subr.bf16.mxu0 0
    %5653 = vmatpush2.bf16.msra.mxu0 %v5598
    %5654 = vmatprep.mubr.bf16.mxu0 %v5486
    %5655 = vmatmul.mubr.bf16.gmra.mxu0 %v5485
    %v5656 = vpop.f32.mrf.mxu0
    %v5657 = vadd.f32 %v5524, %v5656
    %v5658 = vpop.f32.mrf.mxu0
    %v5659 = vpop.f32.mrf.mxu0
    %v5660 = vpop.f32.mrf.mxu0
    %5661 = vdwg.mxu0
    %5662 = vst [vmem:[#allocation13] sm:$0x3] %v5657
    // Predicated region
    $region54: #{cnn0_forward.1} parent=1 // pred_check
      _
    $region55: #{cnn0_forward.1} parent=1 // pred_check_branch
      %5664 = sbr.rel (0) target = $region57
    $region56: #{cnn0_forward.1} parent=1 // pred_region
      %s5666 = ssub.s32 32, 32
      %5667 = vsyncadd [#allocation4], %s5666
      %s5669 = sshll.u32 [#allocation13], 4
      %s5670 = int_to_ptr.vmem [resolvable:$true] %s5669
      %5672 = dma.vmem_to_hbm [thread:$0]  %s5670, 32, %s7, [#allocation4]
    $region57: #{cnn0_forward.1} parent=1 // pred_fallthru
      _
    // Predicated region
    $region58: #{cnn0_forward.1} parent=1 // pred_check
      _
    $region59: #{cnn0_forward.1} parent=1 // pred_check_branch
      %5674 = sbr.rel (0) target = $region61
    $region60: #{cnn0_forward.1} parent=1 // pred_region
      %5675 = dma.done [#allocation4], 32
    $region61: #{cnn0_forward.1} parent=1 // pred_fallthru
      _
    %5676 = vsyncpa [#allocation3], 1
    %5677 = vsyncpa [#allocation6], 1
    %5678 = vsyncpa [#allocation9], 1
    %5679 = vsyncpa [#allocation12], 1
    %5680 = vsyncpa [#allocation4], 1

</llo_original>
